<compile_context>
chip_gen: v5e
topology: v5e:2x2
jax: 0.10.0
libtpu: 0.0.40
codegen_flags: <defaults>
</compile_context>

<pallas_src>
import functools

import jax
import jax.numpy as jnp
from jax.experimental import pallas as pl
from jax.experimental.pallas import tpu as pltpu


# ----------------------------- configuration -----------------------------
DIM = 32
WINDOW = (8, 8)
NUM_HEADS = 4
HEAD_DIM = DIM // NUM_HEADS
N_TOKENS = WINDOW[0] * WINDOW[1]
SCALE = HEAD_DIM ** (-0.5)
B_WINDOWS = 8                      # demo: 8 windows

# Windows processed per grid step. Per-window in-kernel f32 working set is
# ~100 KiB (x/out tiles double-buffered + qkv + (N,N) attention tiles + y
# scratch), so 64 windows stays well under the scoped VMEM limit on every
# generation (v5e default 16 MiB scoped, v7x 32 MiB scoped of 64 MiB physical).
MAX_WINDOWS_PER_BLOCK = 64


def _pick_block_windows(n_windows, max_block=MAX_WINDOWS_PER_BLOCK):
    """Largest divisor of n_windows <= max_block; prefer >=2 grid steps (v7x)."""
    divisors = [d for d in range(1, n_windows + 1) if n_windows % d == 0]
    fitting = [d for d in divisors if d <= max_block]
    best = max(fitting)
    if best == n_windows and n_windows > 1:
        two_step = [d for d in fitting if n_windows // d >= 2]
        if two_step:
            best = max(two_step)
    return best


# ------------------------------ Pallas kernel -----------------------------
def window_attn_kernel(x_ref, wqkv_ref, bqkv_ref, bias_ref, wproj_ref,
                       bproj_ref, o_ref, y_ref):
    # x_ref: (Bw, N, C) block of Bw windows for this grid step.
    Bw, N, C = x_ref.shape
    H = bias_ref.shape[0]
    hd = C // H
    mxu_dt = x_ref.dtype          # bf16 on the v6e/v7x fast path, else f32

    # ---- fused QKV projection for all Bw windows at once (one big MXU pass) ----
    x2d = x_ref[...].reshape(Bw * N, C)
    qkv = jnp.dot(x2d, wqkv_ref[...],
                  preferred_element_type=jnp.float32) + bqkv_ref[...]
    qkv = qkv.reshape(Bw, N, 3 * C)           # leading-dim reshape only (layout-safe)

    # ---- per-head attention, batched over the Bw windows (single batch dim) ----
    # Head count is tiny (H=4) and unrolled; each dot is window-batched so the
    # working tiles are (Bw, N, N) 64-lane attention slabs, with no explicit k.T.
    for h in range(H):
        lo, hi = h * hd, (h + 1) * hd
        # SCALE is already folded into the Q columns of Wqkv / bqkv.
        q = qkv[:, :, lo:hi].astype(mxu_dt)                   # (Bw, N, hd)
        k = qkv[:, :, C + lo:C + hi].astype(mxu_dt)           # (Bw, N, hd)
        v = qkv[:, :, 2 * C + lo:2 * C + hi].astype(mxu_dt)   # (Bw, N, hd)

        # attn[b] = q[b] @ k[b]^T  (batched contraction, no transpose)
        attn = jax.lax.dot_general(
            q, k, (((2,), (2,)), ((0,), (0,))),
            preferred_element_type=jnp.float32)               # (Bw, N, N)
        attn = attn + bias_ref[h][None]                       # relative pos bias

        # softmax over keys — f32, max-stabilized, EUP approx reciprocal
        attn = attn - jnp.max(attn, axis=-1, keepdims=True)
        p = jnp.exp(attn)
        p = p * pl.reciprocal(jnp.sum(p, axis=-1, keepdims=True), approx=True)

        # y[b] = p[b] @ v[b]; write the head slice straight into the VMEM scratch
        y_h = jax.lax.dot_general(
            p.astype(mxu_dt), v, (((2,), (1,)), ((0,), (0,))),
            preferred_element_type=jnp.float32)               # (Bw, N, hd)
        y_ref[:, lo:hi] = y_h.reshape(Bw * N, hd)

    # ---- fused output projection for all Bw windows at once ----
    out = jnp.dot(y_ref[...].astype(mxu_dt), wproj_ref[...],
                  preferred_element_type=jnp.float32) + bproj_ref[...]
    o_ref[...] = out.reshape(Bw, N, C).astype(o_ref.dtype)


# ------------------------------- wrapper ----------------------------------
@jax.jit
def window_attention(x, wqkv_t, bqkv, rel_bias, wproj_t, bproj):
    """x: (B_, N, C). wqkv_t: (C, 3C) with SCALE folded into the Q columns.
    bqkv: (1, 3C) (Q slice pre-scaled). rel_bias: (H, N, N). wproj_t: (C, C).
    bproj: (1, C)."""
    B_, N, C = x.shape
    H = rel_bias.shape[0]
    Bw = _pick_block_windows(B_)
    grid = (B_ // Bw,)

    return pl.pallas_call(
        window_attn_kernel,
        out_shape=jax.ShapeDtypeStruct((B_, N, C), x.dtype),
        grid=grid,
        in_specs=[
            pl.BlockSpec((Bw, N, C), lambda b: (b, 0, 0)),       # x (Bw windows)
            pl.BlockSpec((C, 3 * C), lambda b: (0, 0)),          # Wqkv (in,out), resident
            pl.BlockSpec((1, 3 * C), lambda b: (0, 0)),          # bqkv, resident
            pl.BlockSpec((H, N, N), lambda b: (0, 0, 0)),        # rel pos bias, resident
            pl.BlockSpec((C, C), lambda b: (0, 0)),              # Wproj (in,out), resident
            pl.BlockSpec((1, C), lambda b: (0, 0)),              # bproj, resident
        ],
        out_specs=pl.BlockSpec((Bw, N, C), lambda b: (b, 0, 0)),
        scratch_shapes=[pltpu.VMEM((Bw * N, C), jnp.float32)],   # per-head y buffer
        compiler_params=pltpu.CompilerParams(
            dimension_semantics=("parallel",)),
    )(x, wqkv_t, bqkv, rel_bias, wproj_t, bproj)


# --------------- relative position bias construction (glue) ---------------
def build_relative_position_index(window_size):
    Wh, Ww = window_size
    coords_h = jnp.arange(Wh)
    coords_w = jnp.arange(Ww)
    coords = jnp.stack(jnp.meshgrid(coords_h, coords_w, indexing="ij"))  # (2, Wh, Ww)
    coords_flatten = coords.reshape(2, -1)                               # (2, N)
    rel = coords_flatten[:, :, None] - coords_flatten[:, None, :]        # (2, N, N)
    rel = rel.transpose(1, 2, 0)                                         # (N, N, 2)
    rel = rel.at[:, :, 0].add(Wh - 1)
    rel = rel.at[:, :, 1].add(Ww - 1)
    rel = rel.at[:, :, 0].multiply(2 * Ww - 1)
    return rel.sum(-1)                                                   # (N, N)


def build_relative_position_bias(table, window_size):
    # table: ((2Wh-1)*(2Ww-1), num_heads)
    N = window_size[0] * window_size[1]
    idx = build_relative_position_index(window_size).reshape(-1)
    bias = table[idx].reshape(N, N, -1)        # (N, N, H)
    return bias.transpose(2, 0, 1)             # (H, N, N)


# ------------------------- pure-JAX reference ------------------------------
def reference(x, wqkv_t, bqkv, rel_bias, wproj_t, bproj):
    """Faithful to the PyTorch module (unscaled weights, explicit SCALE)."""
    B_, N, C = x.shape
    qkv = x @ wqkv_t + bqkv                                  # (B_, N, 3C)
    qkv = qkv.reshape(B_, N, 3, NUM_HEADS, HEAD_DIM).transpose(2, 0, 3, 1, 4)
    q, k, v = qkv[0], qkv[1], qkv[2]                         # (B_, H, N, hd)
    q = q * SCALE
    attn = jnp.einsum("bhnd,bhmd->bhnm", q, k) + rel_bias[None]
    attn = jax.nn.softmax(attn, axis=-1)
    y = jnp.einsum("bhnm,bhmd->bhnd", attn, v)
    y = y.transpose(0, 2, 1, 3).reshape(B_, N, C)
    return y @ wproj_t + bproj


# --------------------------------- main ------------------------------------
if __name__ == "__main__":
    key = jax.random.PRNGKey(0)
    k_x, k_tab, k_wqkv, k_bqkv, k_wproj, k_bproj = jax.random.split(key, 6)

    x = jax.random.normal(k_x, (B_WINDOWS, N_TOKENS, DIM), dtype=jnp.float32)

    # parameters (deterministic, synthetic)
    table = 0.02 * jax.random.normal(
        k_tab, ((2 * WINDOW[0] - 1) * (2 * WINDOW[1] - 1), NUM_HEADS),
        dtype=jnp.float32)
    wqkv = 0.05 * jax.random.normal(k_wqkv, (3 * DIM, DIM), dtype=jnp.float32)
    bqkv = 0.01 * jax.random.normal(k_bqkv, (3 * DIM,), dtype=jnp.float32)
    wproj = 0.05 * jax.random.normal(k_wproj, (DIM, DIM), dtype=jnp.float32)
    bproj = 0.01 * jax.random.normal(k_bproj, (DIM,), dtype=jnp.float32)

    # kernel-side parameters: pre-transposed to (in, out); softmax SCALE folded
    # into the Q columns / Q bias slice (one-time weight transform).
    wqkv_t = wqkv.T                                          # (C, 3C)
    wproj_t = wproj.T                                        # (C, C)
    wqkv_t_scaled = wqkv_t.at[:, :DIM].multiply(SCALE)       # scale Q columns
    bqkv_scaled = bqkv.at[:DIM].multiply(SCALE)              # scale Q bias
    bqkv_2d = bqkv_scaled.reshape(1, -1)                     # (1, 3C)
    bproj_2d = bproj.reshape(1, -1)                          # (1, C)

    rel_bias = build_relative_position_bias(table, WINDOW)   # (H, N, N), f32

    ref = reference(x, wqkv_t, bqkv, rel_bias, wproj_t, bproj)

    # ---- f32 run (tolerance accounts for the approx EUP reciprocal) ----
    out_f32 = window_attention(x, wqkv_t_scaled, bqkv_2d, rel_bias,
                               wproj_t, bproj_2d)
    out_f32 = jax.block_until_ready(out_f32)
    assert out_f32.shape == (B_WINDOWS, N_TOKENS, DIM)
    assert jnp.allclose(out_f32, ref, atol=1e-2, rtol=1e-2), "f32 mismatch vs reference"

    # ---- bf16 MXU fast path (v6e/v7x): bf16 inputs/weights, f32 accumulation
    # and f32 softmax inside the kernel; tolerance loosened for bf16 rounding.
    out_bf16 = window_attention(
        x.astype(jnp.bfloat16), wqkv_t_scaled.astype(jnp.bfloat16), bqkv_2d,
        rel_bias, wproj_t.astype(jnp.bfloat16), bproj_2d)
    out_bf16 = jax.block_until_ready(out_bf16)
    assert out_bf16.shape == (B_WINDOWS, N_TOKENS, DIM)
    assert jnp.allclose(out_bf16.astype(jnp.float32), ref,
                        atol=5e-2, rtol=5e-2), "bf16 mismatch vs reference"

    print("KERNEL_OK")
</pallas_src>

<mosaic_0001>
module attributes {stable_mosaic.version = 11 : i64} {
  func.func @window_attn_kernel(%arg0: i32, %arg1: memref<4x64x32xf32, #tpu.memory_space<vmem>>, %arg2: memref<32x96xf32, #tpu.memory_space<vmem>>, %arg3: memref<1x96xf32, #tpu.memory_space<vmem>>, %arg4: memref<4x64x64xf32, #tpu.memory_space<vmem>>, %arg5: memref<32x32xf32, #tpu.memory_space<vmem>>, %arg6: memref<1x32xf32, #tpu.memory_space<vmem>>, %arg7: memref<4x64x32xf32, #tpu.memory_space<vmem>>, %arg8: memref<256x32xf32, #tpu.memory_space<vmem>>) attributes {dimension_semantics = [#tpu.dimension_semantics<parallel>], iteration_bounds = array<i64: 2>, scalar_prefetch = 0 : i64, scratch_operands = 1 : i64, tpu.core_type = #tpu.core_type<tc>, window_params = [{transform_indices = @transform_0, window_bounds = array<i64: 4, 64, 32>}, {pipeline_mode = #tpu.pipeline_mode<synchronous>, transform_indices = @transform_1, window_bounds = array<i64: 32, 96>}, {pipeline_mode = #tpu.pipeline_mode<synchronous>, transform_indices = @transform_2, window_bounds = array<i64: 1, 96>}, {pipeline_mode = #tpu.pipeline_mode<synchronous>, transform_indices = @transform_3, window_bounds = array<i64: 4, 64, 64>}, {pipeline_mode = #tpu.pipeline_mode<synchronous>, transform_indices = @transform_4, window_bounds = array<i64: 32, 32>}, {pipeline_mode = #tpu.pipeline_mode<synchronous>, transform_indices = @transform_5, window_bounds = array<i64: 1, 32>}, {transform_indices = @transform_6, window_bounds = array<i64: 4, 64, 32>}]} {
    %c0 = arith.constant 0 : index
    %c0_0 = arith.constant 0 : index
    %c0_1 = arith.constant 0 : index
    %0 = vector.load %arg1[%c0, %c0_0, %c0_1] : memref<4x64x32xf32, #tpu.memory_space<vmem>>, vector<4x64x32xf32>
    %1 = vector.shape_cast %0 : vector<4x64x32xf32> to vector<256x32xf32>
    %c0_2 = arith.constant 0 : index
    %c0_3 = arith.constant 0 : index
    %2 = vector.load %arg2[%c0_2, %c0_3] : memref<32x96xf32, #tpu.memory_space<vmem>>, vector<32x96xf32>
    %cst = arith.constant dense<0.000000e+00> : vector<256x96xf32>
    %3 = tpu.matmul %1, %2, %cst {dimension_numbers = #tpu.dot_dimension_numbers<[1], [0], [0], [1], [0, 0, 1, 1], [], []>} : vector<256x32xf32>, vector<32x96xf32>, vector<256x96xf32> -> vector<256x96xf32>
    %c0_4 = arith.constant 0 : index
    %c0_5 = arith.constant 0 : index
    %4 = vector.load %arg3[%c0_4, %c0_5] : memref<1x96xf32, #tpu.memory_space<vmem>>, vector<1x96xf32>
    %5 = vector.broadcast %4 : vector<1x96xf32> to vector<256x96xf32>
    %6 = arith.addf %3, %5 : vector<256x96xf32>
    %7 = vector.shape_cast %6 : vector<256x96xf32> to vector<4x64x96xf32>
    %8 = vector.extract_strided_slice %7 {offsets = [0, 0, 0], sizes = [4, 64, 8], strides = [1, 1, 1]} : vector<4x64x96xf32> to vector<4x64x8xf32>
    %9 = vector.extract_strided_slice %7 {offsets = [0, 0, 32], sizes = [4, 64, 8], strides = [1, 1, 1]} : vector<4x64x96xf32> to vector<4x64x8xf32>
    %10 = vector.extract_strided_slice %7 {offsets = [0, 0, 64], sizes = [4, 64, 8], strides = [1, 1, 1]} : vector<4x64x96xf32> to vector<4x64x8xf32>
    %cst_6 = arith.constant dense<0.000000e+00> : vector<4x64x64xf32>
    %11 = tpu.matmul %8, %9, %cst_6 {dimension_numbers = #tpu.dot_dimension_numbers<[2], [2], [1], [1], [0, 0, 0, 1, 1, 1], [0], [0]>} : vector<4x64x8xf32>, vector<4x64x8xf32>, vector<4x64x64xf32> -> vector<4x64x64xf32>
    %c0_7 = arith.constant 0 : index
    %c0_8 = arith.constant 0 : index
    %c0_9 = arith.constant 0 : index
    %12 = vector.load %arg4[%c0_7, %c0_8, %c0_9] : memref<4x64x64xf32, #tpu.memory_space<vmem>>, vector<1x64x64xf32>
    %13 = vector.shape_cast %12 : vector<1x64x64xf32> to vector<64x64xf32>
    %14 = vector.shape_cast %13 : vector<64x64xf32> to vector<1x64x64xf32>
    %15 = vector.broadcast %14 : vector<1x64x64xf32> to vector<4x64x64xf32>
    %16 = arith.addf %11, %15 : vector<4x64x64xf32>
    %cst_10 = arith.constant dense<0xFF800000> : vector<4x64xf32>
    %17 = vector.multi_reduction <maximumf>, %16, %cst_10 [2] : vector<4x64x64xf32> to vector<4x64xf32>
    %18 = vector.shape_cast %17 : vector<4x64xf32> to vector<4x64x1xf32>
    %19 = vector.broadcast %18 : vector<4x64x1xf32> to vector<4x64x64xf32>
    %20 = arith.subf %16, %19 : vector<4x64x64xf32>
    %21 = math.exp %20 : vector<4x64x64xf32>
    %cst_11 = arith.constant dense<0.000000e+00> : vector<4x64xf32>
    %22 = vector.multi_reduction <add>, %21, %cst_11 [2] : vector<4x64x64xf32> to vector<4x64xf32>
    %23 = vector.shape_cast %22 : vector<4x64xf32> to vector<4x64x1xf32>
    %24 = tpu.reciprocal %23 {approx = true} : vector<4x64x1xf32> -> vector<4x64x1xf32>
    %25 = vector.broadcast %24 : vector<4x64x1xf32> to vector<4x64x64xf32>
    %26 = arith.mulf %21, %25 : vector<4x64x64xf32>
    %cst_12 = arith.constant dense<0.000000e+00> : vector<4x64x8xf32>
    %27 = tpu.matmul %26, %10, %cst_12 {dimension_numbers = #tpu.dot_dimension_numbers<[2], [1], [1], [2], [0, 0, 0, 1, 1, 2], [0], [0]>} : vector<4x64x64xf32>, vector<4x64x8xf32>, vector<4x64x8xf32> -> vector<4x64x8xf32>
    %28 = vector.shape_cast %27 : vector<4x64x8xf32> to vector<256x8xf32>
    %c0_13 = arith.constant 0 : index
    %c0_14 = arith.constant 0 : index
    %29 = vector.load %arg8[%c0_13, %c0_14] : memref<256x32xf32, #tpu.memory_space<vmem>>, vector<256x8xf32>
    tpu.vector_store %arg8[%c0_13, %c0_14], %28 {strides = array<i32>} : memref<256x32xf32, #tpu.memory_space<vmem>>, vector<256x8xf32>,
    %30 = vector.extract_strided_slice %7 {offsets = [0, 0, 8], sizes = [4, 64, 8], strides = [1, 1, 1]} : vector<4x64x96xf32> to vector<4x64x8xf32>
    %31 = vector.extract_strided_slice %7 {offsets = [0, 0, 40], sizes = [4, 64, 8], strides = [1, 1, 1]} : vector<4x64x96xf32> to vector<4x64x8xf32>
    %32 = vector.extract_strided_slice %7 {offsets = [0, 0, 72], sizes = [4, 64, 8], strides = [1, 1, 1]} : vector<4x64x96xf32> to vector<4x64x8xf32>
    %cst_15 = arith.constant dense<0.000000e+00> : vector<4x64x64xf32>
    %33 = tpu.matmul %30, %31, %cst_15 {dimension_numbers = #tpu.dot_dimension_numbers<[2], [2], [1], [1], [0, 0, 0, 1, 1, 1], [0], [0]>} : vector<4x64x8xf32>, vector<4x64x8xf32>, vector<4x64x64xf32> -> vector<4x64x64xf32>
    %c1 = arith.constant 1 : index
    %c0_16 = arith.constant 0 : index
    %c0_17 = arith.constant 0 : index
    %34 = vector.load %arg4[%c1, %c0_16, %c0_17] : memref<4x64x64xf32, #tpu.memory_space<vmem>>, vector<1x64x64xf32>
    %35 = vector.shape_cast %34 : vector<1x64x64xf32> to vector<64x64xf32>
    %36 = vector.shape_cast %35 : vector<64x64xf32> to vector<1x64x64xf32>
    %37 = vector.broadcast %36 : vector<1x64x64xf32> to vector<4x64x64xf32>
    %38 = arith.addf %33, %37 : vector<4x64x64xf32>
    %cst_18 = arith.constant dense<0xFF800000> : vector<4x64xf32>
    %39 = vector.multi_reduction <maximumf>, %38, %cst_18 [2] : vector<4x64x64xf32> to vector<4x64xf32>
    %40 = vector.shape_cast %39 : vector<4x64xf32> to vector<4x64x1xf32>
    %41 = vector.broadcast %40 : vector<4x64x1xf32> to vector<4x64x64xf32>
    %42 = arith.subf %38, %41 : vector<4x64x64xf32>
    %43 = math.exp %42 : vector<4x64x64xf32>
    %cst_19 = arith.constant dense<0.000000e+00> : vector<4x64xf32>
    %44 = vector.multi_reduction <add>, %43, %cst_19 [2] : vector<4x64x64xf32> to vector<4x64xf32>
    %45 = vector.shape_cast %44 : vector<4x64xf32> to vector<4x64x1xf32>
    %46 = tpu.reciprocal %45 {approx = true} : vector<4x64x1xf32> -> vector<4x64x1xf32>
    %47 = vector.broadcast %46 : vector<4x64x1xf32> to vector<4x64x64xf32>
    %48 = arith.mulf %43, %47 : vector<4x64x64xf32>
    %cst_20 = arith.constant dense<0.000000e+00> : vector<4x64x8xf32>
    %49 = tpu.matmul %48, %32, %cst_20 {dimension_numbers = #tpu.dot_dimension_numbers<[2], [1], [1], [2], [0, 0, 0, 1, 1, 2], [0], [0]>} : vector<4x64x64xf32>, vector<4x64x8xf32>, vector<4x64x8xf32> -> vector<4x64x8xf32>
    %50 = vector.shape_cast %49 : vector<4x64x8xf32> to vector<256x8xf32>
    %c0_21 = arith.constant 0 : index
    %c8 = arith.constant 8 : index
    %51 = vector.load %arg8[%c0_21, %c8] : memref<256x32xf32, #tpu.memory_space<vmem>>, vector<256x8xf32>
    tpu.vector_store %arg8[%c0_21, %c8], %50 {strides = array<i32>} : memref<256x32xf32, #tpu.memory_space<vmem>>, vector<256x8xf32>,
    %52 = vector.extract_strided_slice %7 {offsets = [0, 0, 16], sizes = [4, 64, 8], strides = [1, 1, 1]} : vector<4x64x96xf32> to vector<4x64x8xf32>
    %53 = vector.extract_strided_slice %7 {offsets = [0, 0, 48], sizes = [4, 64, 8], strides = [1, 1, 1]} : vector<4x64x96xf32> to vector<4x64x8xf32>
    %54 = vector.extract_strided_slice %7 {offsets = [0, 0, 80], sizes = [4, 64, 8], strides = [1, 1, 1]} : vector<4x64x96xf32> to vector<4x64x8xf32>
    %cst_22 = arith.constant dense<0.000000e+00> : vector<4x64x64xf32>
    %55 = tpu.matmul %52, %53, %cst_22 {dimension_numbers = #tpu.dot_dimension_numbers<[2], [2], [1], [1], [0, 0, 0, 1, 1, 1], [0], [0]>} : vector<4x64x8xf32>, vector<4x64x8xf32>, vector<4x64x64xf32> -> vector<4x64x64xf32>
    %c2 = arith.constant 2 : index
    %c0_23 = arith.constant 0 : index
    %c0_24 = arith.constant 0 : index
    %56 = vector.load %arg4[%c2, %c0_23, %c0_24] : memref<4x64x64xf32, #tpu.memory_space<vmem>>, vector<1x64x64xf32>
    %57 = vector.shape_cast %56 : vector<1x64x64xf32> to vector<64x64xf32>
    %58 = vector.shape_cast %57 : vector<64x64xf32> to vector<1x64x64xf32>
    %59 = vector.broadcast %58 : vector<1x64x64xf32> to vector<4x64x64xf32>
    %60 = arith.addf %55, %59 : vector<4x64x64xf32>
    %cst_25 = arith.constant dense<0xFF800000> : vector<4x64xf32>
    %61 = vector.multi_reduction <maximumf>, %60, %cst_25 [2] : vector<4x64x64xf32> to vector<4x64xf32>
    %62 = vector.shape_cast %61 : vector<4x64xf32> to vector<4x64x1xf32>
    %63 = vector.broadcast %62 : vector<4x64x1xf32> to vector<4x64x64xf32>
    %64 = arith.subf %60, %63 : vector<4x64x64xf32>
    %65 = math.exp %64 : vector<4x64x64xf32>
    %cst_26 = arith.constant dense<0.000000e+00> : vector<4x64xf32>
    %66 = vector.multi_reduction <add>, %65, %cst_26 [2] : vector<4x64x64xf32> to vector<4x64xf32>
    %67 = vector.shape_cast %66 : vector<4x64xf32> to vector<4x64x1xf32>
    %68 = tpu.reciprocal %67 {approx = true} : vector<4x64x1xf32> -> vector<4x64x1xf32>
    %69 = vector.broadcast %68 : vector<4x64x1xf32> to vector<4x64x64xf32>
    %70 = arith.mulf %65, %69 : vector<4x64x64xf32>
    %cst_27 = arith.constant dense<0.000000e+00> : vector<4x64x8xf32>
    %71 = tpu.matmul %70, %54, %cst_27 {dimension_numbers = #tpu.dot_dimension_numbers<[2], [1], [1], [2], [0, 0, 0, 1, 1, 2], [0], [0]>} : vector<4x64x64xf32>, vector<4x64x8xf32>, vector<4x64x8xf32> -> vector<4x64x8xf32>
    %72 = vector.shape_cast %71 : vector<4x64x8xf32> to vector<256x8xf32>
    %c0_28 = arith.constant 0 : index
    %c16 = arith.constant 16 : index
    %73 = vector.load %arg8[%c0_28, %c16] : memref<256x32xf32, #tpu.memory_space<vmem>>, vector<256x8xf32>
    tpu.vector_store %arg8[%c0_28, %c16], %72 {strides = array<i32>} : memref<256x32xf32, #tpu.memory_space<vmem>>, vector<256x8xf32>,
    %74 = vector.extract_strided_slice %7 {offsets = [0, 0, 24], sizes = [4, 64, 8], strides = [1, 1, 1]} : vector<4x64x96xf32> to vector<4x64x8xf32>
    %75 = vector.extract_strided_slice %7 {offsets = [0, 0, 56], sizes = [4, 64, 8], strides = [1, 1, 1]} : vector<4x64x96xf32> to vector<4x64x8xf32>
    %76 = vector.extract_strided_slice %7 {offsets = [0, 0, 88], sizes = [4, 64, 8], strides = [1, 1, 1]} : vector<4x64x96xf32> to vector<4x64x8xf32>
    %cst_29 = arith.constant dense<0.000000e+00> : vector<4x64x64xf32>
    %77 = tpu.matmul %74, %75, %cst_29 {dimension_numbers = #tpu.dot_dimension_numbers<[2], [2], [1], [1], [0, 0, 0, 1, 1, 1], [0], [0]>} : vector<4x64x8xf32>, vector<4x64x8xf32>, vector<4x64x64xf32> -> vector<4x64x64xf32>
    %c3 = arith.constant 3 : index
    %c0_30 = arith.constant 0 : index
    %c0_31 = arith.constant 0 : index
    %78 = vector.load %arg4[%c3, %c0_30, %c0_31] : memref<4x64x64xf32, #tpu.memory_space<vmem>>, vector<1x64x64xf32>
    %79 = vector.shape_cast %78 : vector<1x64x64xf32> to vector<64x64xf32>
    %80 = vector.shape_cast %79 : vector<64x64xf32> to vector<1x64x64xf32>
    %81 = vector.broadcast %80 : vector<1x64x64xf32> to vector<4x64x64xf32>
    %82 = arith.addf %77, %81 : vector<4x64x64xf32>
    %cst_32 = arith.constant dense<0xFF800000> : vector<4x64xf32>
    %83 = vector.multi_reduction <maximumf>, %82, %cst_32 [2] : vector<4x64x64xf32> to vector<4x64xf32>
    %84 = vector.shape_cast %83 : vector<4x64xf32> to vector<4x64x1xf32>
    %85 = vector.broadcast %84 : vector<4x64x1xf32> to vector<4x64x64xf32>
    %86 = arith.subf %82, %85 : vector<4x64x64xf32>
    %87 = math.exp %86 : vector<4x64x64xf32>
    %cst_33 = arith.constant dense<0.000000e+00> : vector<4x64xf32>
    %88 = vector.multi_reduction <add>, %87, %cst_33 [2] : vector<4x64x64xf32> to vector<4x64xf32>
    %89 = vector.shape_cast %88 : vector<4x64xf32> to vector<4x64x1xf32>
    %90 = tpu.reciprocal %89 {approx = true} : vector<4x64x1xf32> -> vector<4x64x1xf32>
    %91 = vector.broadcast %90 : vector<4x64x1xf32> to vector<4x64x64xf32>
    %92 = arith.mulf %87, %91 : vector<4x64x64xf32>
    %cst_34 = arith.constant dense<0.000000e+00> : vector<4x64x8xf32>
    %93 = tpu.matmul %92, %76, %cst_34 {dimension_numbers = #tpu.dot_dimension_numbers<[2], [1], [1], [2], [0, 0, 0, 1, 1, 2], [0], [0]>} : vector<4x64x64xf32>, vector<4x64x8xf32>, vector<4x64x8xf32> -> vector<4x64x8xf32>
    %94 = vector.shape_cast %93 : vector<4x64x8xf32> to vector<256x8xf32>
    %c0_35 = arith.constant 0 : index
    %c24 = arith.constant 24 : index
    %95 = vector.load %arg8[%c0_35, %c24] : memref<256x32xf32, #tpu.memory_space<vmem>>, vector<256x8xf32>
    tpu.vector_store %arg8[%c0_35, %c24], %94 {strides = array<i32>} : memref<256x32xf32, #tpu.memory_space<vmem>>, vector<256x8xf32>,
    %c0_36 = arith.constant 0 : index
    %c0_37 = arith.constant 0 : index
    %96 = vector.load %arg8[%c0_36, %c0_37] : memref<256x32xf32, #tpu.memory_space<vmem>>, vector<256x32xf32>
    %c0_38 = arith.constant 0 : index
    %c0_39 = arith.constant 0 : index
    %97 = vector.load %arg5[%c0_38, %c0_39] : memref<32x32xf32, #tpu.memory_space<vmem>>, vector<32x32xf32>
    %cst_40 = arith.constant dense<0.000000e+00> : vector<256x32xf32>
    %98 = tpu.matmul %96, %97, %cst_40 {dimension_numbers = #tpu.dot_dimension_numbers<[1], [0], [0], [1], [0, 0, 1, 1], [], []>} : vector<256x32xf32>, vector<32x32xf32>, vector<256x32xf32> -> vector<256x32xf32>
    %c0_41 = arith.constant 0 : index
    %c0_42 = arith.constant 0 : index
    %99 = vector.load %arg6[%c0_41, %c0_42] : memref<1x32xf32, #tpu.memory_space<vmem>>, vector<1x32xf32>
    %100 = vector.broadcast %99 : vector<1x32xf32> to vector<256x32xf32>
    %101 = arith.addf %98, %100 : vector<256x32xf32>
    %102 = vector.shape_cast %101 : vector<256x32xf32> to vector<4x64x32xf32>
    %c0_43 = arith.constant 0 : index
    %c0_44 = arith.constant 0 : index
    %c0_45 = arith.constant 0 : index
    %103 = vector.load %arg7[%c0_43, %c0_44, %c0_45] : memref<4x64x32xf32, #tpu.memory_space<vmem>>, vector<4x64x32xf32>
    tpu.vector_store %arg7[%c0_43, %c0_44, %c0_45], %102 {strides = array<i32>} : memref<4x64x32xf32, #tpu.memory_space<vmem>>, vector<4x64x32xf32>,
    return
  }
  func.func @transform_0(%arg0: i32) -> (i32, i32, i32) {
    %c0_i32 = arith.constant 0 : i32
    %c0_i32_0 = arith.constant 0 : i32
    %c0_i32_1 = arith.constant 0 : i32
    return %arg0, %c0_i32, %c0_i32_0 : i32, i32, i32
  }
  func.func @transform_1(%arg0: i32) -> (i32, i32) {
    %c0_i32 = arith.constant 0 : i32
    %c0_i32_0 = arith.constant 0 : i32
    %c0_i32_1 = arith.constant 0 : i32
    return %c0_i32, %c0_i32_0 : i32, i32
  }
  func.func @transform_2(%arg0: i32) -> (i32, i32) {
    %c0_i32 = arith.constant 0 : i32
    %c0_i32_0 = arith.constant 0 : i32
    %c0_i32_1 = arith.constant 0 : i32
    return %c0_i32, %c0_i32_0 : i32, i32
  }
  func.func @transform_3(%arg0: i32) -> (i32, i32, i32) {
    %c0_i32 = arith.constant 0 : i32
    %c0_i32_0 = arith.constant 0 : i32
    %c0_i32_1 = arith.constant 0 : i32
    %c0_i32_2 = arith.constant 0 : i32
    return %c0_i32, %c0_i32_0, %c0_i32_1 : i32, i32, i32
  }
  func.func @transform_4(%arg0: i32) -> (i32, i32) {
    %c0_i32 = arith.constant 0 : i32
    %c0_i32_0 = arith.constant 0 : i32
    %c0_i32_1 = arith.constant 0 : i32
    return %c0_i32, %c0_i32_0 : i32, i32
  }
  func.func @transform_5(%arg0: i32) -> (i32, i32) {
    %c0_i32 = arith.constant 0 : i32
    %c0_i32_0 = arith.constant 0 : i32
    %c0_i32_1 = arith.constant 0 : i32
    return %c0_i32, %c0_i32_0 : i32, i32
  }
  func.func @transform_6(%arg0: i32) -> (i32, i32, i32) {
    %c0_i32 = arith.constant 0 : i32
    %c0_i32_0 = arith.constant 0 : i32
    %c0_i32_1 = arith.constant 0 : i32
    return %arg0, %c0_i32, %c0_i32_0 : i32, i32, i32
  }
}

</mosaic_0001>

<llo_original>
// kernel: window_attention.1
$region0: #{window_attention.1}
  #allocation0 [shape = 'u32[]', space=smem, size = 0x4, offset = 0x4, fixed_abs, tag = 'smem constant byte address 0x4 - core index']
  #allocation1 [shape = 'u32[72,128]{1,0:T(1,128)}', space=vmem, size = 0x9000, scoped, tag = 'internal scratch']
  #allocation2 [shape = 'f32[256,32]{1,0:T(8,128)}', space=vmem, size = 0x20000, scoped, tag = 'scratch operand']
  %s0 = inlined_call_operand.vmem [shape: f32[8,64,32], index: 0, kind: input, shape index: {}]
  %s1 = inlined_call_operand.vmem [shape: f32[32,96], index: 1, kind: input, shape index: {}]
  %s2 = inlined_call_operand.vmem [shape: f32[1,96], index: 2, kind: input, shape index: {}]
  %s3 = inlined_call_operand.vmem [shape: f32[4,64,64], index: 3, kind: input, shape index: {}]
  %s4 = inlined_call_operand.vmem [shape: f32[32,32], index: 4, kind: input, shape index: {}]
  %s5 = inlined_call_operand.vmem [shape: f32[1,32], index: 5, kind: input, shape index: {}]
  %s6 = inlined_call_operand.vmem [shape: f32[8,64,32], index: 6, kind: output, shape index: {}]
  %s7 = sld [smem:[#allocation0]]
  $region57: #{window_attention.1} parent=0
    _
  %s9 = ssub.s32 1, %s7
  %s10 = scalar_select 0, %s9, %s7
  loop: start=0, step=1, limit=4
  $region2: #{window_attention.1} parent=0 // loop_pre_header
    _
  $region3: #{window_attention.1} parent=0 // loop_header
    %s12 = sphi 0, %s16
    %p13 = scmp.ge.s32.totalorder %s12, 4
    %s22 = sphi 0, %s24
    %s25 = sphi 0, %s22
    %s26 = sphi 0, %s25
    %s42 = sphi 0, %s26
    %s46 = sphi 0, %s46
    %s48 = sphi 0, %s46
    %s49 = sphi 0, %s48
    %s63 = sphi 0, %s49
    %s67 = sphi 0, %s67
    %s69 = sphi 0, %s67
    %s70 = sphi 0, %s69
    %s84 = sphi 0, %s70
    %s88 = sphi 0, %s88
    %s90 = sphi 0, %s88
    %s91 = sphi 0, %s90
    %s105 = sphi 0, %s91
    %s109 = sphi 0, %s109
    %s111 = sphi 0, %s109
    %s112 = sphi 0, %s111
    %s126 = sphi 0, %s112
    %s130 = sphi 0, %s130
    %s132 = sphi 0, %s130
    %s133 = sphi 0, %s132
    %s147 = sphi 0, %s133
    %s153 = sphi 0, %s155
    %s156 = sphi 0, %s153
    %s157 = sphi 0, %s156
    %s173 = sphi 0, %s157
  $region4: #{window_attention.1} parent=0 // loop_header_branch
    %15 = sbr.rel (%p13) target = $region8
  $region5: #{window_attention.1} parent=0 // loop_body
    %s17 = ssub.s32 %s12, 1
    %s18 = ssub.s32 %s12, 2
    %s19 = sadd.s32 %s12, 1
    %s20 = ssub.s32 %s12, %s19
    %p21 = scmp.eq.s32.totalorder %s20, 0
    %s23 = sadd.s32 %s22, 1
    %s24 = scalar_select %p21, %s22, %s23
    %p27 = pneg %p21
    %p28 = scmp.eq.s32.totalorder %s12, 1
    %p29 = por %p27, %p28
    %p30 = scmp.ne.s32.totalorder %s22, %s25
    %p31 = scmp.eq.s32.totalorder %s12, 0
    %p32 = por %p30, %p31
    %p33 = scmp.ne.s32.totalorder %s22, %s25
    %p34 = scmp.eq.s32.totalorder %s17, 1
    %p35 = por %p33, %p34
    %p36 = scmp.ne.s32.totalorder %s25, %s26
    %p37 = scmp.eq.s32.totalorder %s17, 0
    %p38 = por %p36, %p37
    %p39 = scmp.ne.s32.totalorder %s25, %s26
    %p40 = scmp.eq.s32.totalorder %s18, 1
    %p41 = por %p39, %p40
    %p43 = scmp.ne.s32.totalorder %s26, %s42
    %p44 = scmp.eq.s32.totalorder %s18, 0
    %p45 = por %p43, %p44
    %s47 = sadd.s32 %s46, 1
    %p50 = scmp.eq.s32.totalorder %s12, 1
    %p51 = scmp.ne.s32.totalorder %s46, %s48
    %p52 = scmp.eq.s32.totalorder %s12, 0
    %p53 = por %p51, %p52
    %p54 = scmp.ne.s32.totalorder %s46, %s48
    %p55 = scmp.eq.s32.totalorder %s17, 1
    %p56 = por %p54, %p55
    %p57 = scmp.ne.s32.totalorder %s48, %s49
    %p58 = scmp.eq.s32.totalorder %s17, 0
    %p59 = por %p57, %p58
    %p60 = scmp.ne.s32.totalorder %s48, %s49
    %p61 = scmp.eq.s32.totalorder %s18, 1
    %p62 = por %p60, %p61
    %p64 = scmp.ne.s32.totalorder %s49, %s63
    %p65 = scmp.eq.s32.totalorder %s18, 0
    %p66 = por %p64, %p65
    %s68 = sadd.s32 %s67, 1
    %p71 = scmp.eq.s32.totalorder %s12, 1
    %p72 = scmp.ne.s32.totalorder %s67, %s69
    %p73 = scmp.eq.s32.totalorder %s12, 0
    %p74 = por %p72, %p73
    %p75 = scmp.ne.s32.totalorder %s67, %s69
    %p76 = scmp.eq.s32.totalorder %s17, 1
    %p77 = por %p75, %p76
    %p78 = scmp.ne.s32.totalorder %s69, %s70
    %p79 = scmp.eq.s32.totalorder %s17, 0
    %p80 = por %p78, %p79
    %p81 = scmp.ne.s32.totalorder %s69, %s70
    %p82 = scmp.eq.s32.totalorder %s18, 1
    %p83 = por %p81, %p82
    %p85 = scmp.ne.s32.totalorder %s70, %s84
    %p86 = scmp.eq.s32.totalorder %s18, 0
    %p87 = por %p85, %p86
    %s89 = sadd.s32 %s88, 1
    %p92 = scmp.eq.s32.totalorder %s12, 1
    %p93 = scmp.ne.s32.totalorder %s88, %s90
    %p94 = scmp.eq.s32.totalorder %s12, 0
    %p95 = por %p93, %p94
    %p96 = scmp.ne.s32.totalorder %s88, %s90
    %p97 = scmp.eq.s32.totalorder %s17, 1
    %p98 = por %p96, %p97
    %p99 = scmp.ne.s32.totalorder %s90, %s91
    %p100 = scmp.eq.s32.totalorder %s17, 0
    %p101 = por %p99, %p100
    %p102 = scmp.ne.s32.totalorder %s90, %s91
    %p103 = scmp.eq.s32.totalorder %s18, 1
    %p104 = por %p102, %p103
    %p106 = scmp.ne.s32.totalorder %s91, %s105
    %p107 = scmp.eq.s32.totalorder %s18, 0
    %p108 = por %p106, %p107
    %s110 = sadd.s32 %s109, 1
    %p113 = scmp.eq.s32.totalorder %s12, 1
    %p114 = scmp.ne.s32.totalorder %s109, %s111
    %p115 = scmp.eq.s32.totalorder %s12, 0
    %p116 = por %p114, %p115
    %p117 = scmp.ne.s32.totalorder %s109, %s111
    %p118 = scmp.eq.s32.totalorder %s17, 1
    %p119 = por %p117, %p118
    %p120 = scmp.ne.s32.totalorder %s111, %s112
    %p121 = scmp.eq.s32.totalorder %s17, 0
    %p122 = por %p120, %p121
    %p123 = scmp.ne.s32.totalorder %s111, %s112
    %p124 = scmp.eq.s32.totalorder %s18, 1
    %p125 = por %p123, %p124
    %p127 = scmp.ne.s32.totalorder %s112, %s126
    %p128 = scmp.eq.s32.totalorder %s18, 0
    %p129 = por %p127, %p128
    %s131 = sadd.s32 %s130, 1
    %p134 = scmp.eq.s32.totalorder %s12, 1
    %p135 = scmp.ne.s32.totalorder %s130, %s132
    %p136 = scmp.eq.s32.totalorder %s12, 0
    %p137 = por %p135, %p136
    %p138 = scmp.ne.s32.totalorder %s130, %s132
    %p139 = scmp.eq.s32.totalorder %s17, 1
    %p140 = por %p138, %p139
    %p141 = scmp.ne.s32.totalorder %s132, %s133
    %p142 = scmp.eq.s32.totalorder %s17, 0
    %p143 = por %p141, %p142
    %p144 = scmp.ne.s32.totalorder %s132, %s133
    %p145 = scmp.eq.s32.totalorder %s18, 1
    %p146 = por %p144, %p145
    %p148 = scmp.ne.s32.totalorder %s133, %s147
    %p149 = scmp.eq.s32.totalorder %s18, 0
    %p150 = por %p148, %p149
    %s151 = ssub.s32 %s12, %s19
    %p152 = scmp.eq.s32.totalorder %s151, 0
    %s154 = sadd.s32 %s153, 1
    %s155 = scalar_select %p152, %s153, %s154
    %p158 = pneg %p152
    %p159 = scmp.eq.s32.totalorder %s12, 1
    %p160 = por %p158, %p159
    %p161 = scmp.ne.s32.totalorder %s153, %s156
    %p162 = scmp.eq.s32.totalorder %s12, 0
    %p163 = por %p161, %p162
    %p164 = scmp.ne.s32.totalorder %s153, %s156
    %p165 = scmp.eq.s32.totalorder %s17, 1
    %p166 = por %p164, %p165
    %p167 = scmp.ne.s32.totalorder %s156, %s157
    %p168 = scmp.eq.s32.totalorder %s17, 0
    %p169 = por %p167, %p168
    %p170 = scmp.ne.s32.totalorder %s156, %s157
    %p171 = scmp.eq.s32.totalorder %s18, 1
    %p172 = por %p170, %p171
    %p174 = scmp.ne.s32.totalorder %s157, %s173
    %p175 = scmp.eq.s32.totalorder %s18, 0
    %p176 = por %p174, %p175
    %p177 = scmp.le.s32.totalorder 1, %s12
    %p178 = scmp.lt.s32.totalorder %s12, 3
    %p179 = pnand %p177, %p178
    %p180 = pneg %p179
    // Predicated region
    $region9: #{window_attention.1} parent=5 // pred_check
      _
    $region10: #{window_attention.1} parent=5 // pred_check_branch
      %182 = sbr.rel (%p179) target = $region12
    $region11: #{window_attention.1} parent=5 // pred_region
      %s183 = ssub.s32 %s12, 1
      // Predicated region
      $region13: #{window_attention.1} parent=11 // pred_check
        %p184 = pneg %p59
      $region14: #{window_attention.1} parent=11 // pred_check_branch
        %186 = sbr.rel (%p184) target = $region16
      $region15: #{window_attention.1} parent=11 // pred_region
        _
      $region16: #{window_attention.1} parent=11 // pred_fallthru
        _
      // Predicated region
      $region17: #{window_attention.1} parent=11 // pred_check
        %p187 = pneg %p80
      $region18: #{window_attention.1} parent=11 // pred_check_branch
        %189 = sbr.rel (%p187) target = $region20
      $region19: #{window_attention.1} parent=11 // pred_region
        _
      $region20: #{window_attention.1} parent=11 // pred_fallthru
        _
      // Predicated region
      $region21: #{window_attention.1} parent=11 // pred_check
        %p190 = pneg %p101
      $region22: #{window_attention.1} parent=11 // pred_check_branch
        %192 = sbr.rel (%p190) target = $region24
      $region23: #{window_attention.1} parent=11 // pred_region
        _
      $region24: #{window_attention.1} parent=11 // pred_fallthru
        _
      // Predicated region
      $region25: #{window_attention.1} parent=11 // pred_check
        %p193 = pneg %p122
      $region26: #{window_attention.1} parent=11 // pred_check_branch
        %195 = sbr.rel (%p193) target = $region28
      $region27: #{window_attention.1} parent=11 // pred_region
        _
      $region28: #{window_attention.1} parent=11 // pred_fallthru
        _
      // Predicated region
      $region29: #{window_attention.1} parent=11 // pred_check
        %p196 = pneg %p143
      $region30: #{window_attention.1} parent=11 // pred_check_branch
        %198 = sbr.rel (%p196) target = $region32
      $region31: #{window_attention.1} parent=11 // pred_region
        _
      $region32: #{window_attention.1} parent=11 // pred_fallthru
        _
    $region12: #{window_attention.1} parent=5 // pred_fallthru
      _
    %p199 = scmp.lt.s32.totalorder %s12, 2
    // Predicated region
    $region33: #{window_attention.1} parent=5 // pred_check
      %p200 = pneg %p199
    $region34: #{window_attention.1} parent=5 // pred_check_branch
      %202 = sbr.rel (%p200) target = $region36
    $region35: #{window_attention.1} parent=5 // pred_region
      // Predicated region
      $region37: #{window_attention.1} parent=35 // pred_check
        %p203 = pneg %p32
      $region38: #{window_attention.1} parent=35 // pred_check_branch
        %205 = sbr.rel (%p203) target = $region40
      $region39: #{window_attention.1} parent=35 // pred_region
        %s206 = smul.u32 4, %s12
        %p207 = scmp.lt.s32.totalorder %s206, 7
        %s208 = scalar_select %p207, %s206, 7
        %s209 = smul.addr %s208, 8
        %s210 = smul.addr %s209, 8
        %s211 = scalar_lea.vmem %s0, %s210
        %s212 = smul.u32 4, %s12
      $region40: #{window_attention.1} parent=35 // pred_fallthru
        _
    $region36: #{window_attention.1} parent=5 // pred_fallthru
      _
    %p213 = scmp.le.s32.totalorder 1, %s12
    %p214 = scmp.lt.s32.totalorder %s12, 3
    %p215 = pnand %p213, %p214
    %p216 = pneg %p215
    // Predicated region
    $region41: #{window_attention.1} parent=5 // pred_check
      _
    $region42: #{window_attention.1} parent=5 // pred_check_branch
      %218 = sbr.rel (%p215) target = $region44
    $region43: #{window_attention.1} parent=5 // pred_region
      %s219 = ssub.s32 %s12, 1
      %s220 = smul.u32 4, %s17
      %p221 = scmp.lt.s32.totalorder %s220, 7
      %s222 = scalar_select %p221, %s220, 7
      %s223 = smul.addr %s222, 8
      %s224 = smul.addr %s223, 8
      %s225 = scalar_lea.vmem %s0, %s224
      %p226 = pneg %p38
      %p227 = pneg %p35
      %p228 = pneg %p59
      %p229 = pneg %p56
      %p230 = pneg %p80
      %p231 = pneg %p77
      %p232 = pneg %p101
      %p233 = pneg %p98
      %p234 = pneg %p122
      %p235 = pneg %p119
      %p236 = pneg %p143
      %p237 = pneg %p140
      %p238 = pneg %p169
      %p239 = pneg %p166
      %s240 = smul.u32 4, %s17
      %p241 = scmp.lt.s32.totalorder %s240, 7
      %s242 = scalar_select %p241, %s240, 7
      %s243 = smul.addr %s242, 8
      %s244 = smul.addr %s243, 8
      %s245 = scalar_lea.vmem %s6, %s244
      %s246 = smul.u32 4, %s17
      %p247 = scmp.lt.s32.totalorder %s246, 7
      %s248 = scalar_select %p247, %s246, 7
      %s249 = smul.addr %s248, 8
      %s250 = smul.addr %s249, 8
      %s251 = scalar_lea.vmem %s0, %s250
      %s252 = smul.u32 4, %s17
      %s253 = smul.u32 4, %s17
      %p254 = scmp.lt.s32.totalorder %s253, 7
      %s255 = scalar_select %p254, %s253, 7
      %s256 = smul.addr %s255, 8
      %s257 = smul.addr %s256, 8
      %s258 = scalar_lea.vmem %s6, %s257
      %s259 = smul.u32 4, %s17
      %v260 = vld [vmem:[%s251] sm:$0xff]
      %v261 = vld [vmem:[%s251 + $0x8] sm:$0xff]
      %v262 = vld [vmem:[%s251 + $0x10] sm:$0xff]
      %v263 = vld [vmem:[%s251 + $0x18] sm:$0xff]
      %v264 = vld [vmem:[%s251 + $0x20] sm:$0xff]
      %v265 = vld [vmem:[%s251 + $0x28] sm:$0xff]
      %v266 = vld [vmem:[%s251 + $0x30] sm:$0xff]
      %v267 = vld [vmem:[%s251 + $0x38] sm:$0xff]
      %v268 = vld [vmem:[%s251 + $0x40] sm:$0xff]
      %v269 = vld [vmem:[%s251 + $0x48] sm:$0xff]
      %v270 = vld [vmem:[%s251 + $0x50] sm:$0xff]
      %v271 = vld [vmem:[%s251 + $0x58] sm:$0xff]
      %v272 = vld [vmem:[%s251 + $0x60] sm:$0xff]
      %v273 = vld [vmem:[%s251 + $0x68] sm:$0xff]
      %v274 = vld [vmem:[%s251 + $0x70] sm:$0xff]
      %v275 = vld [vmem:[%s251 + $0x78] sm:$0xff]
      %v276 = vld [vmem:[%s251 + $0x80] sm:$0xff]
      %v277 = vld [vmem:[%s251 + $0x88] sm:$0xff]
      %v278 = vld [vmem:[%s251 + $0x90] sm:$0xff]
      %v279 = vld [vmem:[%s251 + $0x98] sm:$0xff]
      %v280 = vld [vmem:[%s251 + $0xa0] sm:$0xff]
      %v281 = vld [vmem:[%s251 + $0xa8] sm:$0xff]
      %v282 = vld [vmem:[%s251 + $0xb0] sm:$0xff]
      %v283 = vld [vmem:[%s251 + $0xb8] sm:$0xff]
      %v284 = vld [vmem:[%s251 + $0xc0] sm:$0xff]
      %v285 = vld [vmem:[%s251 + $0xc8] sm:$0xff]
      %v286 = vld [vmem:[%s251 + $0xd0] sm:$0xff]
      %v287 = vld [vmem:[%s251 + $0xd8] sm:$0xff]
      %v288 = vld [vmem:[%s251 + $0xe0] sm:$0xff]
      %v289 = vld [vmem:[%s251 + $0xe8] sm:$0xff]
      %v290 = vld [vmem:[%s251 + $0xf0] sm:$0xff]
      %v291 = vld [vmem:[%s251 + $0xf8] sm:$0xff]
      %v292 = vld [vmem:[%s1] sm:$0xff]
      %v293 = vld [vmem:[%s1 + $0x8] sm:$0xff]
      %v294 = vld [vmem:[%s1 + $0x10] sm:$0xff]
      %v295 = vld [vmem:[%s1 + $0x18] sm:$0xff]
      %v296 = vld [vmem:[%s2] sm:$0x1]
      %v298 = vperm.slane %v296, 0
      %vm300 = vcmask 261120
      %v302 = vsel %vm300, %v260, 0
      %v305 = vsel %vm300, %v261, 0
      %v308 = vsel %vm300, %v262, 0
      %v311 = vsel %vm300, %v263, 0
      %v314 = vsel %vm300, %v264, 0
      %v317 = vsel %vm300, %v265, 0
      %v320 = vsel %vm300, %v266, 0
      %v323 = vsel %vm300, %v267, 0
      %v326 = vsel %vm300, %v268, 0
      %v329 = vsel %vm300, %v269, 0
      %v332 = vsel %vm300, %v270, 0
      %v335 = vsel %vm300, %v271, 0
      %v338 = vsel %vm300, %v272, 0
      %v341 = vsel %vm300, %v273, 0
      %v344 = vsel %vm300, %v274, 0
      %v347 = vsel %vm300, %v275, 0
      %v350 = vsel %vm300, %v276, 0
      %v353 = vsel %vm300, %v277, 0
      %v356 = vsel %vm300, %v278, 0
      %v359 = vsel %vm300, %v279, 0
      %v362 = vsel %vm300, %v280, 0
      %v365 = vsel %vm300, %v281, 0
      %v368 = vsel %vm300, %v282, 0
      %v371 = vsel %vm300, %v283, 0
      %v374 = vsel %vm300, %v284, 0
      %v377 = vsel %vm300, %v285, 0
      %v380 = vsel %vm300, %v286, 0
      %v383 = vsel %vm300, %v287, 0
      %v386 = vsel %vm300, %v288, 0
      %v389 = vsel %vm300, %v289, 0
      %v392 = vsel %vm300, %v290, 0
      %v395 = vsel %vm300, %v291, 0
      %397 = vmatpush.msra.mxu0 0.0
      %398 = vmatpush.msra.mxu0 0.0
      %399 = vmatpush.msra.mxu0 0.0
      %400 = vmatpush.msra.mxu0 0.0
      %401 = vmatpush.msra.mxu0 0.0
      %402 = vmatpush.msra.mxu0 0.0
      %403 = vmatpush.msra.mxu0 0.0
      %404 = vmatpush.msra.mxu0 0.0
      %405 = vmatpush.msra.mxu0 0.0
      %406 = vmatpush.msra.mxu0 0.0
      %407 = vmatpush.msra.mxu0 0.0
      %408 = vmatpush.msra.mxu0 0.0
      %409 = vmatpush.msra.mxu0 %v295
      %410 = vmatpush.msra.mxu0 %v294
      %411 = vmatpush.msra.mxu0 %v293
      %412 = vmatpush.msra.mxu0 %v292
      %413 = vmatmul.f32.gmra.mxu0 %v302
      %v414 = vpop.f32.mrf.mxu0
      %v415 = vadd.f32 %v298, %v414
      %416 = vmatmul.f32.gmra.mxu0 %v305
      %v417 = vpop.f32.mrf.mxu0
      %v418 = vadd.f32 %v298, %v417
      %419 = vmatmul.f32.gmra.mxu0 %v308
      %v420 = vpop.f32.mrf.mxu0
      %v421 = vadd.f32 %v298, %v420
      %422 = vmatmul.f32.gmra.mxu0 %v311
      %v423 = vpop.f32.mrf.mxu0
      %v424 = vadd.f32 %v298, %v423
      %425 = vmatmul.f32.gmra.mxu0 %v314
      %v426 = vpop.f32.mrf.mxu0
      %v427 = vadd.f32 %v298, %v426
      %428 = vmatmul.f32.gmra.mxu0 %v317
      %v429 = vpop.f32.mrf.mxu0
      %v430 = vadd.f32 %v298, %v429
      %431 = vmatmul.f32.gmra.mxu0 %v320
      %v432 = vpop.f32.mrf.mxu0
      %v433 = vadd.f32 %v298, %v432
      %434 = vmatmul.f32.gmra.mxu0 %v323
      %v435 = vpop.f32.mrf.mxu0
      %v436 = vadd.f32 %v298, %v435
      %437 = vmatmul.f32.gmra.mxu0 %v326
      %v438 = vpop.f32.mrf.mxu0
      %v439 = vadd.f32 %v298, %v438
      %440 = vmatmul.f32.gmra.mxu0 %v329
      %v441 = vpop.f32.mrf.mxu0
      %v442 = vadd.f32 %v298, %v441
      %443 = vmatmul.f32.gmra.mxu0 %v332
      %v444 = vpop.f32.mrf.mxu0
      %v445 = vadd.f32 %v298, %v444
      %446 = vmatmul.f32.gmra.mxu0 %v335
      %v447 = vpop.f32.mrf.mxu0
      %v448 = vadd.f32 %v298, %v447
      %449 = vmatmul.f32.gmra.mxu0 %v338
      %v450 = vpop.f32.mrf.mxu0
      %v451 = vadd.f32 %v298, %v450
      %452 = vmatmul.f32.gmra.mxu0 %v341
      %v453 = vpop.f32.mrf.mxu0
      %v454 = vadd.f32 %v298, %v453
      %455 = vmatmul.f32.gmra.mxu0 %v344
      %v456 = vpop.f32.mrf.mxu0
      %v457 = vadd.f32 %v298, %v456
      %458 = vmatmul.f32.gmra.mxu0 %v347
      %v459 = vpop.f32.mrf.mxu0
      %v460 = vadd.f32 %v298, %v459
      %461 = vmatmul.f32.gmra.mxu0 %v350
      %v462 = vpop.f32.mrf.mxu0
      %v463 = vadd.f32 %v298, %v462
      %464 = vmatmul.f32.gmra.mxu0 %v353
      %v465 = vpop.f32.mrf.mxu0
      %v466 = vadd.f32 %v298, %v465
      %467 = vmatmul.f32.gmra.mxu0 %v356
      %v468 = vpop.f32.mrf.mxu0
      %v469 = vadd.f32 %v298, %v468
      %470 = vmatmul.f32.gmra.mxu0 %v359
      %v471 = vpop.f32.mrf.mxu0
      %v472 = vadd.f32 %v298, %v471
      %473 = vmatmul.f32.gmra.mxu0 %v362
      %v474 = vpop.f32.mrf.mxu0
      %v475 = vadd.f32 %v298, %v474
      %476 = vmatmul.f32.gmra.mxu0 %v365
      %v477 = vpop.f32.mrf.mxu0
      %v478 = vadd.f32 %v298, %v477
      %479 = vmatmul.f32.gmra.mxu0 %v368
      %v480 = vpop.f32.mrf.mxu0
      %v481 = vadd.f32 %v298, %v480
      %482 = vmatmul.f32.gmra.mxu0 %v371
      %v483 = vpop.f32.mrf.mxu0
      %v484 = vadd.f32 %v298, %v483
      %485 = vmatmul.f32.gmra.mxu0 %v374
      %v486 = vpop.f32.mrf.mxu0
      %v487 = vadd.f32 %v298, %v486
      %488 = vmatmul.f32.gmra.mxu0 %v377
      %v489 = vpop.f32.mrf.mxu0
      %v490 = vadd.f32 %v298, %v489
      %491 = vmatmul.f32.gmra.mxu0 %v380
      %v492 = vpop.f32.mrf.mxu0
      %v493 = vadd.f32 %v298, %v492
      %494 = vmatmul.f32.gmra.mxu0 %v383
      %v495 = vpop.f32.mrf.mxu0
      %v496 = vadd.f32 %v298, %v495
      %497 = vmatmul.f32.gmra.mxu0 %v386
      %v498 = vpop.f32.mrf.mxu0
      %v499 = vadd.f32 %v298, %v498
      %500 = vmatmul.f32.gmra.mxu0 %v389
      %v501 = vpop.f32.mrf.mxu0
      %v502 = vadd.f32 %v298, %v501
      %503 = vmatmul.f32.gmra.mxu0 %v392
      %v504 = vpop.f32.mrf.mxu0
      %v505 = vadd.f32 %v298, %v504
      %506 = vmatmul.f32.gmra.mxu0 %v395
      %v507 = vpop.f32.mrf.mxu0
      %v508 = vadd.f32 %v298, %v507
      %509 = vdwg.mxu0
      %v510 = vld [vmem:[%s3] sm:$0xff]
      %v511 = vld [vmem:[%s3 + $0x8] sm:$0xff]
      %v512 = vld [vmem:[%s3 + $0x10] sm:$0xff]
      %v513 = vld [vmem:[%s3 + $0x18] sm:$0xff]
      %v514 = vld [vmem:[%s3 + $0x20] sm:$0xff]
      %v515 = vld [vmem:[%s3 + $0x28] sm:$0xff]
      %v516 = vld [vmem:[%s3 + $0x30] sm:$0xff]
      %v517 = vld [vmem:[%s3 + $0x38] sm:$0xff]
      %526 = vrot.lane.b32.xlu0 %v415, 96
      %v527 = vpop.permute.xlu0 %526
      %528 = vrot.lane.b32.xlu0 %v418, 96
      %v529 = vpop.permute.xlu0 %528
      %530 = vrot.lane.b32.xlu0 %v421, 96
      %v531 = vpop.permute.xlu0 %530
      %532 = vrot.lane.b32.xlu0 %v424, 96
      %v533 = vpop.permute.xlu0 %532
      %534 = vrot.lane.b32.xlu0 %v427, 96
      %v535 = vpop.permute.xlu0 %534
      %536 = vrot.lane.b32.xlu0 %v430, 96
      %v537 = vpop.permute.xlu0 %536
      %538 = vrot.lane.b32.xlu0 %v433, 96
      %v539 = vpop.permute.xlu0 %538
      %540 = vrot.lane.b32.xlu0 %v436, 96
      %v541 = vpop.permute.xlu0 %540
      %vm542 = vcmask 64512
      %v543 = vsel %vm542, %v415, 0
      %v545 = vsel %vm542, %v418, 0
      %v547 = vsel %vm542, %v421, 0
      %v549 = vsel %vm542, %v424, 0
      %v551 = vsel %vm542, %v427, 0
      %v553 = vsel %vm542, %v430, 0
      %v555 = vsel %vm542, %v433, 0
      %v557 = vsel %vm542, %v436, 0
      %v559 = vsel %vm542, %v527, 0
      %v561 = vsel %vm542, %v529, 0
      %v563 = vsel %vm542, %v531, 0
      %v565 = vsel %vm542, %v533, 0
      %v567 = vsel %vm542, %v535, 0
      %v569 = vsel %vm542, %v537, 0
      %v571 = vsel %vm542, %v539, 0
      %v573 = vsel %vm542, %v541, 0
      %575 = vmatpush.xpose.msra.mxu0 0.0
      %576 = vmatpush.xpose.msra.mxu0 0.0
      %577 = vmatpush.xpose.msra.mxu0 0.0
      %578 = vmatpush.xpose.msra.mxu0 0.0
      %579 = vmatpush.xpose.msra.mxu0 0.0
      %580 = vmatpush.xpose.msra.mxu0 0.0
      %581 = vmatpush.xpose.msra.mxu0 0.0
      %582 = vmatpush.xpose.msra.mxu0 0.0
      %583 = vmatpush.xpose.msra.mxu0 %v573
      %584 = vmatpush.xpose.msra.mxu0 %v571
      %585 = vmatpush.xpose.msra.mxu0 %v569
      %586 = vmatpush.xpose.msra.mxu0 %v567
      %587 = vmatpush.xpose.msra.mxu0 %v565
      %588 = vmatpush.xpose.msra.mxu0 %v563
      %589 = vmatpush.xpose.msra.mxu0 %v561
      %590 = vmatpush.xpose.msra.mxu0 %v559
      %591 = vmatmul.f32.gmra.mxu0 %v543
      %v592 = vpop.f32.mrf.mxu0
      %v593 = vadd.f32 %v510, %v592
      %594 = vmatmul.f32.gmra.mxu0 %v545
      %v595 = vpop.f32.mrf.mxu0
      %v596 = vadd.f32 %v511, %v595
      %597 = vmatmul.f32.gmra.mxu0 %v547
      %v598 = vpop.f32.mrf.mxu0
      %v599 = vadd.f32 %v512, %v598
      %600 = vmatmul.f32.gmra.mxu0 %v549
      %v601 = vpop.f32.mrf.mxu0
      %v602 = vadd.f32 %v513, %v601
      %603 = vmatmul.f32.gmra.mxu0 %v551
      %v604 = vpop.f32.mrf.mxu0
      %v605 = vadd.f32 %v514, %v604
      %606 = vmatmul.f32.gmra.mxu0 %v553
      %v607 = vpop.f32.mrf.mxu0
      %v608 = vadd.f32 %v515, %v607
      %609 = vmatmul.f32.gmra.mxu0 %v555
      %v610 = vpop.f32.mrf.mxu0
      %v611 = vadd.f32 %v516, %v610
      %612 = vmatmul.f32.gmra.mxu0 %v557
      %v613 = vpop.f32.mrf.mxu0
      %v614 = vadd.f32 %v517, %v613
      %615 = vdwg.mxu0
      %624 = vrot.lane.b32.xlu0 %v439, 96
      %v625 = vpop.permute.xlu0 %624
      %626 = vrot.lane.b32.xlu0 %v442, 96
      %v627 = vpop.permute.xlu0 %626
      %628 = vrot.lane.b32.xlu0 %v445, 96
      %v629 = vpop.permute.xlu0 %628
      %630 = vrot.lane.b32.xlu0 %v448, 96
      %v631 = vpop.permute.xlu0 %630
      %632 = vrot.lane.b32.xlu0 %v451, 96
      %v633 = vpop.permute.xlu0 %632
      %634 = vrot.lane.b32.xlu0 %v454, 96
      %v635 = vpop.permute.xlu0 %634
      %636 = vrot.lane.b32.xlu0 %v457, 96
      %v637 = vpop.permute.xlu0 %636
      %638 = vrot.lane.b32.xlu0 %v460, 96
      %v639 = vpop.permute.xlu0 %638
      %v640 = vsel %vm542, %v439, 0
      %v642 = vsel %vm542, %v442, 0
      %v644 = vsel %vm542, %v445, 0
      %v646 = vsel %vm542, %v448, 0
      %v648 = vsel %vm542, %v451, 0
      %v650 = vsel %vm542, %v454, 0
      %v652 = vsel %vm542, %v457, 0
      %v654 = vsel %vm542, %v460, 0
      %v656 = vsel %vm542, %v625, 0
      %v658 = vsel %vm542, %v627, 0
      %v660 = vsel %vm542, %v629, 0
      %v662 = vsel %vm542, %v631, 0
      %v664 = vsel %vm542, %v633, 0
      %v666 = vsel %vm542, %v635, 0
      %v668 = vsel %vm542, %v637, 0
      %v670 = vsel %vm542, %v639, 0
      %672 = vmatpush.xpose.msra.mxu0 0.0
      %673 = vmatpush.xpose.msra.mxu0 0.0
      %674 = vmatpush.xpose.msra.mxu0 0.0
      %675 = vmatpush.xpose.msra.mxu0 0.0
      %676 = vmatpush.xpose.msra.mxu0 0.0
      %677 = vmatpush.xpose.msra.mxu0 0.0
      %678 = vmatpush.xpose.msra.mxu0 0.0
      %679 = vmatpush.xpose.msra.mxu0 0.0
      %680 = vmatpush.xpose.msra.mxu0 %v670
      %681 = vmatpush.xpose.msra.mxu0 %v668
      %682 = vmatpush.xpose.msra.mxu0 %v666
      %683 = vmatpush.xpose.msra.mxu0 %v664
      %684 = vmatpush.xpose.msra.mxu0 %v662
      %685 = vmatpush.xpose.msra.mxu0 %v660
      %686 = vmatpush.xpose.msra.mxu0 %v658
      %687 = vmatpush.xpose.msra.mxu0 %v656
      %688 = vmatmul.f32.gmra.mxu0 %v640
      %v689 = vpop.f32.mrf.mxu0
      %v690 = vadd.f32 %v510, %v689
      %691 = vmatmul.f32.gmra.mxu0 %v642
      %v692 = vpop.f32.mrf.mxu0
      %v693 = vadd.f32 %v511, %v692
      %694 = vmatmul.f32.gmra.mxu0 %v644
      %v695 = vpop.f32.mrf.mxu0
      %v696 = vadd.f32 %v512, %v695
      %697 = vmatmul.f32.gmra.mxu0 %v646
      %v698 = vpop.f32.mrf.mxu0
      %v699 = vadd.f32 %v513, %v698
      %700 = vmatmul.f32.gmra.mxu0 %v648
      %v701 = vpop.f32.mrf.mxu0
      %v702 = vadd.f32 %v514, %v701
      %703 = vmatmul.f32.gmra.mxu0 %v650
      %v704 = vpop.f32.mrf.mxu0
      %v705 = vadd.f32 %v515, %v704
      %706 = vmatmul.f32.gmra.mxu0 %v652
      %v707 = vpop.f32.mrf.mxu0
      %v708 = vadd.f32 %v516, %v707
      %709 = vmatmul.f32.gmra.mxu0 %v654
      %v710 = vpop.f32.mrf.mxu0
      %v711 = vadd.f32 %v517, %v710
      %712 = vdwg.mxu0
      %721 = vrot.lane.b32.xlu0 %v463, 96
      %v722 = vpop.permute.xlu0 %721
      %723 = vrot.lane.b32.xlu0 %v466, 96
      %v724 = vpop.permute.xlu0 %723
      %725 = vrot.lane.b32.xlu0 %v469, 96
      %v726 = vpop.permute.xlu0 %725
      %727 = vrot.lane.b32.xlu0 %v472, 96
      %v728 = vpop.permute.xlu0 %727
      %729 = vrot.lane.b32.xlu0 %v475, 96
      %v730 = vpop.permute.xlu0 %729
      %731 = vrot.lane.b32.xlu0 %v478, 96
      %v732 = vpop.permute.xlu0 %731
      %733 = vrot.lane.b32.xlu0 %v481, 96
      %v734 = vpop.permute.xlu0 %733
      %735 = vrot.lane.b32.xlu0 %v484, 96
      %v736 = vpop.permute.xlu0 %735
      %v737 = vsel %vm542, %v463, 0
      %v739 = vsel %vm542, %v466, 0
      %v741 = vsel %vm542, %v469, 0
      %v743 = vsel %vm542, %v472, 0
      %v745 = vsel %vm542, %v475, 0
      %v747 = vsel %vm542, %v478, 0
      %v749 = vsel %vm542, %v481, 0
      %v751 = vsel %vm542, %v484, 0
      %v753 = vsel %vm542, %v722, 0
      %v755 = vsel %vm542, %v724, 0
      %v757 = vsel %vm542, %v726, 0
      %v759 = vsel %vm542, %v728, 0
      %v761 = vsel %vm542, %v730, 0
      %v763 = vsel %vm542, %v732, 0
      %v765 = vsel %vm542, %v734, 0
      %v767 = vsel %vm542, %v736, 0
      %769 = vmatpush.xpose.msra.mxu0 0.0
      %770 = vmatpush.xpose.msra.mxu0 0.0
      %771 = vmatpush.xpose.msra.mxu0 0.0
      %772 = vmatpush.xpose.msra.mxu0 0.0
      %773 = vmatpush.xpose.msra.mxu0 0.0
      %774 = vmatpush.xpose.msra.mxu0 0.0
      %775 = vmatpush.xpose.msra.mxu0 0.0
      %776 = vmatpush.xpose.msra.mxu0 0.0
      %777 = vmatpush.xpose.msra.mxu0 %v767
      %778 = vmatpush.xpose.msra.mxu0 %v765
      %779 = vmatpush.xpose.msra.mxu0 %v763
      %780 = vmatpush.xpose.msra.mxu0 %v761
      %781 = vmatpush.xpose.msra.mxu0 %v759
      %782 = vmatpush.xpose.msra.mxu0 %v757
      %783 = vmatpush.xpose.msra.mxu0 %v755
      %784 = vmatpush.xpose.msra.mxu0 %v753
      %785 = vmatmul.f32.gmra.mxu0 %v737
      %v786 = vpop.f32.mrf.mxu0
      %v787 = vadd.f32 %v510, %v786
      %788 = vmatmul.f32.gmra.mxu0 %v739
      %v789 = vpop.f32.mrf.mxu0
      %v790 = vadd.f32 %v511, %v789
      %791 = vmatmul.f32.gmra.mxu0 %v741
      %v792 = vpop.f32.mrf.mxu0
      %v793 = vadd.f32 %v512, %v792
      %794 = vmatmul.f32.gmra.mxu0 %v743
      %v795 = vpop.f32.mrf.mxu0
      %v796 = vadd.f32 %v513, %v795
      %797 = vmatmul.f32.gmra.mxu0 %v745
      %v798 = vpop.f32.mrf.mxu0
      %v799 = vadd.f32 %v514, %v798
      %800 = vmatmul.f32.gmra.mxu0 %v747
      %v801 = vpop.f32.mrf.mxu0
      %v802 = vadd.f32 %v515, %v801
      %803 = vmatmul.f32.gmra.mxu0 %v749
      %v804 = vpop.f32.mrf.mxu0
      %v805 = vadd.f32 %v516, %v804
      %806 = vmatmul.f32.gmra.mxu0 %v751
      %v807 = vpop.f32.mrf.mxu0
      %v808 = vadd.f32 %v517, %v807
      %809 = vdwg.mxu0
      %818 = vrot.lane.b32.xlu0 %v487, 96
      %v819 = vpop.permute.xlu0 %818
      %820 = vrot.lane.b32.xlu0 %v490, 96
      %v821 = vpop.permute.xlu0 %820
      %822 = vrot.lane.b32.xlu0 %v493, 96
      %v823 = vpop.permute.xlu0 %822
      %824 = vrot.lane.b32.xlu0 %v496, 96
      %v825 = vpop.permute.xlu0 %824
      %826 = vrot.lane.b32.xlu0 %v499, 96
      %v827 = vpop.permute.xlu0 %826
      %828 = vrot.lane.b32.xlu0 %v502, 96
      %v829 = vpop.permute.xlu0 %828
      %830 = vrot.lane.b32.xlu0 %v505, 96
      %v831 = vpop.permute.xlu0 %830
      %832 = vrot.lane.b32.xlu0 %v508, 96
      %v833 = vpop.permute.xlu0 %832
      %v834 = vsel %vm542, %v487, 0
      %v836 = vsel %vm542, %v490, 0
      %v838 = vsel %vm542, %v493, 0
      %v840 = vsel %vm542, %v496, 0
      %v842 = vsel %vm542, %v499, 0
      %v844 = vsel %vm542, %v502, 0
      %v846 = vsel %vm542, %v505, 0
      %v848 = vsel %vm542, %v508, 0
      %v850 = vsel %vm542, %v819, 0
      %v852 = vsel %vm542, %v821, 0
      %v854 = vsel %vm542, %v823, 0
      %v856 = vsel %vm542, %v825, 0
      %v858 = vsel %vm542, %v827, 0
      %v860 = vsel %vm542, %v829, 0
      %v862 = vsel %vm542, %v831, 0
      %v864 = vsel %vm542, %v833, 0
      %866 = vmatpush.xpose.msra.mxu0 0.0
      %867 = vmatpush.xpose.msra.mxu0 0.0
      %868 = vmatpush.xpose.msra.mxu0 0.0
      %869 = vmatpush.xpose.msra.mxu0 0.0
      %870 = vmatpush.xpose.msra.mxu0 0.0
      %871 = vmatpush.xpose.msra.mxu0 0.0
      %872 = vmatpush.xpose.msra.mxu0 0.0
      %873 = vmatpush.xpose.msra.mxu0 0.0
      %874 = vmatpush.xpose.msra.mxu0 %v864
      %875 = vmatpush.xpose.msra.mxu0 %v862
      %876 = vmatpush.xpose.msra.mxu0 %v860
      %877 = vmatpush.xpose.msra.mxu0 %v858
      %878 = vmatpush.xpose.msra.mxu0 %v856
      %879 = vmatpush.xpose.msra.mxu0 %v854
      %880 = vmatpush.xpose.msra.mxu0 %v852
      %881 = vmatpush.xpose.msra.mxu0 %v850
      %882 = vmatmul.f32.gmra.mxu0 %v834
      %v883 = vpop.f32.mrf.mxu0
      %v884 = vadd.f32 %v510, %v883
      %885 = vmatmul.f32.gmra.mxu0 %v836
      %v886 = vpop.f32.mrf.mxu0
      %v887 = vadd.f32 %v511, %v886
      %888 = vmatmul.f32.gmra.mxu0 %v838
      %v889 = vpop.f32.mrf.mxu0
      %v890 = vadd.f32 %v512, %v889
      %891 = vmatmul.f32.gmra.mxu0 %v840
      %v892 = vpop.f32.mrf.mxu0
      %v893 = vadd.f32 %v513, %v892
      %894 = vmatmul.f32.gmra.mxu0 %v842
      %v895 = vpop.f32.mrf.mxu0
      %v896 = vadd.f32 %v514, %v895
      %897 = vmatmul.f32.gmra.mxu0 %v844
      %v898 = vpop.f32.mrf.mxu0
      %v899 = vadd.f32 %v515, %v898
      %900 = vmatmul.f32.gmra.mxu0 %v846
      %v901 = vpop.f32.mrf.mxu0
      %v902 = vadd.f32 %v516, %v901
      %903 = vmatmul.f32.gmra.mxu0 %v848
      %v904 = vpop.f32.mrf.mxu0
      %v905 = vadd.f32 %v517, %v904
      %906 = vdwg.mxu0
      %vm907 = vcmask 523264
      %v908 = vsel %vm907, %v593, -inf
      %909 = vmax.xlane.f32.xlu0 %v908
      %v910 = vpop.xlane.xlu0 %909
      %v911 = vsel %vm907, %v596, -inf
      %912 = vmax.xlane.f32.xlu0 %v911
      %v913 = vpop.xlane.xlu0 %912
      %v914 = vsel %vm907, %v599, -inf
      %915 = vmax.xlane.f32.xlu0 %v914
      %v916 = vpop.xlane.xlu0 %915
      %v917 = vsel %vm907, %v602, -inf
      %918 = vmax.xlane.f32.xlu0 %v917
      %v919 = vpop.xlane.xlu0 %918
      %v920 = vsel %vm907, %v605, -inf
      %921 = vmax.xlane.f32.xlu0 %v920
      %v922 = vpop.xlane.xlu0 %921
      %v923 = vsel %vm907, %v608, -inf
      %924 = vmax.xlane.f32.xlu0 %v923
      %v925 = vpop.xlane.xlu0 %924
      %v926 = vsel %vm907, %v611, -inf
      %927 = vmax.xlane.f32.xlu0 %v926
      %v928 = vpop.xlane.xlu0 %927
      %v929 = vsel %vm907, %v614, -inf
      %930 = vmax.xlane.f32.xlu0 %v929
      %v931 = vpop.xlane.xlu0 %930
      %v932 = vsel %vm907, %v690, -inf
      %933 = vmax.xlane.f32.xlu0 %v932
      %v934 = vpop.xlane.xlu0 %933
      %v935 = vsel %vm907, %v693, -inf
      %936 = vmax.xlane.f32.xlu0 %v935
      %v937 = vpop.xlane.xlu0 %936
      %v938 = vsel %vm907, %v696, -inf
      %939 = vmax.xlane.f32.xlu0 %v938
      %v940 = vpop.xlane.xlu0 %939
      %v941 = vsel %vm907, %v699, -inf
      %942 = vmax.xlane.f32.xlu0 %v941
      %v943 = vpop.xlane.xlu0 %942
      %v944 = vsel %vm907, %v702, -inf
      %945 = vmax.xlane.f32.xlu0 %v944
      %v946 = vpop.xlane.xlu0 %945
      %v947 = vsel %vm907, %v705, -inf
      %948 = vmax.xlane.f32.xlu0 %v947
      %v949 = vpop.xlane.xlu0 %948
      %v950 = vsel %vm907, %v708, -inf
      %951 = vmax.xlane.f32.xlu0 %v950
      %v952 = vpop.xlane.xlu0 %951
      %v953 = vsel %vm907, %v711, -inf
      %954 = vmax.xlane.f32.xlu0 %v953
      %v955 = vpop.xlane.xlu0 %954
      %v956 = vsel %vm907, %v787, -inf
      %957 = vmax.xlane.f32.xlu0 %v956
      %v958 = vpop.xlane.xlu0 %957
      %v959 = vsel %vm907, %v790, -inf
      %960 = vmax.xlane.f32.xlu0 %v959
      %v961 = vpop.xlane.xlu0 %960
      %v962 = vsel %vm907, %v793, -inf
      %963 = vmax.xlane.f32.xlu0 %v962
      %v964 = vpop.xlane.xlu0 %963
      %v965 = vsel %vm907, %v796, -inf
      %966 = vmax.xlane.f32.xlu0 %v965
      %v967 = vpop.xlane.xlu0 %966
      %v968 = vsel %vm907, %v799, -inf
      %969 = vmax.xlane.f32.xlu0 %v968
      %v970 = vpop.xlane.xlu0 %969
      %v971 = vsel %vm907, %v802, -inf
      %972 = vmax.xlane.f32.xlu0 %v971
      %v973 = vpop.xlane.xlu0 %972
      %v974 = vsel %vm907, %v805, -inf
      %975 = vmax.xlane.f32.xlu0 %v974
      %v976 = vpop.xlane.xlu0 %975
      %v977 = vsel %vm907, %v808, -inf
      %978 = vmax.xlane.f32.xlu0 %v977
      %v979 = vpop.xlane.xlu0 %978
      %v980 = vsel %vm907, %v884, -inf
      %981 = vmax.xlane.f32.xlu0 %v980
      %v982 = vpop.xlane.xlu0 %981
      %v983 = vsel %vm907, %v887, -inf
      %984 = vmax.xlane.f32.xlu0 %v983
      %v985 = vpop.xlane.xlu0 %984
      %v986 = vsel %vm907, %v890, -inf
      %987 = vmax.xlane.f32.xlu0 %v986
      %v988 = vpop.xlane.xlu0 %987
      %v989 = vsel %vm907, %v893, -inf
      %990 = vmax.xlane.f32.xlu0 %v989
      %v991 = vpop.xlane.xlu0 %990
      %v992 = vsel %vm907, %v896, -inf
      %993 = vmax.xlane.f32.xlu0 %v992
      %v994 = vpop.xlane.xlu0 %993
      %v995 = vsel %vm907, %v899, -inf
      %996 = vmax.xlane.f32.xlu0 %v995
      %v997 = vpop.xlane.xlu0 %996
      %v998 = vsel %vm907, %v902, -inf
      %999 = vmax.xlane.f32.xlu0 %v998
      %v1000 = vpop.xlane.xlu0 %999
      %v1001 = vsel %vm907, %v905, -inf
      %1002 = vmax.xlane.f32.xlu0 %v1001
      %v1003 = vpop.xlane.xlu0 %1002
      %v1004 = vsub.f32 %v593, %v910
      %v1005 = vsub.f32 %v596, %v913
      %v1006 = vsub.f32 %v599, %v916
      %v1007 = vsub.f32 %v602, %v919
      %v1008 = vsub.f32 %v605, %v922
      %v1009 = vsub.f32 %v608, %v925
      %v1010 = vsub.f32 %v611, %v928
      %v1011 = vsub.f32 %v614, %v931
      %v1012 = vsub.f32 %v690, %v934
      %v1013 = vsub.f32 %v693, %v937
      %v1014 = vsub.f32 %v696, %v940
      %v1015 = vsub.f32 %v699, %v943
      %v1016 = vsub.f32 %v702, %v946
      %v1017 = vsub.f32 %v705, %v949
      %v1018 = vsub.f32 %v708, %v952
      %v1019 = vsub.f32 %v711, %v955
      %v1020 = vsub.f32 %v787, %v958
      %v1021 = vsub.f32 %v790, %v961
      %v1022 = vsub.f32 %v793, %v964
      %v1023 = vsub.f32 %v796, %v967
      %v1024 = vsub.f32 %v799, %v970
      %v1025 = vsub.f32 %v802, %v973
      %v1026 = vsub.f32 %v805, %v976
      %v1027 = vsub.f32 %v808, %v979
      %v1028 = vsub.f32 %v884, %v982
      %v1029 = vsub.f32 %v887, %v985
      %v1030 = vsub.f32 %v890, %v988
      %v1031 = vsub.f32 %v893, %v991
      %v1032 = vsub.f32 %v896, %v994
      %v1033 = vsub.f32 %v899, %v997
      %v1034 = vsub.f32 %v902, %v1000
      %v1035 = vsub.f32 %v905, %v1003
      %v1036 = vmul.f32 %v1004, 1.442695
      %v1037 = vpow.pop %v1036
      %v1038 = vmul.f32 %v1005, 1.442695
      %v1039 = vpow.pop %v1038
      %v1040 = vmul.f32 %v1006, 1.442695
      %v1041 = vpow.pop %v1040
      %v1042 = vmul.f32 %v1007, 1.442695
      %v1043 = vpow.pop %v1042
      %v1044 = vmul.f32 %v1008, 1.442695
      %v1045 = vpow.pop %v1044
      %v1046 = vmul.f32 %v1009, 1.442695
      %v1047 = vpow.pop %v1046
      %v1048 = vmul.f32 %v1010, 1.442695
      %v1049 = vpow.pop %v1048
      %v1050 = vmul.f32 %v1011, 1.442695
      %v1051 = vpow.pop %v1050
      %v1052 = vmul.f32 %v1012, 1.442695
      %v1053 = vpow.pop %v1052
      %v1054 = vmul.f32 %v1013, 1.442695
      %v1055 = vpow.pop %v1054
      %v1056 = vmul.f32 %v1014, 1.442695
      %v1057 = vpow.pop %v1056
      %v1058 = vmul.f32 %v1015, 1.442695
      %v1059 = vpow.pop %v1058
      %v1060 = vmul.f32 %v1016, 1.442695
      %v1061 = vpow.pop %v1060
      %v1062 = vmul.f32 %v1017, 1.442695
      %v1063 = vpow.pop %v1062
      %v1064 = vmul.f32 %v1018, 1.442695
      %v1065 = vpow.pop %v1064
      %v1066 = vmul.f32 %v1019, 1.442695
      %v1067 = vpow.pop %v1066
      %v1068 = vmul.f32 %v1020, 1.442695
      %v1069 = vpow.pop %v1068
      %v1070 = vmul.f32 %v1021, 1.442695
      %v1071 = vpow.pop %v1070
      %v1072 = vmul.f32 %v1022, 1.442695
      %v1073 = vpow.pop %v1072
      %v1074 = vmul.f32 %v1023, 1.442695
      %v1075 = vpow.pop %v1074
      %v1076 = vmul.f32 %v1024, 1.442695
      %v1077 = vpow.pop %v1076
      %v1078 = vmul.f32 %v1025, 1.442695
      %v1079 = vpow.pop %v1078
      %v1080 = vmul.f32 %v1026, 1.442695
      %v1081 = vpow.pop %v1080
      %v1082 = vmul.f32 %v1027, 1.442695
      %v1083 = vpow.pop %v1082
      %v1084 = vmul.f32 %v1028, 1.442695
      %v1085 = vpow.pop %v1084
      %v1086 = vmul.f32 %v1029, 1.442695
      %v1087 = vpow.pop %v1086
      %v1088 = vmul.f32 %v1030, 1.442695
      %v1089 = vpow.pop %v1088
      %v1090 = vmul.f32 %v1031, 1.442695
      %v1091 = vpow.pop %v1090
      %v1092 = vmul.f32 %v1032, 1.442695
      %v1093 = vpow.pop %v1092
      %v1094 = vmul.f32 %v1033, 1.442695
      %v1095 = vpow.pop %v1094
      %v1096 = vmul.f32 %v1034, 1.442695
      %v1097 = vpow.pop %v1096
      %v1098 = vmul.f32 %v1035, 1.442695
      %v1099 = vpow.pop %v1098
      %v1100 = vsel %vm907, %v1037, 0.0
      %1101 = vadd.xlane.f32.xlu0 %v1100
      %v1102 = vpop.xlane.xlu0 %1101
      %v1103 = vsel %vm907, %v1039, 0.0
      %1104 = vadd.xlane.f32.xlu0 %v1103
      %v1105 = vpop.xlane.xlu0 %1104
      %v1106 = vsel %vm907, %v1041, 0.0
      %1107 = vadd.xlane.f32.xlu0 %v1106
      %v1108 = vpop.xlane.xlu0 %1107
      %v1109 = vsel %vm907, %v1043, 0.0
      %1110 = vadd.xlane.f32.xlu0 %v1109
      %v1111 = vpop.xlane.xlu0 %1110
      %v1112 = vsel %vm907, %v1045, 0.0
      %1113 = vadd.xlane.f32.xlu0 %v1112
      %v1114 = vpop.xlane.xlu0 %1113
      %v1115 = vsel %vm907, %v1047, 0.0
      %1116 = vadd.xlane.f32.xlu0 %v1115
      %v1117 = vpop.xlane.xlu0 %1116
      %v1118 = vsel %vm907, %v1049, 0.0
      %1119 = vadd.xlane.f32.xlu0 %v1118
      %v1120 = vpop.xlane.xlu0 %1119
      %v1121 = vsel %vm907, %v1051, 0.0
      %1122 = vadd.xlane.f32.xlu0 %v1121
      %v1123 = vpop.xlane.xlu0 %1122
      %v1124 = vsel %vm907, %v1053, 0.0
      %1125 = vadd.xlane.f32.xlu0 %v1124
      %v1126 = vpop.xlane.xlu0 %1125
      %v1127 = vsel %vm907, %v1055, 0.0
      %1128 = vadd.xlane.f32.xlu0 %v1127
      %v1129 = vpop.xlane.xlu0 %1128
      %v1130 = vsel %vm907, %v1057, 0.0
      %1131 = vadd.xlane.f32.xlu0 %v1130
      %v1132 = vpop.xlane.xlu0 %1131
      %v1133 = vsel %vm907, %v1059, 0.0
      %1134 = vadd.xlane.f32.xlu0 %v1133
      %v1135 = vpop.xlane.xlu0 %1134
      %v1136 = vsel %vm907, %v1061, 0.0
      %1137 = vadd.xlane.f32.xlu0 %v1136
      %v1138 = vpop.xlane.xlu0 %1137
      %v1139 = vsel %vm907, %v1063, 0.0
      %1140 = vadd.xlane.f32.xlu0 %v1139
      %v1141 = vpop.xlane.xlu0 %1140
      %v1142 = vsel %vm907, %v1065, 0.0
      %1143 = vadd.xlane.f32.xlu0 %v1142
      %v1144 = vpop.xlane.xlu0 %1143
      %v1145 = vsel %vm907, %v1067, 0.0
      %1146 = vadd.xlane.f32.xlu0 %v1145
      %v1147 = vpop.xlane.xlu0 %1146
      %v1148 = vsel %vm907, %v1069, 0.0
      %1149 = vadd.xlane.f32.xlu0 %v1148
      %v1150 = vpop.xlane.xlu0 %1149
      %v1151 = vsel %vm907, %v1071, 0.0
      %1152 = vadd.xlane.f32.xlu0 %v1151
      %v1153 = vpop.xlane.xlu0 %1152
      %v1154 = vsel %vm907, %v1073, 0.0
      %1155 = vadd.xlane.f32.xlu0 %v1154
      %v1156 = vpop.xlane.xlu0 %1155
      %v1157 = vsel %vm907, %v1075, 0.0
      %1158 = vadd.xlane.f32.xlu0 %v1157
      %v1159 = vpop.xlane.xlu0 %1158
      %v1160 = vsel %vm907, %v1077, 0.0
      %1161 = vadd.xlane.f32.xlu0 %v1160
      %v1162 = vpop.xlane.xlu0 %1161
      %v1163 = vsel %vm907, %v1079, 0.0
      %1164 = vadd.xlane.f32.xlu0 %v1163
      %v1165 = vpop.xlane.xlu0 %1164
      %v1166 = vsel %vm907, %v1081, 0.0
      %1167 = vadd.xlane.f32.xlu0 %v1166
      %v1168 = vpop.xlane.xlu0 %1167
      %v1169 = vsel %vm907, %v1083, 0.0
      %1170 = vadd.xlane.f32.xlu0 %v1169
      %v1171 = vpop.xlane.xlu0 %1170
      %v1172 = vsel %vm907, %v1085, 0.0
      %1173 = vadd.xlane.f32.xlu0 %v1172
      %v1174 = vpop.xlane.xlu0 %1173
      %v1175 = vsel %vm907, %v1087, 0.0
      %1176 = vadd.xlane.f32.xlu0 %v1175
      %v1177 = vpop.xlane.xlu0 %1176
      %v1178 = vsel %vm907, %v1089, 0.0
      %1179 = vadd.xlane.f32.xlu0 %v1178
      %v1180 = vpop.xlane.xlu0 %1179
      %v1181 = vsel %vm907, %v1091, 0.0
      %1182 = vadd.xlane.f32.xlu0 %v1181
      %v1183 = vpop.xlane.xlu0 %1182
      %v1184 = vsel %vm907, %v1093, 0.0
      %1185 = vadd.xlane.f32.xlu0 %v1184
      %v1186 = vpop.xlane.xlu0 %1185
      %v1187 = vsel %vm907, %v1095, 0.0
      %1188 = vadd.xlane.f32.xlu0 %v1187
      %v1189 = vpop.xlane.xlu0 %1188
      %v1190 = vsel %vm907, %v1097, 0.0
      %1191 = vadd.xlane.f32.xlu0 %v1190
      %v1192 = vpop.xlane.xlu0 %1191
      %v1193 = vsel %vm907, %v1099, 0.0
      %1194 = vadd.xlane.f32.xlu0 %v1193
      %v1195 = vpop.xlane.xlu0 %1194
      %v1196 = vrcp.pop %v1102
      %v1197 = vrcp.pop %v1105
      %v1198 = vrcp.pop %v1108
      %v1199 = vrcp.pop %v1111
      %v1200 = vrcp.pop %v1114
      %v1201 = vrcp.pop %v1117
      %v1202 = vrcp.pop %v1120
      %v1203 = vrcp.pop %v1123
      %v1204 = vrcp.pop %v1126
      %v1205 = vrcp.pop %v1129
      %v1206 = vrcp.pop %v1132
      %v1207 = vrcp.pop %v1135
      %v1208 = vrcp.pop %v1138
      %v1209 = vrcp.pop %v1141
      %v1210 = vrcp.pop %v1144
      %v1211 = vrcp.pop %v1147
      %v1212 = vrcp.pop %v1150
      %v1213 = vrcp.pop %v1153
      %v1214 = vrcp.pop %v1156
      %v1215 = vrcp.pop %v1159
      %v1216 = vrcp.pop %v1162
      %v1217 = vrcp.pop %v1165
      %v1218 = vrcp.pop %v1168
      %v1219 = vrcp.pop %v1171
      %v1220 = vrcp.pop %v1174
      %v1221 = vrcp.pop %v1177
      %v1222 = vrcp.pop %v1180
      %v1223 = vrcp.pop %v1183
      %v1224 = vrcp.pop %v1186
      %v1225 = vrcp.pop %v1189
      %v1226 = vrcp.pop %v1192
      %v1227 = vrcp.pop %v1195
      %v1228 = vmul.f32 %v1037, %v1196
      %v1229 = vmul.f32 %v1039, %v1197
      %v1230 = vmul.f32 %v1041, %v1198
      %v1231 = vmul.f32 %v1043, %v1199
      %v1232 = vmul.f32 %v1045, %v1200
      %v1233 = vmul.f32 %v1047, %v1201
      %v1234 = vmul.f32 %v1049, %v1202
      %v1235 = vmul.f32 %v1051, %v1203
      %v1236 = vmul.f32 %v1053, %v1204
      %v1237 = vmul.f32 %v1055, %v1205
      %v1238 = vmul.f32 %v1057, %v1206
      %v1239 = vmul.f32 %v1059, %v1207
      %v1240 = vmul.f32 %v1061, %v1208
      %v1241 = vmul.f32 %v1063, %v1209
      %v1242 = vmul.f32 %v1065, %v1210
      %v1243 = vmul.f32 %v1067, %v1211
      %v1244 = vmul.f32 %v1069, %v1212
      %v1245 = vmul.f32 %v1071, %v1213
      %v1246 = vmul.f32 %v1073, %v1214
      %v1247 = vmul.f32 %v1075, %v1215
      %v1248 = vmul.f32 %v1077, %v1216
      %v1249 = vmul.f32 %v1079, %v1217
      %v1250 = vmul.f32 %v1081, %v1218
      %v1251 = vmul.f32 %v1083, %v1219
      %v1252 = vmul.f32 %v1085, %v1220
      %v1253 = vmul.f32 %v1087, %v1221
      %v1254 = vmul.f32 %v1089, %v1222
      %v1255 = vmul.f32 %v1091, %v1223
      %v1256 = vmul.f32 %v1093, %v1224
      %v1257 = vmul.f32 %v1095, %v1225
      %v1258 = vmul.f32 %v1097, %v1226
      %v1259 = vmul.f32 %v1099, %v1227
      %1260 = vrot.lane.b32.xlu0 %v415, 64
      %v1261 = vpop.permute.xlu0 %1260
      %1262 = vrot.lane.b32.xlu0 %v418, 64
      %v1263 = vpop.permute.xlu0 %1262
      %1264 = vrot.lane.b32.xlu0 %v421, 64
      %v1265 = vpop.permute.xlu0 %1264
      %1266 = vrot.lane.b32.xlu0 %v424, 64
      %v1267 = vpop.permute.xlu0 %1266
      %1268 = vrot.lane.b32.xlu0 %v427, 64
      %v1269 = vpop.permute.xlu0 %1268
      %1270 = vrot.lane.b32.xlu0 %v430, 64
      %v1271 = vpop.permute.xlu0 %1270
      %1272 = vrot.lane.b32.xlu0 %v433, 64
      %v1273 = vpop.permute.xlu0 %1272
      %1274 = vrot.lane.b32.xlu0 %v436, 64
      %v1275 = vpop.permute.xlu0 %1274
      %v1285 = vsel %vm907, %v1228, 0
      %v1288 = vsel %vm907, %v1229, 0
      %v1291 = vsel %vm907, %v1230, 0
      %v1294 = vsel %vm907, %v1231, 0
      %v1297 = vsel %vm907, %v1232, 0
      %v1300 = vsel %vm907, %v1233, 0
      %v1303 = vsel %vm907, %v1234, 0
      %v1306 = vsel %vm907, %v1235, 0
      %1308 = vmatpush.msra.mxu0 0.0
      %1309 = vmatpush.msra.mxu0 0.0
      %1310 = vmatpush.msra.mxu0 0.0
      %1311 = vmatpush.msra.mxu0 0.0
      %1312 = vmatpush.msra.mxu0 0.0
      %1313 = vmatpush.msra.mxu0 0.0
      %1314 = vmatpush.msra.mxu0 0.0
      %1315 = vmatpush.msra.mxu0 0.0
      %1316 = vmatpush.msra.mxu0 %v1275
      %1317 = vmatpush.msra.mxu0 %v1273
      %1318 = vmatpush.msra.mxu0 %v1271
      %1319 = vmatpush.msra.mxu0 %v1269
      %1320 = vmatpush.msra.mxu0 %v1267
      %1321 = vmatpush.msra.mxu0 %v1265
      %1322 = vmatpush.msra.mxu0 %v1263
      %1323 = vmatpush.msra.mxu0 %v1261
      %1324 = vmatmul.f32.gmra.mxu0 %v1285
      %v1325 = vpop.f32.mrf.mxu0
      %v1326 = vadd.f32 0.0, %v1325
      %1327 = vmatmul.f32.gmra.mxu0 %v1288
      %v1328 = vpop.f32.mrf.mxu0
      %v1329 = vadd.f32 0.0, %v1328
      %1330 = vmatmul.f32.gmra.mxu0 %v1291
      %v1331 = vpop.f32.mrf.mxu0
      %v1332 = vadd.f32 0.0, %v1331
      %1333 = vmatmul.f32.gmra.mxu0 %v1294
      %v1334 = vpop.f32.mrf.mxu0
      %v1335 = vadd.f32 0.0, %v1334
      %1336 = vmatmul.f32.gmra.mxu0 %v1297
      %v1337 = vpop.f32.mrf.mxu0
      %v1338 = vadd.f32 0.0, %v1337
      %1339 = vmatmul.f32.gmra.mxu0 %v1300
      %v1340 = vpop.f32.mrf.mxu0
      %v1341 = vadd.f32 0.0, %v1340
      %1342 = vmatmul.f32.gmra.mxu0 %v1303
      %v1343 = vpop.f32.mrf.mxu0
      %v1344 = vadd.f32 0.0, %v1343
      %1345 = vmatmul.f32.gmra.mxu0 %v1306
      %v1346 = vpop.f32.mrf.mxu0
      %v1347 = vadd.f32 0.0, %v1346
      %1348 = vdwg.mxu0
      %1349 = vrot.lane.b32.xlu0 %v439, 64
      %v1350 = vpop.permute.xlu0 %1349
      %1351 = vrot.lane.b32.xlu0 %v442, 64
      %v1352 = vpop.permute.xlu0 %1351
      %1353 = vrot.lane.b32.xlu0 %v445, 64
      %v1354 = vpop.permute.xlu0 %1353
      %1355 = vrot.lane.b32.xlu0 %v448, 64
      %v1356 = vpop.permute.xlu0 %1355
      %1357 = vrot.lane.b32.xlu0 %v451, 64
      %v1358 = vpop.permute.xlu0 %1357
      %1359 = vrot.lane.b32.xlu0 %v454, 64
      %v1360 = vpop.permute.xlu0 %1359
      %1361 = vrot.lane.b32.xlu0 %v457, 64
      %v1362 = vpop.permute.xlu0 %1361
      %1363 = vrot.lane.b32.xlu0 %v460, 64
      %v1364 = vpop.permute.xlu0 %1363
      %v1374 = vsel %vm907, %v1236, 0
      %v1377 = vsel %vm907, %v1237, 0
      %v1380 = vsel %vm907, %v1238, 0
      %v1383 = vsel %vm907, %v1239, 0
      %v1386 = vsel %vm907, %v1240, 0
      %v1389 = vsel %vm907, %v1241, 0
      %v1392 = vsel %vm907, %v1242, 0
      %v1395 = vsel %vm907, %v1243, 0
      %1397 = vmatpush.msra.mxu0 0.0
      %1398 = vmatpush.msra.mxu0 0.0
      %1399 = vmatpush.msra.mxu0 0.0
      %1400 = vmatpush.msra.mxu0 0.0
      %1401 = vmatpush.msra.mxu0 0.0
      %1402 = vmatpush.msra.mxu0 0.0
      %1403 = vmatpush.msra.mxu0 0.0
      %1404 = vmatpush.msra.mxu0 0.0
      %1405 = vmatpush.msra.mxu0 %v1364
      %1406 = vmatpush.msra.mxu0 %v1362
      %1407 = vmatpush.msra.mxu0 %v1360
      %1408 = vmatpush.msra.mxu0 %v1358
      %1409 = vmatpush.msra.mxu0 %v1356
      %1410 = vmatpush.msra.mxu0 %v1354
      %1411 = vmatpush.msra.mxu0 %v1352
      %1412 = vmatpush.msra.mxu0 %v1350
      %1413 = vmatmul.f32.gmra.mxu0 %v1374
      %v1414 = vpop.f32.mrf.mxu0
      %v1415 = vadd.f32 0.0, %v1414
      %1416 = vmatmul.f32.gmra.mxu0 %v1377
      %v1417 = vpop.f32.mrf.mxu0
      %v1418 = vadd.f32 0.0, %v1417
      %1419 = vmatmul.f32.gmra.mxu0 %v1380
      %v1420 = vpop.f32.mrf.mxu0
      %v1421 = vadd.f32 0.0, %v1420
      %1422 = vmatmul.f32.gmra.mxu0 %v1383
      %v1423 = vpop.f32.mrf.mxu0
      %v1424 = vadd.f32 0.0, %v1423
      %1425 = vmatmul.f32.gmra.mxu0 %v1386
      %v1426 = vpop.f32.mrf.mxu0
      %v1427 = vadd.f32 0.0, %v1426
      %1428 = vmatmul.f32.gmra.mxu0 %v1389
      %v1429 = vpop.f32.mrf.mxu0
      %v1430 = vadd.f32 0.0, %v1429
      %1431 = vmatmul.f32.gmra.mxu0 %v1392
      %v1432 = vpop.f32.mrf.mxu0
      %v1433 = vadd.f32 0.0, %v1432
      %1434 = vmatmul.f32.gmra.mxu0 %v1395
      %v1435 = vpop.f32.mrf.mxu0
      %v1436 = vadd.f32 0.0, %v1435
      %1437 = vdwg.mxu0
      %1438 = vrot.lane.b32.xlu0 %v463, 64
      %v1439 = vpop.permute.xlu0 %1438
      %1440 = vrot.lane.b32.xlu0 %v466, 64
      %v1441 = vpop.permute.xlu0 %1440
      %1442 = vrot.lane.b32.xlu0 %v469, 64
      %v1443 = vpop.permute.xlu0 %1442
      %1444 = vrot.lane.b32.xlu0 %v472, 64
      %v1445 = vpop.permute.xlu0 %1444
      %1446 = vrot.lane.b32.xlu0 %v475, 64
      %v1447 = vpop.permute.xlu0 %1446
      %1448 = vrot.lane.b32.xlu0 %v478, 64
      %v1449 = vpop.permute.xlu0 %1448
      %1450 = vrot.lane.b32.xlu0 %v481, 64
      %v1451 = vpop.permute.xlu0 %1450
      %1452 = vrot.lane.b32.xlu0 %v484, 64
      %v1453 = vpop.permute.xlu0 %1452
      %v1463 = vsel %vm907, %v1244, 0
      %v1466 = vsel %vm907, %v1245, 0
      %v1469 = vsel %vm907, %v1246, 0
      %v1472 = vsel %vm907, %v1247, 0
      %v1475 = vsel %vm907, %v1248, 0
      %v1478 = vsel %vm907, %v1249, 0
      %v1481 = vsel %vm907, %v1250, 0
      %v1484 = vsel %vm907, %v1251, 0
      %1486 = vmatpush.msra.mxu0 0.0
      %1487 = vmatpush.msra.mxu0 0.0
      %1488 = vmatpush.msra.mxu0 0.0
      %1489 = vmatpush.msra.mxu0 0.0
      %1490 = vmatpush.msra.mxu0 0.0
      %1491 = vmatpush.msra.mxu0 0.0
      %1492 = vmatpush.msra.mxu0 0.0
      %1493 = vmatpush.msra.mxu0 0.0
      %1494 = vmatpush.msra.mxu0 %v1453
      %1495 = vmatpush.msra.mxu0 %v1451
      %1496 = vmatpush.msra.mxu0 %v1449
      %1497 = vmatpush.msra.mxu0 %v1447
      %1498 = vmatpush.msra.mxu0 %v1445
      %1499 = vmatpush.msra.mxu0 %v1443
      %1500 = vmatpush.msra.mxu0 %v1441
      %1501 = vmatpush.msra.mxu0 %v1439
      %1502 = vmatmul.f32.gmra.mxu0 %v1463
      %v1503 = vpop.f32.mrf.mxu0
      %v1504 = vadd.f32 0.0, %v1503
      %1505 = vmatmul.f32.gmra.mxu0 %v1466
      %v1506 = vpop.f32.mrf.mxu0
      %v1507 = vadd.f32 0.0, %v1506
      %1508 = vmatmul.f32.gmra.mxu0 %v1469
      %v1509 = vpop.f32.mrf.mxu0
      %v1510 = vadd.f32 0.0, %v1509
      %1511 = vmatmul.f32.gmra.mxu0 %v1472
      %v1512 = vpop.f32.mrf.mxu0
      %v1513 = vadd.f32 0.0, %v1512
      %1514 = vmatmul.f32.gmra.mxu0 %v1475
      %v1515 = vpop.f32.mrf.mxu0
      %v1516 = vadd.f32 0.0, %v1515
      %1517 = vmatmul.f32.gmra.mxu0 %v1478
      %v1518 = vpop.f32.mrf.mxu0
      %v1519 = vadd.f32 0.0, %v1518
      %1520 = vmatmul.f32.gmra.mxu0 %v1481
      %v1521 = vpop.f32.mrf.mxu0
      %v1522 = vadd.f32 0.0, %v1521
      %1523 = vmatmul.f32.gmra.mxu0 %v1484
      %v1524 = vpop.f32.mrf.mxu0
      %v1525 = vadd.f32 0.0, %v1524
      %1526 = vdwg.mxu0
      %1527 = vrot.lane.b32.xlu0 %v487, 64
      %v1528 = vpop.permute.xlu0 %1527
      %1529 = vrot.lane.b32.xlu0 %v490, 64
      %v1530 = vpop.permute.xlu0 %1529
      %1531 = vrot.lane.b32.xlu0 %v493, 64
      %v1532 = vpop.permute.xlu0 %1531
      %1533 = vrot.lane.b32.xlu0 %v496, 64
      %v1534 = vpop.permute.xlu0 %1533
      %1535 = vrot.lane.b32.xlu0 %v499, 64
      %v1536 = vpop.permute.xlu0 %1535
      %1537 = vrot.lane.b32.xlu0 %v502, 64
      %v1538 = vpop.permute.xlu0 %1537
      %1539 = vrot.lane.b32.xlu0 %v505, 64
      %v1540 = vpop.permute.xlu0 %1539
      %1541 = vrot.lane.b32.xlu0 %v508, 64
      %v1542 = vpop.permute.xlu0 %1541
      %v1552 = vsel %vm907, %v1252, 0
      %v1555 = vsel %vm907, %v1253, 0
      %v1558 = vsel %vm907, %v1254, 0
      %v1561 = vsel %vm907, %v1255, 0
      %v1564 = vsel %vm907, %v1256, 0
      %v1567 = vsel %vm907, %v1257, 0
      %v1570 = vsel %vm907, %v1258, 0
      %v1573 = vsel %vm907, %v1259, 0
      %1575 = vmatpush.msra.mxu0 0.0
      %1576 = vmatpush.msra.mxu0 0.0
      %1577 = vmatpush.msra.mxu0 0.0
      %1578 = vmatpush.msra.mxu0 0.0
      %1579 = vmatpush.msra.mxu0 0.0
      %1580 = vmatpush.msra.mxu0 0.0
      %1581 = vmatpush.msra.mxu0 0.0
      %1582 = vmatpush.msra.mxu0 0.0
      %1583 = vmatpush.msra.mxu0 %v1542
      %1584 = vmatpush.msra.mxu0 %v1540
      %1585 = vmatpush.msra.mxu0 %v1538
      %1586 = vmatpush.msra.mxu0 %v1536
      %1587 = vmatpush.msra.mxu0 %v1534
      %1588 = vmatpush.msra.mxu0 %v1532
      %1589 = vmatpush.msra.mxu0 %v1530
      %1590 = vmatpush.msra.mxu0 %v1528
      %1591 = vmatmul.f32.gmra.mxu0 %v1552
      %v1592 = vpop.f32.mrf.mxu0
      %v1593 = vadd.f32 0.0, %v1592
      %1594 = vmatmul.f32.gmra.mxu0 %v1555
      %v1595 = vpop.f32.mrf.mxu0
      %v1596 = vadd.f32 0.0, %v1595
      %1597 = vmatmul.f32.gmra.mxu0 %v1558
      %v1598 = vpop.f32.mrf.mxu0
      %v1599 = vadd.f32 0.0, %v1598
      %1600 = vmatmul.f32.gmra.mxu0 %v1561
      %v1601 = vpop.f32.mrf.mxu0
      %v1602 = vadd.f32 0.0, %v1601
      %1603 = vmatmul.f32.gmra.mxu0 %v1564
      %v1604 = vpop.f32.mrf.mxu0
      %v1605 = vadd.f32 0.0, %v1604
      %1606 = vmatmul.f32.gmra.mxu0 %v1567
      %v1607 = vpop.f32.mrf.mxu0
      %v1608 = vadd.f32 0.0, %v1607
      %1609 = vmatmul.f32.gmra.mxu0 %v1570
      %v1610 = vpop.f32.mrf.mxu0
      %v1611 = vadd.f32 0.0, %v1610
      %1612 = vmatmul.f32.gmra.mxu0 %v1573
      %v1613 = vpop.f32.mrf.mxu0
      %v1614 = vadd.f32 0.0, %v1613
      %1615 = vdwg.mxu0
      %1616 = vst.msk [vmem:[#allocation2] sm:$0xff] %vm542, %v1326
      %1617 = vst.msk [vmem:[#allocation2 + $0x8] sm:$0xff] %vm542, %v1329
      %1618 = vst.msk [vmem:[#allocation2 + $0x10] sm:$0xff] %vm542, %v1332
      %1619 = vst.msk [vmem:[#allocation2 + $0x18] sm:$0xff] %vm542, %v1335
      %1620 = vst.msk [vmem:[#allocation2 + $0x20] sm:$0xff] %vm542, %v1338
      %1621 = vst.msk [vmem:[#allocation2 + $0x28] sm:$0xff] %vm542, %v1341
      %1622 = vst.msk [vmem:[#allocation2 + $0x30] sm:$0xff] %vm542, %v1344
      %1623 = vst.msk [vmem:[#allocation2 + $0x38] sm:$0xff] %vm542, %v1347
      %1624 = vst.msk [vmem:[#allocation2 + $0x40] sm:$0xff] %vm542, %v1415
      %1625 = vst.msk [vmem:[#allocation2 + $0x48] sm:$0xff] %vm542, %v1418
      %1626 = vst.msk [vmem:[#allocation2 + $0x50] sm:$0xff] %vm542, %v1421
      %1627 = vst.msk [vmem:[#allocation2 + $0x58] sm:$0xff] %vm542, %v1424
      %1628 = vst.msk [vmem:[#allocation2 + $0x60] sm:$0xff] %vm542, %v1427
      %1629 = vst.msk [vmem:[#allocation2 + $0x68] sm:$0xff] %vm542, %v1430
      %1630 = vst.msk [vmem:[#allocation2 + $0x70] sm:$0xff] %vm542, %v1433
      %1631 = vst.msk [vmem:[#allocation2 + $0x78] sm:$0xff] %vm542, %v1436
      %1632 = vst.msk [vmem:[#allocation2 + $0x80] sm:$0xff] %vm542, %v1504
      %1633 = vst.msk [vmem:[#allocation2 + $0x88] sm:$0xff] %vm542, %v1507
      %1634 = vst.msk [vmem:[#allocation2 + $0x90] sm:$0xff] %vm542, %v1510
      %1635 = vst.msk [vmem:[#allocation2 + $0x98] sm:$0xff] %vm542, %v1513
      %1636 = vst.msk [vmem:[#allocation2 + $0xa0] sm:$0xff] %vm542, %v1516
      %1637 = vst.msk [vmem:[#allocation2 + $0xa8] sm:$0xff] %vm542, %v1519
      %1638 = vst.msk [vmem:[#allocation2 + $0xb0] sm:$0xff] %vm542, %v1522
      %1639 = vst.msk [vmem:[#allocation2 + $0xb8] sm:$0xff] %vm542, %v1525
      %1640 = vst.msk [vmem:[#allocation2 + $0xc0] sm:$0xff] %vm542, %v1593
      %1641 = vst.msk [vmem:[#allocation2 + $0xc8] sm:$0xff] %vm542, %v1596
      %1642 = vst.msk [vmem:[#allocation2 + $0xd0] sm:$0xff] %vm542, %v1599
      %1643 = vst.msk [vmem:[#allocation2 + $0xd8] sm:$0xff] %vm542, %v1602
      %1644 = vst.msk [vmem:[#allocation2 + $0xe0] sm:$0xff] %vm542, %v1605
      %1645 = vst.msk [vmem:[#allocation2 + $0xe8] sm:$0xff] %vm542, %v1608
      %1646 = vst.msk [vmem:[#allocation2 + $0xf0] sm:$0xff] %vm542, %v1611
      %1647 = vst.msk [vmem:[#allocation2 + $0xf8] sm:$0xff] %vm542, %v1614
      %s1648 = scalar_lea.vmem %s3, 64
      %v1649 = vld [vmem:[%s1648] sm:$0xff]
      %v1650 = vld [vmem:[%s1648 + $0x8] sm:$0xff]
      %v1651 = vld [vmem:[%s1648 + $0x10] sm:$0xff]
      %v1652 = vld [vmem:[%s1648 + $0x18] sm:$0xff]
      %v1653 = vld [vmem:[%s1648 + $0x20] sm:$0xff]
      %v1654 = vld [vmem:[%s1648 + $0x28] sm:$0xff]
      %v1655 = vld [vmem:[%s1648 + $0x30] sm:$0xff]
      %v1656 = vld [vmem:[%s1648 + $0x38] sm:$0xff]
      %1657 = vrot.lane.b32.xlu0 %v415, 120
      %v1658 = vpop.permute.xlu0 %1657
      %1659 = vrot.lane.b32.xlu0 %v418, 120
      %v1660 = vpop.permute.xlu0 %1659
      %1661 = vrot.lane.b32.xlu0 %v421, 120
      %v1662 = vpop.permute.xlu0 %1661
      %1663 = vrot.lane.b32.xlu0 %v424, 120
      %v1664 = vpop.permute.xlu0 %1663
      %1665 = vrot.lane.b32.xlu0 %v427, 120
      %v1666 = vpop.permute.xlu0 %1665
      %1667 = vrot.lane.b32.xlu0 %v430, 120
      %v1668 = vpop.permute.xlu0 %1667
      %1669 = vrot.lane.b32.xlu0 %v433, 120
      %v1670 = vpop.permute.xlu0 %1669
      %1671 = vrot.lane.b32.xlu0 %v436, 120
      %v1672 = vpop.permute.xlu0 %1671
      %1673 = vrot.lane.b32.xlu0 %v415, 88
      %v1674 = vpop.permute.xlu0 %1673
      %1675 = vrot.lane.b32.xlu0 %v418, 88
      %v1676 = vpop.permute.xlu0 %1675
      %1677 = vrot.lane.b32.xlu0 %v421, 88
      %v1678 = vpop.permute.xlu0 %1677
      %1679 = vrot.lane.b32.xlu0 %v424, 88
      %v1680 = vpop.permute.xlu0 %1679
      %1681 = vrot.lane.b32.xlu0 %v427, 88
      %v1682 = vpop.permute.xlu0 %1681
      %1683 = vrot.lane.b32.xlu0 %v430, 88
      %v1684 = vpop.permute.xlu0 %1683
      %1685 = vrot.lane.b32.xlu0 %v433, 88
      %v1686 = vpop.permute.xlu0 %1685
      %1687 = vrot.lane.b32.xlu0 %v436, 88
      %v1688 = vpop.permute.xlu0 %1687
      %v1689 = vsel %vm542, %v1658, 0
      %v1691 = vsel %vm542, %v1660, 0
      %v1693 = vsel %vm542, %v1662, 0
      %v1695 = vsel %vm542, %v1664, 0
      %v1697 = vsel %vm542, %v1666, 0
      %v1699 = vsel %vm542, %v1668, 0
      %v1701 = vsel %vm542, %v1670, 0
      %v1703 = vsel %vm542, %v1672, 0
      %v1705 = vsel %vm542, %v1674, 0
      %v1707 = vsel %vm542, %v1676, 0
      %v1709 = vsel %vm542, %v1678, 0
      %v1711 = vsel %vm542, %v1680, 0
      %v1713 = vsel %vm542, %v1682, 0
      %v1715 = vsel %vm542, %v1684, 0
      %v1717 = vsel %vm542, %v1686, 0
      %v1719 = vsel %vm542, %v1688, 0
      %1721 = vmatpush.xpose.msra.mxu0 0.0
      %1722 = vmatpush.xpose.msra.mxu0 0.0
      %1723 = vmatpush.xpose.msra.mxu0 0.0
      %1724 = vmatpush.xpose.msra.mxu0 0.0
      %1725 = vmatpush.xpose.msra.mxu0 0.0
      %1726 = vmatpush.xpose.msra.mxu0 0.0
      %1727 = vmatpush.xpose.msra.mxu0 0.0
      %1728 = vmatpush.xpose.msra.mxu0 0.0
      %1729 = vmatpush.xpose.msra.mxu0 %v1719
      %1730 = vmatpush.xpose.msra.mxu0 %v1717
      %1731 = vmatpush.xpose.msra.mxu0 %v1715
      %1732 = vmatpush.xpose.msra.mxu0 %v1713
      %1733 = vmatpush.xpose.msra.mxu0 %v1711
      %1734 = vmatpush.xpose.msra.mxu0 %v1709
      %1735 = vmatpush.xpose.msra.mxu0 %v1707
      %1736 = vmatpush.xpose.msra.mxu0 %v1705
      %1737 = vmatmul.f32.gmra.mxu0 %v1689
      %v1738 = vpop.f32.mrf.mxu0
      %v1739 = vadd.f32 %v1649, %v1738
      %1740 = vmatmul.f32.gmra.mxu0 %v1691
      %v1741 = vpop.f32.mrf.mxu0
      %v1742 = vadd.f32 %v1650, %v1741
      %1743 = vmatmul.f32.gmra.mxu0 %v1693
      %v1744 = vpop.f32.mrf.mxu0
      %v1745 = vadd.f32 %v1651, %v1744
      %1746 = vmatmul.f32.gmra.mxu0 %v1695
      %v1747 = vpop.f32.mrf.mxu0
      %v1748 = vadd.f32 %v1652, %v1747
      %1749 = vmatmul.f32.gmra.mxu0 %v1697
      %v1750 = vpop.f32.mrf.mxu0
      %v1751 = vadd.f32 %v1653, %v1750
      %1752 = vmatmul.f32.gmra.mxu0 %v1699
      %v1753 = vpop.f32.mrf.mxu0
      %v1754 = vadd.f32 %v1654, %v1753
      %1755 = vmatmul.f32.gmra.mxu0 %v1701
      %v1756 = vpop.f32.mrf.mxu0
      %v1757 = vadd.f32 %v1655, %v1756
      %1758 = vmatmul.f32.gmra.mxu0 %v1703
      %v1759 = vpop.f32.mrf.mxu0
      %v1760 = vadd.f32 %v1656, %v1759
      %1761 = vdwg.mxu0
      %1762 = vrot.lane.b32.xlu0 %v439, 120
      %v1763 = vpop.permute.xlu0 %1762
      %1764 = vrot.lane.b32.xlu0 %v442, 120
      %v1765 = vpop.permute.xlu0 %1764
      %1766 = vrot.lane.b32.xlu0 %v445, 120
      %v1767 = vpop.permute.xlu0 %1766
      %1768 = vrot.lane.b32.xlu0 %v448, 120
      %v1769 = vpop.permute.xlu0 %1768
      %1770 = vrot.lane.b32.xlu0 %v451, 120
      %v1771 = vpop.permute.xlu0 %1770
      %1772 = vrot.lane.b32.xlu0 %v454, 120
      %v1773 = vpop.permute.xlu0 %1772
      %1774 = vrot.lane.b32.xlu0 %v457, 120
      %v1775 = vpop.permute.xlu0 %1774
      %1776 = vrot.lane.b32.xlu0 %v460, 120
      %v1777 = vpop.permute.xlu0 %1776
      %1778 = vrot.lane.b32.xlu0 %v439, 88
      %v1779 = vpop.permute.xlu0 %1778
      %1780 = vrot.lane.b32.xlu0 %v442, 88
      %v1781 = vpop.permute.xlu0 %1780
      %1782 = vrot.lane.b32.xlu0 %v445, 88
      %v1783 = vpop.permute.xlu0 %1782
      %1784 = vrot.lane.b32.xlu0 %v448, 88
      %v1785 = vpop.permute.xlu0 %1784
      %1786 = vrot.lane.b32.xlu0 %v451, 88
      %v1787 = vpop.permute.xlu0 %1786
      %1788 = vrot.lane.b32.xlu0 %v454, 88
      %v1789 = vpop.permute.xlu0 %1788
      %1790 = vrot.lane.b32.xlu0 %v457, 88
      %v1791 = vpop.permute.xlu0 %1790
      %1792 = vrot.lane.b32.xlu0 %v460, 88
      %v1793 = vpop.permute.xlu0 %1792
      %v1794 = vsel %vm542, %v1763, 0
      %v1796 = vsel %vm542, %v1765, 0
      %v1798 = vsel %vm542, %v1767, 0
      %v1800 = vsel %vm542, %v1769, 0
      %v1802 = vsel %vm542, %v1771, 0
      %v1804 = vsel %vm542, %v1773, 0
      %v1806 = vsel %vm542, %v1775, 0
      %v1808 = vsel %vm542, %v1777, 0
      %v1810 = vsel %vm542, %v1779, 0
      %v1812 = vsel %vm542, %v1781, 0
      %v1814 = vsel %vm542, %v1783, 0
      %v1816 = vsel %vm542, %v1785, 0
      %v1818 = vsel %vm542, %v1787, 0
      %v1820 = vsel %vm542, %v1789, 0
      %v1822 = vsel %vm542, %v1791, 0
      %v1824 = vsel %vm542, %v1793, 0
      %1826 = vmatpush.xpose.msra.mxu0 0.0
      %1827 = vmatpush.xpose.msra.mxu0 0.0
      %1828 = vmatpush.xpose.msra.mxu0 0.0
      %1829 = vmatpush.xpose.msra.mxu0 0.0
      %1830 = vmatpush.xpose.msra.mxu0 0.0
      %1831 = vmatpush.xpose.msra.mxu0 0.0
      %1832 = vmatpush.xpose.msra.mxu0 0.0
      %1833 = vmatpush.xpose.msra.mxu0 0.0
      %1834 = vmatpush.xpose.msra.mxu0 %v1824
      %1835 = vmatpush.xpose.msra.mxu0 %v1822
      %1836 = vmatpush.xpose.msra.mxu0 %v1820
      %1837 = vmatpush.xpose.msra.mxu0 %v1818
      %1838 = vmatpush.xpose.msra.mxu0 %v1816
      %1839 = vmatpush.xpose.msra.mxu0 %v1814
      %1840 = vmatpush.xpose.msra.mxu0 %v1812
      %1841 = vmatpush.xpose.msra.mxu0 %v1810
      %1842 = vmatmul.f32.gmra.mxu0 %v1794
      %v1843 = vpop.f32.mrf.mxu0
      %v1844 = vadd.f32 %v1649, %v1843
      %1845 = vmatmul.f32.gmra.mxu0 %v1796
      %v1846 = vpop.f32.mrf.mxu0
      %v1847 = vadd.f32 %v1650, %v1846
      %1848 = vmatmul.f32.gmra.mxu0 %v1798
      %v1849 = vpop.f32.mrf.mxu0
      %v1850 = vadd.f32 %v1651, %v1849
      %1851 = vmatmul.f32.gmra.mxu0 %v1800
      %v1852 = vpop.f32.mrf.mxu0
      %v1853 = vadd.f32 %v1652, %v1852
      %1854 = vmatmul.f32.gmra.mxu0 %v1802
      %v1855 = vpop.f32.mrf.mxu0
      %v1856 = vadd.f32 %v1653, %v1855
      %1857 = vmatmul.f32.gmra.mxu0 %v1804
      %v1858 = vpop.f32.mrf.mxu0
      %v1859 = vadd.f32 %v1654, %v1858
      %1860 = vmatmul.f32.gmra.mxu0 %v1806
      %v1861 = vpop.f32.mrf.mxu0
      %v1862 = vadd.f32 %v1655, %v1861
      %1863 = vmatmul.f32.gmra.mxu0 %v1808
      %v1864 = vpop.f32.mrf.mxu0
      %v1865 = vadd.f32 %v1656, %v1864
      %1866 = vdwg.mxu0
      %1867 = vrot.lane.b32.xlu0 %v463, 120
      %v1868 = vpop.permute.xlu0 %1867
      %1869 = vrot.lane.b32.xlu0 %v466, 120
      %v1870 = vpop.permute.xlu0 %1869
      %1871 = vrot.lane.b32.xlu0 %v469, 120
      %v1872 = vpop.permute.xlu0 %1871
      %1873 = vrot.lane.b32.xlu0 %v472, 120
      %v1874 = vpop.permute.xlu0 %1873
      %1875 = vrot.lane.b32.xlu0 %v475, 120
      %v1876 = vpop.permute.xlu0 %1875
      %1877 = vrot.lane.b32.xlu0 %v478, 120
      %v1878 = vpop.permute.xlu0 %1877
      %1879 = vrot.lane.b32.xlu0 %v481, 120
      %v1880 = vpop.permute.xlu0 %1879
      %1881 = vrot.lane.b32.xlu0 %v484, 120
      %v1882 = vpop.permute.xlu0 %1881
      %1883 = vrot.lane.b32.xlu0 %v463, 88
      %v1884 = vpop.permute.xlu0 %1883
      %1885 = vrot.lane.b32.xlu0 %v466, 88
      %v1886 = vpop.permute.xlu0 %1885
      %1887 = vrot.lane.b32.xlu0 %v469, 88
      %v1888 = vpop.permute.xlu0 %1887
      %1889 = vrot.lane.b32.xlu0 %v472, 88
      %v1890 = vpop.permute.xlu0 %1889
      %1891 = vrot.lane.b32.xlu0 %v475, 88
      %v1892 = vpop.permute.xlu0 %1891
      %1893 = vrot.lane.b32.xlu0 %v478, 88
      %v1894 = vpop.permute.xlu0 %1893
      %1895 = vrot.lane.b32.xlu0 %v481, 88
      %v1896 = vpop.permute.xlu0 %1895
      %1897 = vrot.lane.b32.xlu0 %v484, 88
      %v1898 = vpop.permute.xlu0 %1897
      %v1899 = vsel %vm542, %v1868, 0
      %v1901 = vsel %vm542, %v1870, 0
      %v1903 = vsel %vm542, %v1872, 0
      %v1905 = vsel %vm542, %v1874, 0
      %v1907 = vsel %vm542, %v1876, 0
      %v1909 = vsel %vm542, %v1878, 0
      %v1911 = vsel %vm542, %v1880, 0
      %v1913 = vsel %vm542, %v1882, 0
      %v1915 = vsel %vm542, %v1884, 0
      %v1917 = vsel %vm542, %v1886, 0
      %v1919 = vsel %vm542, %v1888, 0
      %v1921 = vsel %vm542, %v1890, 0
      %v1923 = vsel %vm542, %v1892, 0
      %v1925 = vsel %vm542, %v1894, 0
      %v1927 = vsel %vm542, %v1896, 0
      %v1929 = vsel %vm542, %v1898, 0
      %1931 = vmatpush.xpose.msra.mxu0 0.0
      %1932 = vmatpush.xpose.msra.mxu0 0.0
      %1933 = vmatpush.xpose.msra.mxu0 0.0
      %1934 = vmatpush.xpose.msra.mxu0 0.0
      %1935 = vmatpush.xpose.msra.mxu0 0.0
      %1936 = vmatpush.xpose.msra.mxu0 0.0
      %1937 = vmatpush.xpose.msra.mxu0 0.0
      %1938 = vmatpush.xpose.msra.mxu0 0.0
      %1939 = vmatpush.xpose.msra.mxu0 %v1929
      %1940 = vmatpush.xpose.msra.mxu0 %v1927
      %1941 = vmatpush.xpose.msra.mxu0 %v1925
      %1942 = vmatpush.xpose.msra.mxu0 %v1923
      %1943 = vmatpush.xpose.msra.mxu0 %v1921
      %1944 = vmatpush.xpose.msra.mxu0 %v1919
      %1945 = vmatpush.xpose.msra.mxu0 %v1917
      %1946 = vmatpush.xpose.msra.mxu0 %v1915
      %1947 = vmatmul.f32.gmra.mxu0 %v1899
      %v1948 = vpop.f32.mrf.mxu0
      %v1949 = vadd.f32 %v1649, %v1948
      %1950 = vmatmul.f32.gmra.mxu0 %v1901
      %v1951 = vpop.f32.mrf.mxu0
      %v1952 = vadd.f32 %v1650, %v1951
      %1953 = vmatmul.f32.gmra.mxu0 %v1903
      %v1954 = vpop.f32.mrf.mxu0
      %v1955 = vadd.f32 %v1651, %v1954
      %1956 = vmatmul.f32.gmra.mxu0 %v1905
      %v1957 = vpop.f32.mrf.mxu0
      %v1958 = vadd.f32 %v1652, %v1957
      %1959 = vmatmul.f32.gmra.mxu0 %v1907
      %v1960 = vpop.f32.mrf.mxu0
      %v1961 = vadd.f32 %v1653, %v1960
      %1962 = vmatmul.f32.gmra.mxu0 %v1909
      %v1963 = vpop.f32.mrf.mxu0
      %v1964 = vadd.f32 %v1654, %v1963
      %1965 = vmatmul.f32.gmra.mxu0 %v1911
      %v1966 = vpop.f32.mrf.mxu0
      %v1967 = vadd.f32 %v1655, %v1966
      %1968 = vmatmul.f32.gmra.mxu0 %v1913
      %v1969 = vpop.f32.mrf.mxu0
      %v1970 = vadd.f32 %v1656, %v1969
      %1971 = vdwg.mxu0
      %1972 = vrot.lane.b32.xlu0 %v487, 120
      %v1973 = vpop.permute.xlu0 %1972
      %1974 = vrot.lane.b32.xlu0 %v490, 120
      %v1975 = vpop.permute.xlu0 %1974
      %1976 = vrot.lane.b32.xlu0 %v493, 120
      %v1977 = vpop.permute.xlu0 %1976
      %1978 = vrot.lane.b32.xlu0 %v496, 120
      %v1979 = vpop.permute.xlu0 %1978
      %1980 = vrot.lane.b32.xlu0 %v499, 120
      %v1981 = vpop.permute.xlu0 %1980
      %1982 = vrot.lane.b32.xlu0 %v502, 120
      %v1983 = vpop.permute.xlu0 %1982
      %1984 = vrot.lane.b32.xlu0 %v505, 120
      %v1985 = vpop.permute.xlu0 %1984
      %1986 = vrot.lane.b32.xlu0 %v508, 120
      %v1987 = vpop.permute.xlu0 %1986
      %1988 = vrot.lane.b32.xlu0 %v487, 88
      %v1989 = vpop.permute.xlu0 %1988
      %1990 = vrot.lane.b32.xlu0 %v490, 88
      %v1991 = vpop.permute.xlu0 %1990
      %1992 = vrot.lane.b32.xlu0 %v493, 88
      %v1993 = vpop.permute.xlu0 %1992
      %1994 = vrot.lane.b32.xlu0 %v496, 88
      %v1995 = vpop.permute.xlu0 %1994
      %1996 = vrot.lane.b32.xlu0 %v499, 88
      %v1997 = vpop.permute.xlu0 %1996
      %1998 = vrot.lane.b32.xlu0 %v502, 88
      %v1999 = vpop.permute.xlu0 %1998
      %2000 = vrot.lane.b32.xlu0 %v505, 88
      %v2001 = vpop.permute.xlu0 %2000
      %2002 = vrot.lane.b32.xlu0 %v508, 88
      %v2003 = vpop.permute.xlu0 %2002
      %v2004 = vsel %vm542, %v1973, 0
      %v2006 = vsel %vm542, %v1975, 0
      %v2008 = vsel %vm542, %v1977, 0
      %v2010 = vsel %vm542, %v1979, 0
      %v2012 = vsel %vm542, %v1981, 0
      %v2014 = vsel %vm542, %v1983, 0
      %v2016 = vsel %vm542, %v1985, 0
      %v2018 = vsel %vm542, %v1987, 0
      %v2020 = vsel %vm542, %v1989, 0
      %v2022 = vsel %vm542, %v1991, 0
      %v2024 = vsel %vm542, %v1993, 0
      %v2026 = vsel %vm542, %v1995, 0
      %v2028 = vsel %vm542, %v1997, 0
      %v2030 = vsel %vm542, %v1999, 0
      %v2032 = vsel %vm542, %v2001, 0
      %v2034 = vsel %vm542, %v2003, 0
      %2036 = vmatpush.xpose.msra.mxu0 0.0
      %2037 = vmatpush.xpose.msra.mxu0 0.0
      %2038 = vmatpush.xpose.msra.mxu0 0.0
      %2039 = vmatpush.xpose.msra.mxu0 0.0
      %2040 = vmatpush.xpose.msra.mxu0 0.0
      %2041 = vmatpush.xpose.msra.mxu0 0.0
      %2042 = vmatpush.xpose.msra.mxu0 0.0
      %2043 = vmatpush.xpose.msra.mxu0 0.0
      %2044 = vmatpush.xpose.msra.mxu0 %v2034
      %2045 = vmatpush.xpose.msra.mxu0 %v2032
      %2046 = vmatpush.xpose.msra.mxu0 %v2030
      %2047 = vmatpush.xpose.msra.mxu0 %v2028
      %2048 = vmatpush.xpose.msra.mxu0 %v2026
      %2049 = vmatpush.xpose.msra.mxu0 %v2024
      %2050 = vmatpush.xpose.msra.mxu0 %v2022
      %2051 = vmatpush.xpose.msra.mxu0 %v2020
      %2052 = vmatmul.f32.gmra.mxu0 %v2004
      %v2053 = vpop.f32.mrf.mxu0
      %v2054 = vadd.f32 %v1649, %v2053
      %2055 = vmatmul.f32.gmra.mxu0 %v2006
      %v2056 = vpop.f32.mrf.mxu0
      %v2057 = vadd.f32 %v1650, %v2056
      %2058 = vmatmul.f32.gmra.mxu0 %v2008
      %v2059 = vpop.f32.mrf.mxu0
      %v2060 = vadd.f32 %v1651, %v2059
      %2061 = vmatmul.f32.gmra.mxu0 %v2010
      %v2062 = vpop.f32.mrf.mxu0
      %v2063 = vadd.f32 %v1652, %v2062
      %2064 = vmatmul.f32.gmra.mxu0 %v2012
      %v2065 = vpop.f32.mrf.mxu0
      %v2066 = vadd.f32 %v1653, %v2065
      %2067 = vmatmul.f32.gmra.mxu0 %v2014
      %v2068 = vpop.f32.mrf.mxu0
      %v2069 = vadd.f32 %v1654, %v2068
      %2070 = vmatmul.f32.gmra.mxu0 %v2016
      %v2071 = vpop.f32.mrf.mxu0
      %v2072 = vadd.f32 %v1655, %v2071
      %2073 = vmatmul.f32.gmra.mxu0 %v2018
      %v2074 = vpop.f32.mrf.mxu0
      %v2075 = vadd.f32 %v1656, %v2074
      %2076 = vdwg.mxu0
      %v2077 = vsel %vm907, %v1739, -inf
      %2078 = vmax.xlane.f32.xlu0 %v2077
      %v2079 = vpop.xlane.xlu0 %2078
      %v2080 = vsel %vm907, %v1742, -inf
      %2081 = vmax.xlane.f32.xlu0 %v2080
      %v2082 = vpop.xlane.xlu0 %2081
      %v2083 = vsel %vm907, %v1745, -inf
      %2084 = vmax.xlane.f32.xlu0 %v2083
      %v2085 = vpop.xlane.xlu0 %2084
      %v2086 = vsel %vm907, %v1748, -inf
      %2087 = vmax.xlane.f32.xlu0 %v2086
      %v2088 = vpop.xlane.xlu0 %2087
      %v2089 = vsel %vm907, %v1751, -inf
      %2090 = vmax.xlane.f32.xlu0 %v2089
      %v2091 = vpop.xlane.xlu0 %2090
      %v2092 = vsel %vm907, %v1754, -inf
      %2093 = vmax.xlane.f32.xlu0 %v2092
      %v2094 = vpop.xlane.xlu0 %2093
      %v2095 = vsel %vm907, %v1757, -inf
      %2096 = vmax.xlane.f32.xlu0 %v2095
      %v2097 = vpop.xlane.xlu0 %2096
      %v2098 = vsel %vm907, %v1760, -inf
      %2099 = vmax.xlane.f32.xlu0 %v2098
      %v2100 = vpop.xlane.xlu0 %2099
      %v2101 = vsel %vm907, %v1844, -inf
      %2102 = vmax.xlane.f32.xlu0 %v2101
      %v2103 = vpop.xlane.xlu0 %2102
      %v2104 = vsel %vm907, %v1847, -inf
      %2105 = vmax.xlane.f32.xlu0 %v2104
      %v2106 = vpop.xlane.xlu0 %2105
      %v2107 = vsel %vm907, %v1850, -inf
      %2108 = vmax.xlane.f32.xlu0 %v2107
      %v2109 = vpop.xlane.xlu0 %2108
      %v2110 = vsel %vm907, %v1853, -inf
      %2111 = vmax.xlane.f32.xlu0 %v2110
      %v2112 = vpop.xlane.xlu0 %2111
      %v2113 = vsel %vm907, %v1856, -inf
      %2114 = vmax.xlane.f32.xlu0 %v2113
      %v2115 = vpop.xlane.xlu0 %2114
      %v2116 = vsel %vm907, %v1859, -inf
      %2117 = vmax.xlane.f32.xlu0 %v2116
      %v2118 = vpop.xlane.xlu0 %2117
      %v2119 = vsel %vm907, %v1862, -inf
      %2120 = vmax.xlane.f32.xlu0 %v2119
      %v2121 = vpop.xlane.xlu0 %2120
      %v2122 = vsel %vm907, %v1865, -inf
      %2123 = vmax.xlane.f32.xlu0 %v2122
      %v2124 = vpop.xlane.xlu0 %2123
      %v2125 = vsel %vm907, %v1949, -inf
      %2126 = vmax.xlane.f32.xlu0 %v2125
      %v2127 = vpop.xlane.xlu0 %2126
      %v2128 = vsel %vm907, %v1952, -inf
      %2129 = vmax.xlane.f32.xlu0 %v2128
      %v2130 = vpop.xlane.xlu0 %2129
      %v2131 = vsel %vm907, %v1955, -inf
      %2132 = vmax.xlane.f32.xlu0 %v2131
      %v2133 = vpop.xlane.xlu0 %2132
      %v2134 = vsel %vm907, %v1958, -inf
      %2135 = vmax.xlane.f32.xlu0 %v2134
      %v2136 = vpop.xlane.xlu0 %2135
      %v2137 = vsel %vm907, %v1961, -inf
      %2138 = vmax.xlane.f32.xlu0 %v2137
      %v2139 = vpop.xlane.xlu0 %2138
      %v2140 = vsel %vm907, %v1964, -inf
      %2141 = vmax.xlane.f32.xlu0 %v2140
      %v2142 = vpop.xlane.xlu0 %2141
      %v2143 = vsel %vm907, %v1967, -inf
      %2144 = vmax.xlane.f32.xlu0 %v2143
      %v2145 = vpop.xlane.xlu0 %2144
      %v2146 = vsel %vm907, %v1970, -inf
      %2147 = vmax.xlane.f32.xlu0 %v2146
      %v2148 = vpop.xlane.xlu0 %2147
      %v2149 = vsel %vm907, %v2054, -inf
      %2150 = vmax.xlane.f32.xlu0 %v2149
      %v2151 = vpop.xlane.xlu0 %2150
      %v2152 = vsel %vm907, %v2057, -inf
      %2153 = vmax.xlane.f32.xlu0 %v2152
      %v2154 = vpop.xlane.xlu0 %2153
      %v2155 = vsel %vm907, %v2060, -inf
      %2156 = vmax.xlane.f32.xlu0 %v2155
      %v2157 = vpop.xlane.xlu0 %2156
      %v2158 = vsel %vm907, %v2063, -inf
      %2159 = vmax.xlane.f32.xlu0 %v2158
      %v2160 = vpop.xlane.xlu0 %2159
      %v2161 = vsel %vm907, %v2066, -inf
      %2162 = vmax.xlane.f32.xlu0 %v2161
      %v2163 = vpop.xlane.xlu0 %2162
      %v2164 = vsel %vm907, %v2069, -inf
      %2165 = vmax.xlane.f32.xlu0 %v2164
      %v2166 = vpop.xlane.xlu0 %2165
      %v2167 = vsel %vm907, %v2072, -inf
      %2168 = vmax.xlane.f32.xlu0 %v2167
      %v2169 = vpop.xlane.xlu0 %2168
      %v2170 = vsel %vm907, %v2075, -inf
      %2171 = vmax.xlane.f32.xlu0 %v2170
      %v2172 = vpop.xlane.xlu0 %2171
      %v2173 = vsub.f32 %v1739, %v2079
      %v2174 = vsub.f32 %v1742, %v2082
      %v2175 = vsub.f32 %v1745, %v2085
      %v2176 = vsub.f32 %v1748, %v2088
      %v2177 = vsub.f32 %v1751, %v2091
      %v2178 = vsub.f32 %v1754, %v2094
      %v2179 = vsub.f32 %v1757, %v2097
      %v2180 = vsub.f32 %v1760, %v2100
      %v2181 = vsub.f32 %v1844, %v2103
      %v2182 = vsub.f32 %v1847, %v2106
      %v2183 = vsub.f32 %v1850, %v2109
      %v2184 = vsub.f32 %v1853, %v2112
      %v2185 = vsub.f32 %v1856, %v2115
      %v2186 = vsub.f32 %v1859, %v2118
      %v2187 = vsub.f32 %v1862, %v2121
      %v2188 = vsub.f32 %v1865, %v2124
      %v2189 = vsub.f32 %v1949, %v2127
      %v2190 = vsub.f32 %v1952, %v2130
      %v2191 = vsub.f32 %v1955, %v2133
      %v2192 = vsub.f32 %v1958, %v2136
      %v2193 = vsub.f32 %v1961, %v2139
      %v2194 = vsub.f32 %v1964, %v2142
      %v2195 = vsub.f32 %v1967, %v2145
      %v2196 = vsub.f32 %v1970, %v2148
      %v2197 = vsub.f32 %v2054, %v2151
      %v2198 = vsub.f32 %v2057, %v2154
      %v2199 = vsub.f32 %v2060, %v2157
      %v2200 = vsub.f32 %v2063, %v2160
      %v2201 = vsub.f32 %v2066, %v2163
      %v2202 = vsub.f32 %v2069, %v2166
      %v2203 = vsub.f32 %v2072, %v2169
      %v2204 = vsub.f32 %v2075, %v2172
      %v2205 = vmul.f32 %v2173, 1.442695
      %v2206 = vpow.pop %v2205
      %v2207 = vmul.f32 %v2174, 1.442695
      %v2208 = vpow.pop %v2207
      %v2209 = vmul.f32 %v2175, 1.442695
      %v2210 = vpow.pop %v2209
      %v2211 = vmul.f32 %v2176, 1.442695
      %v2212 = vpow.pop %v2211
      %v2213 = vmul.f32 %v2177, 1.442695
      %v2214 = vpow.pop %v2213
      %v2215 = vmul.f32 %v2178, 1.442695
      %v2216 = vpow.pop %v2215
      %v2217 = vmul.f32 %v2179, 1.442695
      %v2218 = vpow.pop %v2217
      %v2219 = vmul.f32 %v2180, 1.442695
      %v2220 = vpow.pop %v2219
      %v2221 = vmul.f32 %v2181, 1.442695
      %v2222 = vpow.pop %v2221
      %v2223 = vmul.f32 %v2182, 1.442695
      %v2224 = vpow.pop %v2223
      %v2225 = vmul.f32 %v2183, 1.442695
      %v2226 = vpow.pop %v2225
      %v2227 = vmul.f32 %v2184, 1.442695
      %v2228 = vpow.pop %v2227
      %v2229 = vmul.f32 %v2185, 1.442695
      %v2230 = vpow.pop %v2229
      %v2231 = vmul.f32 %v2186, 1.442695
      %v2232 = vpow.pop %v2231
      %v2233 = vmul.f32 %v2187, 1.442695
      %v2234 = vpow.pop %v2233
      %v2235 = vmul.f32 %v2188, 1.442695
      %v2236 = vpow.pop %v2235
      %v2237 = vmul.f32 %v2189, 1.442695
      %v2238 = vpow.pop %v2237
      %v2239 = vmul.f32 %v2190, 1.442695
      %v2240 = vpow.pop %v2239
      %v2241 = vmul.f32 %v2191, 1.442695
      %v2242 = vpow.pop %v2241
      %v2243 = vmul.f32 %v2192, 1.442695
      %v2244 = vpow.pop %v2243
      %v2245 = vmul.f32 %v2193, 1.442695
      %v2246 = vpow.pop %v2245
      %v2247 = vmul.f32 %v2194, 1.442695
      %v2248 = vpow.pop %v2247
      %v2249 = vmul.f32 %v2195, 1.442695
      %v2250 = vpow.pop %v2249
      %v2251 = vmul.f32 %v2196, 1.442695
      %v2252 = vpow.pop %v2251
      %v2253 = vmul.f32 %v2197, 1.442695
      %v2254 = vpow.pop %v2253
      %v2255 = vmul.f32 %v2198, 1.442695
      %v2256 = vpow.pop %v2255
      %v2257 = vmul.f32 %v2199, 1.442695
      %v2258 = vpow.pop %v2257
      %v2259 = vmul.f32 %v2200, 1.442695
      %v2260 = vpow.pop %v2259
      %v2261 = vmul.f32 %v2201, 1.442695
      %v2262 = vpow.pop %v2261
      %v2263 = vmul.f32 %v2202, 1.442695
      %v2264 = vpow.pop %v2263
      %v2265 = vmul.f32 %v2203, 1.442695
      %v2266 = vpow.pop %v2265
      %v2267 = vmul.f32 %v2204, 1.442695
      %v2268 = vpow.pop %v2267
      %v2269 = vsel %vm907, %v2206, 0.0
      %2270 = vadd.xlane.f32.xlu0 %v2269
      %v2271 = vpop.xlane.xlu0 %2270
      %v2272 = vsel %vm907, %v2208, 0.0
      %2273 = vadd.xlane.f32.xlu0 %v2272
      %v2274 = vpop.xlane.xlu0 %2273
      %v2275 = vsel %vm907, %v2210, 0.0
      %2276 = vadd.xlane.f32.xlu0 %v2275
      %v2277 = vpop.xlane.xlu0 %2276
      %v2278 = vsel %vm907, %v2212, 0.0
      %2279 = vadd.xlane.f32.xlu0 %v2278
      %v2280 = vpop.xlane.xlu0 %2279
      %v2281 = vsel %vm907, %v2214, 0.0
      %2282 = vadd.xlane.f32.xlu0 %v2281
      %v2283 = vpop.xlane.xlu0 %2282
      %v2284 = vsel %vm907, %v2216, 0.0
      %2285 = vadd.xlane.f32.xlu0 %v2284
      %v2286 = vpop.xlane.xlu0 %2285
      %v2287 = vsel %vm907, %v2218, 0.0
      %2288 = vadd.xlane.f32.xlu0 %v2287
      %v2289 = vpop.xlane.xlu0 %2288
      %v2290 = vsel %vm907, %v2220, 0.0
      %2291 = vadd.xlane.f32.xlu0 %v2290
      %v2292 = vpop.xlane.xlu0 %2291
      %v2293 = vsel %vm907, %v2222, 0.0
      %2294 = vadd.xlane.f32.xlu0 %v2293
      %v2295 = vpop.xlane.xlu0 %2294
      %v2296 = vsel %vm907, %v2224, 0.0
      %2297 = vadd.xlane.f32.xlu0 %v2296
      %v2298 = vpop.xlane.xlu0 %2297
      %v2299 = vsel %vm907, %v2226, 0.0
      %2300 = vadd.xlane.f32.xlu0 %v2299
      %v2301 = vpop.xlane.xlu0 %2300
      %v2302 = vsel %vm907, %v2228, 0.0
      %2303 = vadd.xlane.f32.xlu0 %v2302
      %v2304 = vpop.xlane.xlu0 %2303
      %v2305 = vsel %vm907, %v2230, 0.0
      %2306 = vadd.xlane.f32.xlu0 %v2305
      %v2307 = vpop.xlane.xlu0 %2306
      %v2308 = vsel %vm907, %v2232, 0.0
      %2309 = vadd.xlane.f32.xlu0 %v2308
      %v2310 = vpop.xlane.xlu0 %2309
      %v2311 = vsel %vm907, %v2234, 0.0
      %2312 = vadd.xlane.f32.xlu0 %v2311
      %v2313 = vpop.xlane.xlu0 %2312
      %v2314 = vsel %vm907, %v2236, 0.0
      %2315 = vadd.xlane.f32.xlu0 %v2314
      %v2316 = vpop.xlane.xlu0 %2315
      %v2317 = vsel %vm907, %v2238, 0.0
      %2318 = vadd.xlane.f32.xlu0 %v2317
      %v2319 = vpop.xlane.xlu0 %2318
      %v2320 = vsel %vm907, %v2240, 0.0
      %2321 = vadd.xlane.f32.xlu0 %v2320
      %v2322 = vpop.xlane.xlu0 %2321
      %v2323 = vsel %vm907, %v2242, 0.0
      %2324 = vadd.xlane.f32.xlu0 %v2323
      %v2325 = vpop.xlane.xlu0 %2324
      %v2326 = vsel %vm907, %v2244, 0.0
      %2327 = vadd.xlane.f32.xlu0 %v2326
      %v2328 = vpop.xlane.xlu0 %2327
      %v2329 = vsel %vm907, %v2246, 0.0
      %2330 = vadd.xlane.f32.xlu0 %v2329
      %v2331 = vpop.xlane.xlu0 %2330
      %v2332 = vsel %vm907, %v2248, 0.0
      %2333 = vadd.xlane.f32.xlu0 %v2332
      %v2334 = vpop.xlane.xlu0 %2333
      %v2335 = vsel %vm907, %v2250, 0.0
      %2336 = vadd.xlane.f32.xlu0 %v2335
      %v2337 = vpop.xlane.xlu0 %2336
      %v2338 = vsel %vm907, %v2252, 0.0
      %2339 = vadd.xlane.f32.xlu0 %v2338
      %v2340 = vpop.xlane.xlu0 %2339
      %v2341 = vsel %vm907, %v2254, 0.0
      %2342 = vadd.xlane.f32.xlu0 %v2341
      %v2343 = vpop.xlane.xlu0 %2342
      %v2344 = vsel %vm907, %v2256, 0.0
      %2345 = vadd.xlane.f32.xlu0 %v2344
      %v2346 = vpop.xlane.xlu0 %2345
      %v2347 = vsel %vm907, %v2258, 0.0
      %2348 = vadd.xlane.f32.xlu0 %v2347
      %v2349 = vpop.xlane.xlu0 %2348
      %v2350 = vsel %vm907, %v2260, 0.0
      %2351 = vadd.xlane.f32.xlu0 %v2350
      %v2352 = vpop.xlane.xlu0 %2351
      %v2353 = vsel %vm907, %v2262, 0.0
      %2354 = vadd.xlane.f32.xlu0 %v2353
      %v2355 = vpop.xlane.xlu0 %2354
      %v2356 = vsel %vm907, %v2264, 0.0
      %2357 = vadd.xlane.f32.xlu0 %v2356
      %v2358 = vpop.xlane.xlu0 %2357
      %v2359 = vsel %vm907, %v2266, 0.0
      %2360 = vadd.xlane.f32.xlu0 %v2359
      %v2361 = vpop.xlane.xlu0 %2360
      %v2362 = vsel %vm907, %v2268, 0.0
      %2363 = vadd.xlane.f32.xlu0 %v2362
      %v2364 = vpop.xlane.xlu0 %2363
      %v2365 = vrcp.pop %v2271
      %v2366 = vrcp.pop %v2274
      %v2367 = vrcp.pop %v2277
      %v2368 = vrcp.pop %v2280
      %v2369 = vrcp.pop %v2283
      %v2370 = vrcp.pop %v2286
      %v2371 = vrcp.pop %v2289
      %v2372 = vrcp.pop %v2292
      %v2373 = vrcp.pop %v2295
      %v2374 = vrcp.pop %v2298
      %v2375 = vrcp.pop %v2301
      %v2376 = vrcp.pop %v2304
      %v2377 = vrcp.pop %v2307
      %v2378 = vrcp.pop %v2310
      %v2379 = vrcp.pop %v2313
      %v2380 = vrcp.pop %v2316
      %v2381 = vrcp.pop %v2319
      %v2382 = vrcp.pop %v2322
      %v2383 = vrcp.pop %v2325
      %v2384 = vrcp.pop %v2328
      %v2385 = vrcp.pop %v2331
      %v2386 = vrcp.pop %v2334
      %v2387 = vrcp.pop %v2337
      %v2388 = vrcp.pop %v2340
      %v2389 = vrcp.pop %v2343
      %v2390 = vrcp.pop %v2346
      %v2391 = vrcp.pop %v2349
      %v2392 = vrcp.pop %v2352
      %v2393 = vrcp.pop %v2355
      %v2394 = vrcp.pop %v2358
      %v2395 = vrcp.pop %v2361
      %v2396 = vrcp.pop %v2364
      %v2397 = vmul.f32 %v2206, %v2365
      %v2398 = vmul.f32 %v2208, %v2366
      %v2399 = vmul.f32 %v2210, %v2367
      %v2400 = vmul.f32 %v2212, %v2368
      %v2401 = vmul.f32 %v2214, %v2369
      %v2402 = vmul.f32 %v2216, %v2370
      %v2403 = vmul.f32 %v2218, %v2371
      %v2404 = vmul.f32 %v2220, %v2372
      %v2405 = vmul.f32 %v2222, %v2373
      %v2406 = vmul.f32 %v2224, %v2374
      %v2407 = vmul.f32 %v2226, %v2375
      %v2408 = vmul.f32 %v2228, %v2376
      %v2409 = vmul.f32 %v2230, %v2377
      %v2410 = vmul.f32 %v2232, %v2378
      %v2411 = vmul.f32 %v2234, %v2379
      %v2412 = vmul.f32 %v2236, %v2380
      %v2413 = vmul.f32 %v2238, %v2381
      %v2414 = vmul.f32 %v2240, %v2382
      %v2415 = vmul.f32 %v2242, %v2383
      %v2416 = vmul.f32 %v2244, %v2384
      %v2417 = vmul.f32 %v2246, %v2385
      %v2418 = vmul.f32 %v2248, %v2386
      %v2419 = vmul.f32 %v2250, %v2387
      %v2420 = vmul.f32 %v2252, %v2388
      %v2421 = vmul.f32 %v2254, %v2389
      %v2422 = vmul.f32 %v2256, %v2390
      %v2423 = vmul.f32 %v2258, %v2391
      %v2424 = vmul.f32 %v2260, %v2392
      %v2425 = vmul.f32 %v2262, %v2393
      %v2426 = vmul.f32 %v2264, %v2394
      %v2427 = vmul.f32 %v2266, %v2395
      %v2428 = vmul.f32 %v2268, %v2396
      %2429 = vrot.lane.b32.xlu0 %v415, 56
      %v2430 = vpop.permute.xlu0 %2429
      %2431 = vrot.lane.b32.xlu0 %v418, 56
      %v2432 = vpop.permute.xlu0 %2431
      %2433 = vrot.lane.b32.xlu0 %v421, 56
      %v2434 = vpop.permute.xlu0 %2433
      %2435 = vrot.lane.b32.xlu0 %v424, 56
      %v2436 = vpop.permute.xlu0 %2435
      %2437 = vrot.lane.b32.xlu0 %v427, 56
      %v2438 = vpop.permute.xlu0 %2437
      %2439 = vrot.lane.b32.xlu0 %v430, 56
      %v2440 = vpop.permute.xlu0 %2439
      %2441 = vrot.lane.b32.xlu0 %v433, 56
      %v2442 = vpop.permute.xlu0 %2441
      %2443 = vrot.lane.b32.xlu0 %v436, 56
      %v2444 = vpop.permute.xlu0 %2443
      %v2454 = vsel %vm907, %v2397, 0
      %v2457 = vsel %vm907, %v2398, 0
      %v2460 = vsel %vm907, %v2399, 0
      %v2463 = vsel %vm907, %v2400, 0
      %v2466 = vsel %vm907, %v2401, 0
      %v2469 = vsel %vm907, %v2402, 0
      %v2472 = vsel %vm907, %v2403, 0
      %v2475 = vsel %vm907, %v2404, 0
      %2477 = vmatpush.msra.mxu0 0.0
      %2478 = vmatpush.msra.mxu0 0.0
      %2479 = vmatpush.msra.mxu0 0.0
      %2480 = vmatpush.msra.mxu0 0.0
      %2481 = vmatpush.msra.mxu0 0.0
      %2482 = vmatpush.msra.mxu0 0.0
      %2483 = vmatpush.msra.mxu0 0.0
      %2484 = vmatpush.msra.mxu0 0.0
      %2485 = vmatpush.msra.mxu0 %v2444
      %2486 = vmatpush.msra.mxu0 %v2442
      %2487 = vmatpush.msra.mxu0 %v2440
      %2488 = vmatpush.msra.mxu0 %v2438
      %2489 = vmatpush.msra.mxu0 %v2436
      %2490 = vmatpush.msra.mxu0 %v2434
      %2491 = vmatpush.msra.mxu0 %v2432
      %2492 = vmatpush.msra.mxu0 %v2430
      %2493 = vmatmul.f32.gmra.mxu0 %v2454
      %v2494 = vpop.f32.mrf.mxu0
      %v2495 = vadd.f32 0.0, %v2494
      %2496 = vmatmul.f32.gmra.mxu0 %v2457
      %v2497 = vpop.f32.mrf.mxu0
      %v2498 = vadd.f32 0.0, %v2497
      %2499 = vmatmul.f32.gmra.mxu0 %v2460
      %v2500 = vpop.f32.mrf.mxu0
      %v2501 = vadd.f32 0.0, %v2500
      %2502 = vmatmul.f32.gmra.mxu0 %v2463
      %v2503 = vpop.f32.mrf.mxu0
      %v2504 = vadd.f32 0.0, %v2503
      %2505 = vmatmul.f32.gmra.mxu0 %v2466
      %v2506 = vpop.f32.mrf.mxu0
      %v2507 = vadd.f32 0.0, %v2506
      %2508 = vmatmul.f32.gmra.mxu0 %v2469
      %v2509 = vpop.f32.mrf.mxu0
      %v2510 = vadd.f32 0.0, %v2509
      %2511 = vmatmul.f32.gmra.mxu0 %v2472
      %v2512 = vpop.f32.mrf.mxu0
      %v2513 = vadd.f32 0.0, %v2512
      %2514 = vmatmul.f32.gmra.mxu0 %v2475
      %v2515 = vpop.f32.mrf.mxu0
      %v2516 = vadd.f32 0.0, %v2515
      %2517 = vdwg.mxu0
      %2518 = vrot.lane.b32.xlu0 %v439, 56
      %v2519 = vpop.permute.xlu0 %2518
      %2520 = vrot.lane.b32.xlu0 %v442, 56
      %v2521 = vpop.permute.xlu0 %2520
      %2522 = vrot.lane.b32.xlu0 %v445, 56
      %v2523 = vpop.permute.xlu0 %2522
      %2524 = vrot.lane.b32.xlu0 %v448, 56
      %v2525 = vpop.permute.xlu0 %2524
      %2526 = vrot.lane.b32.xlu0 %v451, 56
      %v2527 = vpop.permute.xlu0 %2526
      %2528 = vrot.lane.b32.xlu0 %v454, 56
      %v2529 = vpop.permute.xlu0 %2528
      %2530 = vrot.lane.b32.xlu0 %v457, 56
      %v2531 = vpop.permute.xlu0 %2530
      %2532 = vrot.lane.b32.xlu0 %v460, 56
      %v2533 = vpop.permute.xlu0 %2532
      %v2543 = vsel %vm907, %v2405, 0
      %v2546 = vsel %vm907, %v2406, 0
      %v2549 = vsel %vm907, %v2407, 0
      %v2552 = vsel %vm907, %v2408, 0
      %v2555 = vsel %vm907, %v2409, 0
      %v2558 = vsel %vm907, %v2410, 0
      %v2561 = vsel %vm907, %v2411, 0
      %v2564 = vsel %vm907, %v2412, 0
      %2566 = vmatpush.msra.mxu0 0.0
      %2567 = vmatpush.msra.mxu0 0.0
      %2568 = vmatpush.msra.mxu0 0.0
      %2569 = vmatpush.msra.mxu0 0.0
      %2570 = vmatpush.msra.mxu0 0.0
      %2571 = vmatpush.msra.mxu0 0.0
      %2572 = vmatpush.msra.mxu0 0.0
      %2573 = vmatpush.msra.mxu0 0.0
      %2574 = vmatpush.msra.mxu0 %v2533
      %2575 = vmatpush.msra.mxu0 %v2531
      %2576 = vmatpush.msra.mxu0 %v2529
      %2577 = vmatpush.msra.mxu0 %v2527
      %2578 = vmatpush.msra.mxu0 %v2525
      %2579 = vmatpush.msra.mxu0 %v2523
      %2580 = vmatpush.msra.mxu0 %v2521
      %2581 = vmatpush.msra.mxu0 %v2519
      %2582 = vmatmul.f32.gmra.mxu0 %v2543
      %v2583 = vpop.f32.mrf.mxu0
      %v2584 = vadd.f32 0.0, %v2583
      %2585 = vmatmul.f32.gmra.mxu0 %v2546
      %v2586 = vpop.f32.mrf.mxu0
      %v2587 = vadd.f32 0.0, %v2586
      %2588 = vmatmul.f32.gmra.mxu0 %v2549
      %v2589 = vpop.f32.mrf.mxu0
      %v2590 = vadd.f32 0.0, %v2589
      %2591 = vmatmul.f32.gmra.mxu0 %v2552
      %v2592 = vpop.f32.mrf.mxu0
      %v2593 = vadd.f32 0.0, %v2592
      %2594 = vmatmul.f32.gmra.mxu0 %v2555
      %v2595 = vpop.f32.mrf.mxu0
      %v2596 = vadd.f32 0.0, %v2595
      %2597 = vmatmul.f32.gmra.mxu0 %v2558
      %v2598 = vpop.f32.mrf.mxu0
      %v2599 = vadd.f32 0.0, %v2598
      %2600 = vmatmul.f32.gmra.mxu0 %v2561
      %v2601 = vpop.f32.mrf.mxu0
      %v2602 = vadd.f32 0.0, %v2601
      %2603 = vmatmul.f32.gmra.mxu0 %v2564
      %v2604 = vpop.f32.mrf.mxu0
      %v2605 = vadd.f32 0.0, %v2604
      %2606 = vdwg.mxu0
      %2607 = vrot.lane.b32.xlu0 %v463, 56
      %v2608 = vpop.permute.xlu0 %2607
      %2609 = vrot.lane.b32.xlu0 %v466, 56
      %v2610 = vpop.permute.xlu0 %2609
      %2611 = vrot.lane.b32.xlu0 %v469, 56
      %v2612 = vpop.permute.xlu0 %2611
      %2613 = vrot.lane.b32.xlu0 %v472, 56
      %v2614 = vpop.permute.xlu0 %2613
      %2615 = vrot.lane.b32.xlu0 %v475, 56
      %v2616 = vpop.permute.xlu0 %2615
      %2617 = vrot.lane.b32.xlu0 %v478, 56
      %v2618 = vpop.permute.xlu0 %2617
      %2619 = vrot.lane.b32.xlu0 %v481, 56
      %v2620 = vpop.permute.xlu0 %2619
      %2621 = vrot.lane.b32.xlu0 %v484, 56
      %v2622 = vpop.permute.xlu0 %2621
      %v2632 = vsel %vm907, %v2413, 0
      %v2635 = vsel %vm907, %v2414, 0
      %v2638 = vsel %vm907, %v2415, 0
      %v2641 = vsel %vm907, %v2416, 0
      %v2644 = vsel %vm907, %v2417, 0
      %v2647 = vsel %vm907, %v2418, 0
      %v2650 = vsel %vm907, %v2419, 0
      %v2653 = vsel %vm907, %v2420, 0
      %2655 = vmatpush.msra.mxu0 0.0
      %2656 = vmatpush.msra.mxu0 0.0
      %2657 = vmatpush.msra.mxu0 0.0
      %2658 = vmatpush.msra.mxu0 0.0
      %2659 = vmatpush.msra.mxu0 0.0
      %2660 = vmatpush.msra.mxu0 0.0
      %2661 = vmatpush.msra.mxu0 0.0
      %2662 = vmatpush.msra.mxu0 0.0
      %2663 = vmatpush.msra.mxu0 %v2622
      %2664 = vmatpush.msra.mxu0 %v2620
      %2665 = vmatpush.msra.mxu0 %v2618
      %2666 = vmatpush.msra.mxu0 %v2616
      %2667 = vmatpush.msra.mxu0 %v2614
      %2668 = vmatpush.msra.mxu0 %v2612
      %2669 = vmatpush.msra.mxu0 %v2610
      %2670 = vmatpush.msra.mxu0 %v2608
      %2671 = vmatmul.f32.gmra.mxu0 %v2632
      %v2672 = vpop.f32.mrf.mxu0
      %v2673 = vadd.f32 0.0, %v2672
      %2674 = vmatmul.f32.gmra.mxu0 %v2635
      %v2675 = vpop.f32.mrf.mxu0
      %v2676 = vadd.f32 0.0, %v2675
      %2677 = vmatmul.f32.gmra.mxu0 %v2638
      %v2678 = vpop.f32.mrf.mxu0
      %v2679 = vadd.f32 0.0, %v2678
      %2680 = vmatmul.f32.gmra.mxu0 %v2641
      %v2681 = vpop.f32.mrf.mxu0
      %v2682 = vadd.f32 0.0, %v2681
      %2683 = vmatmul.f32.gmra.mxu0 %v2644
      %v2684 = vpop.f32.mrf.mxu0
      %v2685 = vadd.f32 0.0, %v2684
      %2686 = vmatmul.f32.gmra.mxu0 %v2647
      %v2687 = vpop.f32.mrf.mxu0
      %v2688 = vadd.f32 0.0, %v2687
      %2689 = vmatmul.f32.gmra.mxu0 %v2650
      %v2690 = vpop.f32.mrf.mxu0
      %v2691 = vadd.f32 0.0, %v2690
      %2692 = vmatmul.f32.gmra.mxu0 %v2653
      %v2693 = vpop.f32.mrf.mxu0
      %v2694 = vadd.f32 0.0, %v2693
      %2695 = vdwg.mxu0
      %2696 = vrot.lane.b32.xlu0 %v487, 56
      %v2697 = vpop.permute.xlu0 %2696
      %2698 = vrot.lane.b32.xlu0 %v490, 56
      %v2699 = vpop.permute.xlu0 %2698
      %2700 = vrot.lane.b32.xlu0 %v493, 56
      %v2701 = vpop.permute.xlu0 %2700
      %2702 = vrot.lane.b32.xlu0 %v496, 56
      %v2703 = vpop.permute.xlu0 %2702
      %2704 = vrot.lane.b32.xlu0 %v499, 56
      %v2705 = vpop.permute.xlu0 %2704
      %2706 = vrot.lane.b32.xlu0 %v502, 56
      %v2707 = vpop.permute.xlu0 %2706
      %2708 = vrot.lane.b32.xlu0 %v505, 56
      %v2709 = vpop.permute.xlu0 %2708
      %2710 = vrot.lane.b32.xlu0 %v508, 56
      %v2711 = vpop.permute.xlu0 %2710
      %v2721 = vsel %vm907, %v2421, 0
      %v2724 = vsel %vm907, %v2422, 0
      %v2727 = vsel %vm907, %v2423, 0
      %v2730 = vsel %vm907, %v2424, 0
      %v2733 = vsel %vm907, %v2425, 0
      %v2736 = vsel %vm907, %v2426, 0
      %v2739 = vsel %vm907, %v2427, 0
      %v2742 = vsel %vm907, %v2428, 0
      %2744 = vmatpush.msra.mxu0 0.0
      %2745 = vmatpush.msra.mxu0 0.0
      %2746 = vmatpush.msra.mxu0 0.0
      %2747 = vmatpush.msra.mxu0 0.0
      %2748 = vmatpush.msra.mxu0 0.0
      %2749 = vmatpush.msra.mxu0 0.0
      %2750 = vmatpush.msra.mxu0 0.0
      %2751 = vmatpush.msra.mxu0 0.0
      %2752 = vmatpush.msra.mxu0 %v2711
      %2753 = vmatpush.msra.mxu0 %v2709
      %2754 = vmatpush.msra.mxu0 %v2707
      %2755 = vmatpush.msra.mxu0 %v2705
      %2756 = vmatpush.msra.mxu0 %v2703
      %2757 = vmatpush.msra.mxu0 %v2701
      %2758 = vmatpush.msra.mxu0 %v2699
      %2759 = vmatpush.msra.mxu0 %v2697
      %2760 = vmatmul.f32.gmra.mxu0 %v2721
      %v2761 = vpop.f32.mrf.mxu0
      %v2762 = vadd.f32 0.0, %v2761
      %2763 = vmatmul.f32.gmra.mxu0 %v2724
      %v2764 = vpop.f32.mrf.mxu0
      %v2765 = vadd.f32 0.0, %v2764
      %2766 = vmatmul.f32.gmra.mxu0 %v2727
      %v2767 = vpop.f32.mrf.mxu0
      %v2768 = vadd.f32 0.0, %v2767
      %2769 = vmatmul.f32.gmra.mxu0 %v2730
      %v2770 = vpop.f32.mrf.mxu0
      %v2771 = vadd.f32 0.0, %v2770
      %2772 = vmatmul.f32.gmra.mxu0 %v2733
      %v2773 = vpop.f32.mrf.mxu0
      %v2774 = vadd.f32 0.0, %v2773
      %2775 = vmatmul.f32.gmra.mxu0 %v2736
      %v2776 = vpop.f32.mrf.mxu0
      %v2777 = vadd.f32 0.0, %v2776
      %2778 = vmatmul.f32.gmra.mxu0 %v2739
      %v2779 = vpop.f32.mrf.mxu0
      %v2780 = vadd.f32 0.0, %v2779
      %2781 = vmatmul.f32.gmra.mxu0 %v2742
      %v2782 = vpop.f32.mrf.mxu0
      %v2783 = vadd.f32 0.0, %v2782
      %2784 = vdwg.mxu0
      %2817 = vrot.lane.b32.xlu0 %v2495, 8
      %v2818 = vpop.permute.xlu0 %2817
      %2819 = vrot.lane.b32.xlu0 %v2498, 8
      %v2820 = vpop.permute.xlu0 %2819
      %2821 = vrot.lane.b32.xlu0 %v2501, 8
      %v2822 = vpop.permute.xlu0 %2821
      %2823 = vrot.lane.b32.xlu0 %v2504, 8
      %v2824 = vpop.permute.xlu0 %2823
      %2825 = vrot.lane.b32.xlu0 %v2507, 8
      %v2826 = vpop.permute.xlu0 %2825
      %2827 = vrot.lane.b32.xlu0 %v2510, 8
      %v2828 = vpop.permute.xlu0 %2827
      %2829 = vrot.lane.b32.xlu0 %v2513, 8
      %v2830 = vpop.permute.xlu0 %2829
      %2831 = vrot.lane.b32.xlu0 %v2516, 8
      %v2832 = vpop.permute.xlu0 %2831
      %2833 = vrot.lane.b32.xlu0 %v2584, 8
      %v2834 = vpop.permute.xlu0 %2833
      %2835 = vrot.lane.b32.xlu0 %v2587, 8
      %v2836 = vpop.permute.xlu0 %2835
      %2837 = vrot.lane.b32.xlu0 %v2590, 8
      %v2838 = vpop.permute.xlu0 %2837
      %2839 = vrot.lane.b32.xlu0 %v2593, 8
      %v2840 = vpop.permute.xlu0 %2839
      %2841 = vrot.lane.b32.xlu0 %v2596, 8
      %v2842 = vpop.permute.xlu0 %2841
      %2843 = vrot.lane.b32.xlu0 %v2599, 8
      %v2844 = vpop.permute.xlu0 %2843
      %2845 = vrot.lane.b32.xlu0 %v2602, 8
      %v2846 = vpop.permute.xlu0 %2845
      %2847 = vrot.lane.b32.xlu0 %v2605, 8
      %v2848 = vpop.permute.xlu0 %2847
      %2849 = vrot.lane.b32.xlu0 %v2673, 8
      %v2850 = vpop.permute.xlu0 %2849
      %2851 = vrot.lane.b32.xlu0 %v2676, 8
      %v2852 = vpop.permute.xlu0 %2851
      %2853 = vrot.lane.b32.xlu0 %v2679, 8
      %v2854 = vpop.permute.xlu0 %2853
      %2855 = vrot.lane.b32.xlu0 %v2682, 8
      %v2856 = vpop.permute.xlu0 %2855
      %2857 = vrot.lane.b32.xlu0 %v2685, 8
      %v2858 = vpop.permute.xlu0 %2857
      %2859 = vrot.lane.b32.xlu0 %v2688, 8
      %v2860 = vpop.permute.xlu0 %2859
      %2861 = vrot.lane.b32.xlu0 %v2691, 8
      %v2862 = vpop.permute.xlu0 %2861
      %2863 = vrot.lane.b32.xlu0 %v2694, 8
      %v2864 = vpop.permute.xlu0 %2863
      %2865 = vrot.lane.b32.xlu0 %v2762, 8
      %v2866 = vpop.permute.xlu0 %2865
      %2867 = vrot.lane.b32.xlu0 %v2765, 8
      %v2868 = vpop.permute.xlu0 %2867
      %2869 = vrot.lane.b32.xlu0 %v2768, 8
      %v2870 = vpop.permute.xlu0 %2869
      %2871 = vrot.lane.b32.xlu0 %v2771, 8
      %v2872 = vpop.permute.xlu0 %2871
      %2873 = vrot.lane.b32.xlu0 %v2774, 8
      %v2874 = vpop.permute.xlu0 %2873
      %2875 = vrot.lane.b32.xlu0 %v2777, 8
      %v2876 = vpop.permute.xlu0 %2875
      %2877 = vrot.lane.b32.xlu0 %v2780, 8
      %v2878 = vpop.permute.xlu0 %2877
      %2879 = vrot.lane.b32.xlu0 %v2783, 8
      %v2880 = vpop.permute.xlu0 %2879
      %vm2913 = vcmask 130112
      %2914 = vst.msk [vmem:[#allocation2] sm:$0xff] %vm2913, %v2818
      %2915 = vst.msk [vmem:[#allocation2 + $0x8] sm:$0xff] %vm2913, %v2820
      %2916 = vst.msk [vmem:[#allocation2 + $0x10] sm:$0xff] %vm2913, %v2822
      %2917 = vst.msk [vmem:[#allocation2 + $0x18] sm:$0xff] %vm2913, %v2824
      %2918 = vst.msk [vmem:[#allocation2 + $0x20] sm:$0xff] %vm2913, %v2826
      %2919 = vst.msk [vmem:[#allocation2 + $0x28] sm:$0xff] %vm2913, %v2828
      %2920 = vst.msk [vmem:[#allocation2 + $0x30] sm:$0xff] %vm2913, %v2830
      %2921 = vst.msk [vmem:[#allocation2 + $0x38] sm:$0xff] %vm2913, %v2832
      %2922 = vst.msk [vmem:[#allocation2 + $0x40] sm:$0xff] %vm2913, %v2834
      %2923 = vst.msk [vmem:[#allocation2 + $0x48] sm:$0xff] %vm2913, %v2836
      %2924 = vst.msk [vmem:[#allocation2 + $0x50] sm:$0xff] %vm2913, %v2838
      %2925 = vst.msk [vmem:[#allocation2 + $0x58] sm:$0xff] %vm2913, %v2840
      %2926 = vst.msk [vmem:[#allocation2 + $0x60] sm:$0xff] %vm2913, %v2842
      %2927 = vst.msk [vmem:[#allocation2 + $0x68] sm:$0xff] %vm2913, %v2844
      %2928 = vst.msk [vmem:[#allocation2 + $0x70] sm:$0xff] %vm2913, %v2846
      %2929 = vst.msk [vmem:[#allocation2 + $0x78] sm:$0xff] %vm2913, %v2848
      %2930 = vst.msk [vmem:[#allocation2 + $0x80] sm:$0xff] %vm2913, %v2850
      %2931 = vst.msk [vmem:[#allocation2 + $0x88] sm:$0xff] %vm2913, %v2852
      %2932 = vst.msk [vmem:[#allocation2 + $0x90] sm:$0xff] %vm2913, %v2854
      %2933 = vst.msk [vmem:[#allocation2 + $0x98] sm:$0xff] %vm2913, %v2856
      %2934 = vst.msk [vmem:[#allocation2 + $0xa0] sm:$0xff] %vm2913, %v2858
      %2935 = vst.msk [vmem:[#allocation2 + $0xa8] sm:$0xff] %vm2913, %v2860
      %2936 = vst.msk [vmem:[#allocation2 + $0xb0] sm:$0xff] %vm2913, %v2862
      %2937 = vst.msk [vmem:[#allocation2 + $0xb8] sm:$0xff] %vm2913, %v2864
      %2938 = vst.msk [vmem:[#allocation2 + $0xc0] sm:$0xff] %vm2913, %v2866
      %2939 = vst.msk [vmem:[#allocation2 + $0xc8] sm:$0xff] %vm2913, %v2868
      %2940 = vst.msk [vmem:[#allocation2 + $0xd0] sm:$0xff] %vm2913, %v2870
      %2941 = vst.msk [vmem:[#allocation2 + $0xd8] sm:$0xff] %vm2913, %v2872
      %2942 = vst.msk [vmem:[#allocation2 + $0xe0] sm:$0xff] %vm2913, %v2874
      %2943 = vst.msk [vmem:[#allocation2 + $0xe8] sm:$0xff] %vm2913, %v2876
      %2944 = vst.msk [vmem:[#allocation2 + $0xf0] sm:$0xff] %vm2913, %v2878
      %2945 = vst.msk [vmem:[#allocation2 + $0xf8] sm:$0xff] %vm2913, %v2880
      %s2946 = scalar_lea.vmem %s3, 128
      %v2947 = vld [vmem:[%s2946] sm:$0xff]
      %v2948 = vld [vmem:[%s2946 + $0x8] sm:$0xff]
      %v2949 = vld [vmem:[%s2946 + $0x10] sm:$0xff]
      %v2950 = vld [vmem:[%s2946 + $0x18] sm:$0xff]
      %v2951 = vld [vmem:[%s2946 + $0x20] sm:$0xff]
      %v2952 = vld [vmem:[%s2946 + $0x28] sm:$0xff]
      %v2953 = vld [vmem:[%s2946 + $0x30] sm:$0xff]
      %v2954 = vld [vmem:[%s2946 + $0x38] sm:$0xff]
      %2955 = vrot.lane.b32.xlu0 %v415, 112
      %v2956 = vpop.permute.xlu0 %2955
      %2957 = vrot.lane.b32.xlu0 %v418, 112
      %v2958 = vpop.permute.xlu0 %2957
      %2959 = vrot.lane.b32.xlu0 %v421, 112
      %v2960 = vpop.permute.xlu0 %2959
      %2961 = vrot.lane.b32.xlu0 %v424, 112
      %v2962 = vpop.permute.xlu0 %2961
      %2963 = vrot.lane.b32.xlu0 %v427, 112
      %v2964 = vpop.permute.xlu0 %2963
      %2965 = vrot.lane.b32.xlu0 %v430, 112
      %v2966 = vpop.permute.xlu0 %2965
      %2967 = vrot.lane.b32.xlu0 %v433, 112
      %v2968 = vpop.permute.xlu0 %2967
      %2969 = vrot.lane.b32.xlu0 %v436, 112
      %v2970 = vpop.permute.xlu0 %2969
      %2971 = vrot.lane.b32.xlu0 %v415, 80
      %v2972 = vpop.permute.xlu0 %2971
      %2973 = vrot.lane.b32.xlu0 %v418, 80
      %v2974 = vpop.permute.xlu0 %2973
      %2975 = vrot.lane.b32.xlu0 %v421, 80
      %v2976 = vpop.permute.xlu0 %2975
      %2977 = vrot.lane.b32.xlu0 %v424, 80
      %v2978 = vpop.permute.xlu0 %2977
      %2979 = vrot.lane.b32.xlu0 %v427, 80
      %v2980 = vpop.permute.xlu0 %2979
      %2981 = vrot.lane.b32.xlu0 %v430, 80
      %v2982 = vpop.permute.xlu0 %2981
      %2983 = vrot.lane.b32.xlu0 %v433, 80
      %v2984 = vpop.permute.xlu0 %2983
      %2985 = vrot.lane.b32.xlu0 %v436, 80
      %v2986 = vpop.permute.xlu0 %2985
      %v2987 = vsel %vm542, %v2956, 0
      %v2989 = vsel %vm542, %v2958, 0
      %v2991 = vsel %vm542, %v2960, 0
      %v2993 = vsel %vm542, %v2962, 0
      %v2995 = vsel %vm542, %v2964, 0
      %v2997 = vsel %vm542, %v2966, 0
      %v2999 = vsel %vm542, %v2968, 0
      %v3001 = vsel %vm542, %v2970, 0
      %v3003 = vsel %vm542, %v2972, 0
      %v3005 = vsel %vm542, %v2974, 0
      %v3007 = vsel %vm542, %v2976, 0
      %v3009 = vsel %vm542, %v2978, 0
      %v3011 = vsel %vm542, %v2980, 0
      %v3013 = vsel %vm542, %v2982, 0
      %v3015 = vsel %vm542, %v2984, 0
      %v3017 = vsel %vm542, %v2986, 0
      %3019 = vmatpush.xpose.msra.mxu0 0.0
      %3020 = vmatpush.xpose.msra.mxu0 0.0
      %3021 = vmatpush.xpose.msra.mxu0 0.0
      %3022 = vmatpush.xpose.msra.mxu0 0.0
      %3023 = vmatpush.xpose.msra.mxu0 0.0
      %3024 = vmatpush.xpose.msra.mxu0 0.0
      %3025 = vmatpush.xpose.msra.mxu0 0.0
      %3026 = vmatpush.xpose.msra.mxu0 0.0
      %3027 = vmatpush.xpose.msra.mxu0 %v3017
      %3028 = vmatpush.xpose.msra.mxu0 %v3015
      %3029 = vmatpush.xpose.msra.mxu0 %v3013
      %3030 = vmatpush.xpose.msra.mxu0 %v3011
      %3031 = vmatpush.xpose.msra.mxu0 %v3009
      %3032 = vmatpush.xpose.msra.mxu0 %v3007
      %3033 = vmatpush.xpose.msra.mxu0 %v3005
      %3034 = vmatpush.xpose.msra.mxu0 %v3003
      %3035 = vmatmul.f32.gmra.mxu0 %v2987
      %v3036 = vpop.f32.mrf.mxu0
      %v3037 = vadd.f32 %v2947, %v3036
      %3038 = vmatmul.f32.gmra.mxu0 %v2989
      %v3039 = vpop.f32.mrf.mxu0
      %v3040 = vadd.f32 %v2948, %v3039
      %3041 = vmatmul.f32.gmra.mxu0 %v2991
      %v3042 = vpop.f32.mrf.mxu0
      %v3043 = vadd.f32 %v2949, %v3042
      %3044 = vmatmul.f32.gmra.mxu0 %v2993
      %v3045 = vpop.f32.mrf.mxu0
      %v3046 = vadd.f32 %v2950, %v3045
      %3047 = vmatmul.f32.gmra.mxu0 %v2995
      %v3048 = vpop.f32.mrf.mxu0
      %v3049 = vadd.f32 %v2951, %v3048
      %3050 = vmatmul.f32.gmra.mxu0 %v2997
      %v3051 = vpop.f32.mrf.mxu0
      %v3052 = vadd.f32 %v2952, %v3051
      %3053 = vmatmul.f32.gmra.mxu0 %v2999
      %v3054 = vpop.f32.mrf.mxu0
      %v3055 = vadd.f32 %v2953, %v3054
      %3056 = vmatmul.f32.gmra.mxu0 %v3001
      %v3057 = vpop.f32.mrf.mxu0
      %v3058 = vadd.f32 %v2954, %v3057
      %3059 = vdwg.mxu0
      %3060 = vrot.lane.b32.xlu0 %v439, 112
      %v3061 = vpop.permute.xlu0 %3060
      %3062 = vrot.lane.b32.xlu0 %v442, 112
      %v3063 = vpop.permute.xlu0 %3062
      %3064 = vrot.lane.b32.xlu0 %v445, 112
      %v3065 = vpop.permute.xlu0 %3064
      %3066 = vrot.lane.b32.xlu0 %v448, 112
      %v3067 = vpop.permute.xlu0 %3066
      %3068 = vrot.lane.b32.xlu0 %v451, 112
      %v3069 = vpop.permute.xlu0 %3068
      %3070 = vrot.lane.b32.xlu0 %v454, 112
      %v3071 = vpop.permute.xlu0 %3070
      %3072 = vrot.lane.b32.xlu0 %v457, 112
      %v3073 = vpop.permute.xlu0 %3072
      %3074 = vrot.lane.b32.xlu0 %v460, 112
      %v3075 = vpop.permute.xlu0 %3074
      %3076 = vrot.lane.b32.xlu0 %v439, 80
      %v3077 = vpop.permute.xlu0 %3076
      %3078 = vrot.lane.b32.xlu0 %v442, 80
      %v3079 = vpop.permute.xlu0 %3078
      %3080 = vrot.lane.b32.xlu0 %v445, 80
      %v3081 = vpop.permute.xlu0 %3080
      %3082 = vrot.lane.b32.xlu0 %v448, 80
      %v3083 = vpop.permute.xlu0 %3082
      %3084 = vrot.lane.b32.xlu0 %v451, 80
      %v3085 = vpop.permute.xlu0 %3084
      %3086 = vrot.lane.b32.xlu0 %v454, 80
      %v3087 = vpop.permute.xlu0 %3086
      %3088 = vrot.lane.b32.xlu0 %v457, 80
      %v3089 = vpop.permute.xlu0 %3088
      %3090 = vrot.lane.b32.xlu0 %v460, 80
      %v3091 = vpop.permute.xlu0 %3090
      %v3092 = vsel %vm542, %v3061, 0
      %v3094 = vsel %vm542, %v3063, 0
      %v3096 = vsel %vm542, %v3065, 0
      %v3098 = vsel %vm542, %v3067, 0
      %v3100 = vsel %vm542, %v3069, 0
      %v3102 = vsel %vm542, %v3071, 0
      %v3104 = vsel %vm542, %v3073, 0
      %v3106 = vsel %vm542, %v3075, 0
      %v3108 = vsel %vm542, %v3077, 0
      %v3110 = vsel %vm542, %v3079, 0
      %v3112 = vsel %vm542, %v3081, 0
      %v3114 = vsel %vm542, %v3083, 0
      %v3116 = vsel %vm542, %v3085, 0
      %v3118 = vsel %vm542, %v3087, 0
      %v3120 = vsel %vm542, %v3089, 0
      %v3122 = vsel %vm542, %v3091, 0
      %3124 = vmatpush.xpose.msra.mxu0 0.0
      %3125 = vmatpush.xpose.msra.mxu0 0.0
      %3126 = vmatpush.xpose.msra.mxu0 0.0
      %3127 = vmatpush.xpose.msra.mxu0 0.0
      %3128 = vmatpush.xpose.msra.mxu0 0.0
      %3129 = vmatpush.xpose.msra.mxu0 0.0
      %3130 = vmatpush.xpose.msra.mxu0 0.0
      %3131 = vmatpush.xpose.msra.mxu0 0.0
      %3132 = vmatpush.xpose.msra.mxu0 %v3122
      %3133 = vmatpush.xpose.msra.mxu0 %v3120
      %3134 = vmatpush.xpose.msra.mxu0 %v3118
      %3135 = vmatpush.xpose.msra.mxu0 %v3116
      %3136 = vmatpush.xpose.msra.mxu0 %v3114
      %3137 = vmatpush.xpose.msra.mxu0 %v3112
      %3138 = vmatpush.xpose.msra.mxu0 %v3110
      %3139 = vmatpush.xpose.msra.mxu0 %v3108
      %3140 = vmatmul.f32.gmra.mxu0 %v3092
      %v3141 = vpop.f32.mrf.mxu0
      %v3142 = vadd.f32 %v2947, %v3141
      %3143 = vmatmul.f32.gmra.mxu0 %v3094
      %v3144 = vpop.f32.mrf.mxu0
      %v3145 = vadd.f32 %v2948, %v3144
      %3146 = vmatmul.f32.gmra.mxu0 %v3096
      %v3147 = vpop.f32.mrf.mxu0
      %v3148 = vadd.f32 %v2949, %v3147
      %3149 = vmatmul.f32.gmra.mxu0 %v3098
      %v3150 = vpop.f32.mrf.mxu0
      %v3151 = vadd.f32 %v2950, %v3150
      %3152 = vmatmul.f32.gmra.mxu0 %v3100
      %v3153 = vpop.f32.mrf.mxu0
      %v3154 = vadd.f32 %v2951, %v3153
      %3155 = vmatmul.f32.gmra.mxu0 %v3102
      %v3156 = vpop.f32.mrf.mxu0
      %v3157 = vadd.f32 %v2952, %v3156
      %3158 = vmatmul.f32.gmra.mxu0 %v3104
      %v3159 = vpop.f32.mrf.mxu0
      %v3160 = vadd.f32 %v2953, %v3159
      %3161 = vmatmul.f32.gmra.mxu0 %v3106
      %v3162 = vpop.f32.mrf.mxu0
      %v3163 = vadd.f32 %v2954, %v3162
      %3164 = vdwg.mxu0
      %3165 = vrot.lane.b32.xlu0 %v463, 112
      %v3166 = vpop.permute.xlu0 %3165
      %3167 = vrot.lane.b32.xlu0 %v466, 112
      %v3168 = vpop.permute.xlu0 %3167
      %3169 = vrot.lane.b32.xlu0 %v469, 112
      %v3170 = vpop.permute.xlu0 %3169
      %3171 = vrot.lane.b32.xlu0 %v472, 112
      %v3172 = vpop.permute.xlu0 %3171
      %3173 = vrot.lane.b32.xlu0 %v475, 112
      %v3174 = vpop.permute.xlu0 %3173
      %3175 = vrot.lane.b32.xlu0 %v478, 112
      %v3176 = vpop.permute.xlu0 %3175
      %3177 = vrot.lane.b32.xlu0 %v481, 112
      %v3178 = vpop.permute.xlu0 %3177
      %3179 = vrot.lane.b32.xlu0 %v484, 112
      %v3180 = vpop.permute.xlu0 %3179
      %3181 = vrot.lane.b32.xlu0 %v463, 80
      %v3182 = vpop.permute.xlu0 %3181
      %3183 = vrot.lane.b32.xlu0 %v466, 80
      %v3184 = vpop.permute.xlu0 %3183
      %3185 = vrot.lane.b32.xlu0 %v469, 80
      %v3186 = vpop.permute.xlu0 %3185
      %3187 = vrot.lane.b32.xlu0 %v472, 80
      %v3188 = vpop.permute.xlu0 %3187
      %3189 = vrot.lane.b32.xlu0 %v475, 80
      %v3190 = vpop.permute.xlu0 %3189
      %3191 = vrot.lane.b32.xlu0 %v478, 80
      %v3192 = vpop.permute.xlu0 %3191
      %3193 = vrot.lane.b32.xlu0 %v481, 80
      %v3194 = vpop.permute.xlu0 %3193
      %3195 = vrot.lane.b32.xlu0 %v484, 80
      %v3196 = vpop.permute.xlu0 %3195
      %v3197 = vsel %vm542, %v3166, 0
      %v3199 = vsel %vm542, %v3168, 0
      %v3201 = vsel %vm542, %v3170, 0
      %v3203 = vsel %vm542, %v3172, 0
      %v3205 = vsel %vm542, %v3174, 0
      %v3207 = vsel %vm542, %v3176, 0
      %v3209 = vsel %vm542, %v3178, 0
      %v3211 = vsel %vm542, %v3180, 0
      %v3213 = vsel %vm542, %v3182, 0
      %v3215 = vsel %vm542, %v3184, 0
      %v3217 = vsel %vm542, %v3186, 0
      %v3219 = vsel %vm542, %v3188, 0
      %v3221 = vsel %vm542, %v3190, 0
      %v3223 = vsel %vm542, %v3192, 0
      %v3225 = vsel %vm542, %v3194, 0
      %v3227 = vsel %vm542, %v3196, 0
      %3229 = vmatpush.xpose.msra.mxu0 0.0
      %3230 = vmatpush.xpose.msra.mxu0 0.0
      %3231 = vmatpush.xpose.msra.mxu0 0.0
      %3232 = vmatpush.xpose.msra.mxu0 0.0
      %3233 = vmatpush.xpose.msra.mxu0 0.0
      %3234 = vmatpush.xpose.msra.mxu0 0.0
      %3235 = vmatpush.xpose.msra.mxu0 0.0
      %3236 = vmatpush.xpose.msra.mxu0 0.0
      %3237 = vmatpush.xpose.msra.mxu0 %v3227
      %3238 = vmatpush.xpose.msra.mxu0 %v3225
      %3239 = vmatpush.xpose.msra.mxu0 %v3223
      %3240 = vmatpush.xpose.msra.mxu0 %v3221
      %3241 = vmatpush.xpose.msra.mxu0 %v3219
      %3242 = vmatpush.xpose.msra.mxu0 %v3217
      %3243 = vmatpush.xpose.msra.mxu0 %v3215
      %3244 = vmatpush.xpose.msra.mxu0 %v3213
      %3245 = vmatmul.f32.gmra.mxu0 %v3197
      %v3246 = vpop.f32.mrf.mxu0
      %v3247 = vadd.f32 %v2947, %v3246
      %3248 = vmatmul.f32.gmra.mxu0 %v3199
      %v3249 = vpop.f32.mrf.mxu0
      %v3250 = vadd.f32 %v2948, %v3249
      %3251 = vmatmul.f32.gmra.mxu0 %v3201
      %v3252 = vpop.f32.mrf.mxu0
      %v3253 = vadd.f32 %v2949, %v3252
      %3254 = vmatmul.f32.gmra.mxu0 %v3203
      %v3255 = vpop.f32.mrf.mxu0
      %v3256 = vadd.f32 %v2950, %v3255
      %3257 = vmatmul.f32.gmra.mxu0 %v3205
      %v3258 = vpop.f32.mrf.mxu0
      %v3259 = vadd.f32 %v2951, %v3258
      %3260 = vmatmul.f32.gmra.mxu0 %v3207
      %v3261 = vpop.f32.mrf.mxu0
      %v3262 = vadd.f32 %v2952, %v3261
      %3263 = vmatmul.f32.gmra.mxu0 %v3209
      %v3264 = vpop.f32.mrf.mxu0
      %v3265 = vadd.f32 %v2953, %v3264
      %3266 = vmatmul.f32.gmra.mxu0 %v3211
      %v3267 = vpop.f32.mrf.mxu0
      %v3268 = vadd.f32 %v2954, %v3267
      %3269 = vdwg.mxu0
      %3270 = vrot.lane.b32.xlu0 %v487, 112
      %v3271 = vpop.permute.xlu0 %3270
      %3272 = vrot.lane.b32.xlu0 %v490, 112
      %v3273 = vpop.permute.xlu0 %3272
      %3274 = vrot.lane.b32.xlu0 %v493, 112
      %v3275 = vpop.permute.xlu0 %3274
      %3276 = vrot.lane.b32.xlu0 %v496, 112
      %v3277 = vpop.permute.xlu0 %3276
      %3278 = vrot.lane.b32.xlu0 %v499, 112
      %v3279 = vpop.permute.xlu0 %3278
      %3280 = vrot.lane.b32.xlu0 %v502, 112
      %v3281 = vpop.permute.xlu0 %3280
      %3282 = vrot.lane.b32.xlu0 %v505, 112
      %v3283 = vpop.permute.xlu0 %3282
      %3284 = vrot.lane.b32.xlu0 %v508, 112
      %v3285 = vpop.permute.xlu0 %3284
      %3286 = vrot.lane.b32.xlu0 %v487, 80
      %v3287 = vpop.permute.xlu0 %3286
      %3288 = vrot.lane.b32.xlu0 %v490, 80
      %v3289 = vpop.permute.xlu0 %3288
      %3290 = vrot.lane.b32.xlu0 %v493, 80
      %v3291 = vpop.permute.xlu0 %3290
      %3292 = vrot.lane.b32.xlu0 %v496, 80
      %v3293 = vpop.permute.xlu0 %3292
      %3294 = vrot.lane.b32.xlu0 %v499, 80
      %v3295 = vpop.permute.xlu0 %3294
      %3296 = vrot.lane.b32.xlu0 %v502, 80
      %v3297 = vpop.permute.xlu0 %3296
      %3298 = vrot.lane.b32.xlu0 %v505, 80
      %v3299 = vpop.permute.xlu0 %3298
      %3300 = vrot.lane.b32.xlu0 %v508, 80
      %v3301 = vpop.permute.xlu0 %3300
      %v3302 = vsel %vm542, %v3271, 0
      %v3304 = vsel %vm542, %v3273, 0
      %v3306 = vsel %vm542, %v3275, 0
      %v3308 = vsel %vm542, %v3277, 0
      %v3310 = vsel %vm542, %v3279, 0
      %v3312 = vsel %vm542, %v3281, 0
      %v3314 = vsel %vm542, %v3283, 0
      %v3316 = vsel %vm542, %v3285, 0
      %v3318 = vsel %vm542, %v3287, 0
      %v3320 = vsel %vm542, %v3289, 0
      %v3322 = vsel %vm542, %v3291, 0
      %v3324 = vsel %vm542, %v3293, 0
      %v3326 = vsel %vm542, %v3295, 0
      %v3328 = vsel %vm542, %v3297, 0
      %v3330 = vsel %vm542, %v3299, 0
      %v3332 = vsel %vm542, %v3301, 0
      %3334 = vmatpush.xpose.msra.mxu0 0.0
      %3335 = vmatpush.xpose.msra.mxu0 0.0
      %3336 = vmatpush.xpose.msra.mxu0 0.0
      %3337 = vmatpush.xpose.msra.mxu0 0.0
      %3338 = vmatpush.xpose.msra.mxu0 0.0
      %3339 = vmatpush.xpose.msra.mxu0 0.0
      %3340 = vmatpush.xpose.msra.mxu0 0.0
      %3341 = vmatpush.xpose.msra.mxu0 0.0
      %3342 = vmatpush.xpose.msra.mxu0 %v3332
      %3343 = vmatpush.xpose.msra.mxu0 %v3330
      %3344 = vmatpush.xpose.msra.mxu0 %v3328
      %3345 = vmatpush.xpose.msra.mxu0 %v3326
      %3346 = vmatpush.xpose.msra.mxu0 %v3324
      %3347 = vmatpush.xpose.msra.mxu0 %v3322
      %3348 = vmatpush.xpose.msra.mxu0 %v3320
      %3349 = vmatpush.xpose.msra.mxu0 %v3318
      %3350 = vmatmul.f32.gmra.mxu0 %v3302
      %v3351 = vpop.f32.mrf.mxu0
      %v3352 = vadd.f32 %v2947, %v3351
      %3353 = vmatmul.f32.gmra.mxu0 %v3304
      %v3354 = vpop.f32.mrf.mxu0
      %v3355 = vadd.f32 %v2948, %v3354
      %3356 = vmatmul.f32.gmra.mxu0 %v3306
      %v3357 = vpop.f32.mrf.mxu0
      %v3358 = vadd.f32 %v2949, %v3357
      %3359 = vmatmul.f32.gmra.mxu0 %v3308
      %v3360 = vpop.f32.mrf.mxu0
      %v3361 = vadd.f32 %v2950, %v3360
      %3362 = vmatmul.f32.gmra.mxu0 %v3310
      %v3363 = vpop.f32.mrf.mxu0
      %v3364 = vadd.f32 %v2951, %v3363
      %3365 = vmatmul.f32.gmra.mxu0 %v3312
      %v3366 = vpop.f32.mrf.mxu0
      %v3367 = vadd.f32 %v2952, %v3366
      %3368 = vmatmul.f32.gmra.mxu0 %v3314
      %v3369 = vpop.f32.mrf.mxu0
      %v3370 = vadd.f32 %v2953, %v3369
      %3371 = vmatmul.f32.gmra.mxu0 %v3316
      %v3372 = vpop.f32.mrf.mxu0
      %v3373 = vadd.f32 %v2954, %v3372
      %3374 = vdwg.mxu0
      %v3375 = vsel %vm907, %v3037, -inf
      %3376 = vmax.xlane.f32.xlu0 %v3375
      %v3377 = vpop.xlane.xlu0 %3376
      %v3378 = vsel %vm907, %v3040, -inf
      %3379 = vmax.xlane.f32.xlu0 %v3378
      %v3380 = vpop.xlane.xlu0 %3379
      %v3381 = vsel %vm907, %v3043, -inf
      %3382 = vmax.xlane.f32.xlu0 %v3381
      %v3383 = vpop.xlane.xlu0 %3382
      %v3384 = vsel %vm907, %v3046, -inf
      %3385 = vmax.xlane.f32.xlu0 %v3384
      %v3386 = vpop.xlane.xlu0 %3385
      %v3387 = vsel %vm907, %v3049, -inf
      %3388 = vmax.xlane.f32.xlu0 %v3387
      %v3389 = vpop.xlane.xlu0 %3388
      %v3390 = vsel %vm907, %v3052, -inf
      %3391 = vmax.xlane.f32.xlu0 %v3390
      %v3392 = vpop.xlane.xlu0 %3391
      %v3393 = vsel %vm907, %v3055, -inf
      %3394 = vmax.xlane.f32.xlu0 %v3393
      %v3395 = vpop.xlane.xlu0 %3394
      %v3396 = vsel %vm907, %v3058, -inf
      %3397 = vmax.xlane.f32.xlu0 %v3396
      %v3398 = vpop.xlane.xlu0 %3397
      %v3399 = vsel %vm907, %v3142, -inf
      %3400 = vmax.xlane.f32.xlu0 %v3399
      %v3401 = vpop.xlane.xlu0 %3400
      %v3402 = vsel %vm907, %v3145, -inf
      %3403 = vmax.xlane.f32.xlu0 %v3402
      %v3404 = vpop.xlane.xlu0 %3403
      %v3405 = vsel %vm907, %v3148, -inf
      %3406 = vmax.xlane.f32.xlu0 %v3405
      %v3407 = vpop.xlane.xlu0 %3406
      %v3408 = vsel %vm907, %v3151, -inf
      %3409 = vmax.xlane.f32.xlu0 %v3408
      %v3410 = vpop.xlane.xlu0 %3409
      %v3411 = vsel %vm907, %v3154, -inf
      %3412 = vmax.xlane.f32.xlu0 %v3411
      %v3413 = vpop.xlane.xlu0 %3412
      %v3414 = vsel %vm907, %v3157, -inf
      %3415 = vmax.xlane.f32.xlu0 %v3414
      %v3416 = vpop.xlane.xlu0 %3415
      %v3417 = vsel %vm907, %v3160, -inf
      %3418 = vmax.xlane.f32.xlu0 %v3417
      %v3419 = vpop.xlane.xlu0 %3418
      %v3420 = vsel %vm907, %v3163, -inf
      %3421 = vmax.xlane.f32.xlu0 %v3420
      %v3422 = vpop.xlane.xlu0 %3421
      %v3423 = vsel %vm907, %v3247, -inf
      %3424 = vmax.xlane.f32.xlu0 %v3423
      %v3425 = vpop.xlane.xlu0 %3424
      %v3426 = vsel %vm907, %v3250, -inf
      %3427 = vmax.xlane.f32.xlu0 %v3426
      %v3428 = vpop.xlane.xlu0 %3427
      %v3429 = vsel %vm907, %v3253, -inf
      %3430 = vmax.xlane.f32.xlu0 %v3429
      %v3431 = vpop.xlane.xlu0 %3430
      %v3432 = vsel %vm907, %v3256, -inf
      %3433 = vmax.xlane.f32.xlu0 %v3432
      %v3434 = vpop.xlane.xlu0 %3433
      %v3435 = vsel %vm907, %v3259, -inf
      %3436 = vmax.xlane.f32.xlu0 %v3435
      %v3437 = vpop.xlane.xlu0 %3436
      %v3438 = vsel %vm907, %v3262, -inf
      %3439 = vmax.xlane.f32.xlu0 %v3438
      %v3440 = vpop.xlane.xlu0 %3439
      %v3441 = vsel %vm907, %v3265, -inf
      %3442 = vmax.xlane.f32.xlu0 %v3441
      %v3443 = vpop.xlane.xlu0 %3442
      %v3444 = vsel %vm907, %v3268, -inf
      %3445 = vmax.xlane.f32.xlu0 %v3444
      %v3446 = vpop.xlane.xlu0 %3445
      %v3447 = vsel %vm907, %v3352, -inf
      %3448 = vmax.xlane.f32.xlu0 %v3447
      %v3449 = vpop.xlane.xlu0 %3448
      %v3450 = vsel %vm907, %v3355, -inf
      %3451 = vmax.xlane.f32.xlu0 %v3450
      %v3452 = vpop.xlane.xlu0 %3451
      %v3453 = vsel %vm907, %v3358, -inf
      %3454 = vmax.xlane.f32.xlu0 %v3453
      %v3455 = vpop.xlane.xlu0 %3454
      %v3456 = vsel %vm907, %v3361, -inf
      %3457 = vmax.xlane.f32.xlu0 %v3456
      %v3458 = vpop.xlane.xlu0 %3457
      %v3459 = vsel %vm907, %v3364, -inf
      %3460 = vmax.xlane.f32.xlu0 %v3459
      %v3461 = vpop.xlane.xlu0 %3460
      %v3462 = vsel %vm907, %v3367, -inf
      %3463 = vmax.xlane.f32.xlu0 %v3462
      %v3464 = vpop.xlane.xlu0 %3463
      %v3465 = vsel %vm907, %v3370, -inf
      %3466 = vmax.xlane.f32.xlu0 %v3465
      %v3467 = vpop.xlane.xlu0 %3466
      %v3468 = vsel %vm907, %v3373, -inf
      %3469 = vmax.xlane.f32.xlu0 %v3468
      %v3470 = vpop.xlane.xlu0 %3469
      %v3471 = vsub.f32 %v3037, %v3377
      %v3472 = vsub.f32 %v3040, %v3380
      %v3473 = vsub.f32 %v3043, %v3383
      %v3474 = vsub.f32 %v3046, %v3386
      %v3475 = vsub.f32 %v3049, %v3389
      %v3476 = vsub.f32 %v3052, %v3392
      %v3477 = vsub.f32 %v3055, %v3395
      %v3478 = vsub.f32 %v3058, %v3398
      %v3479 = vsub.f32 %v3142, %v3401
      %v3480 = vsub.f32 %v3145, %v3404
      %v3481 = vsub.f32 %v3148, %v3407
      %v3482 = vsub.f32 %v3151, %v3410
      %v3483 = vsub.f32 %v3154, %v3413
      %v3484 = vsub.f32 %v3157, %v3416
      %v3485 = vsub.f32 %v3160, %v3419
      %v3486 = vsub.f32 %v3163, %v3422
      %v3487 = vsub.f32 %v3247, %v3425
      %v3488 = vsub.f32 %v3250, %v3428
      %v3489 = vsub.f32 %v3253, %v3431
      %v3490 = vsub.f32 %v3256, %v3434
      %v3491 = vsub.f32 %v3259, %v3437
      %v3492 = vsub.f32 %v3262, %v3440
      %v3493 = vsub.f32 %v3265, %v3443
      %v3494 = vsub.f32 %v3268, %v3446
      %v3495 = vsub.f32 %v3352, %v3449
      %v3496 = vsub.f32 %v3355, %v3452
      %v3497 = vsub.f32 %v3358, %v3455
      %v3498 = vsub.f32 %v3361, %v3458
      %v3499 = vsub.f32 %v3364, %v3461
      %v3500 = vsub.f32 %v3367, %v3464
      %v3501 = vsub.f32 %v3370, %v3467
      %v3502 = vsub.f32 %v3373, %v3470
      %v3503 = vmul.f32 %v3471, 1.442695
      %v3504 = vpow.pop %v3503
      %v3505 = vmul.f32 %v3472, 1.442695
      %v3506 = vpow.pop %v3505
      %v3507 = vmul.f32 %v3473, 1.442695
      %v3508 = vpow.pop %v3507
      %v3509 = vmul.f32 %v3474, 1.442695
      %v3510 = vpow.pop %v3509
      %v3511 = vmul.f32 %v3475, 1.442695
      %v3512 = vpow.pop %v3511
      %v3513 = vmul.f32 %v3476, 1.442695
      %v3514 = vpow.pop %v3513
      %v3515 = vmul.f32 %v3477, 1.442695
      %v3516 = vpow.pop %v3515
      %v3517 = vmul.f32 %v3478, 1.442695
      %v3518 = vpow.pop %v3517
      %v3519 = vmul.f32 %v3479, 1.442695
      %v3520 = vpow.pop %v3519
      %v3521 = vmul.f32 %v3480, 1.442695
      %v3522 = vpow.pop %v3521
      %v3523 = vmul.f32 %v3481, 1.442695
      %v3524 = vpow.pop %v3523
      %v3525 = vmul.f32 %v3482, 1.442695
      %v3526 = vpow.pop %v3525
      %v3527 = vmul.f32 %v3483, 1.442695
      %v3528 = vpow.pop %v3527
      %v3529 = vmul.f32 %v3484, 1.442695
      %v3530 = vpow.pop %v3529
      %v3531 = vmul.f32 %v3485, 1.442695
      %v3532 = vpow.pop %v3531
      %v3533 = vmul.f32 %v3486, 1.442695
      %v3534 = vpow.pop %v3533
      %v3535 = vmul.f32 %v3487, 1.442695
      %v3536 = vpow.pop %v3535
      %v3537 = vmul.f32 %v3488, 1.442695
      %v3538 = vpow.pop %v3537
      %v3539 = vmul.f32 %v3489, 1.442695
      %v3540 = vpow.pop %v3539
      %v3541 = vmul.f32 %v3490, 1.442695
      %v3542 = vpow.pop %v3541
      %v3543 = vmul.f32 %v3491, 1.442695
      %v3544 = vpow.pop %v3543
      %v3545 = vmul.f32 %v3492, 1.442695
      %v3546 = vpow.pop %v3545
      %v3547 = vmul.f32 %v3493, 1.442695
      %v3548 = vpow.pop %v3547
      %v3549 = vmul.f32 %v3494, 1.442695
      %v3550 = vpow.pop %v3549
      %v3551 = vmul.f32 %v3495, 1.442695
      %v3552 = vpow.pop %v3551
      %v3553 = vmul.f32 %v3496, 1.442695
      %v3554 = vpow.pop %v3553
      %v3555 = vmul.f32 %v3497, 1.442695
      %v3556 = vpow.pop %v3555
      %v3557 = vmul.f32 %v3498, 1.442695
      %v3558 = vpow.pop %v3557
      %v3559 = vmul.f32 %v3499, 1.442695
      %v3560 = vpow.pop %v3559
      %v3561 = vmul.f32 %v3500, 1.442695
      %v3562 = vpow.pop %v3561
      %v3563 = vmul.f32 %v3501, 1.442695
      %v3564 = vpow.pop %v3563
      %v3565 = vmul.f32 %v3502, 1.442695
      %v3566 = vpow.pop %v3565
      %v3567 = vsel %vm907, %v3504, 0.0
      %3568 = vadd.xlane.f32.xlu0 %v3567
      %v3569 = vpop.xlane.xlu0 %3568
      %v3570 = vsel %vm907, %v3506, 0.0
      %3571 = vadd.xlane.f32.xlu0 %v3570
      %v3572 = vpop.xlane.xlu0 %3571
      %v3573 = vsel %vm907, %v3508, 0.0
      %3574 = vadd.xlane.f32.xlu0 %v3573
      %v3575 = vpop.xlane.xlu0 %3574
      %v3576 = vsel %vm907, %v3510, 0.0
      %3577 = vadd.xlane.f32.xlu0 %v3576
      %v3578 = vpop.xlane.xlu0 %3577
      %v3579 = vsel %vm907, %v3512, 0.0
      %3580 = vadd.xlane.f32.xlu0 %v3579
      %v3581 = vpop.xlane.xlu0 %3580
      %v3582 = vsel %vm907, %v3514, 0.0
      %3583 = vadd.xlane.f32.xlu0 %v3582
      %v3584 = vpop.xlane.xlu0 %3583
      %v3585 = vsel %vm907, %v3516, 0.0
      %3586 = vadd.xlane.f32.xlu0 %v3585
      %v3587 = vpop.xlane.xlu0 %3586
      %v3588 = vsel %vm907, %v3518, 0.0
      %3589 = vadd.xlane.f32.xlu0 %v3588
      %v3590 = vpop.xlane.xlu0 %3589
      %v3591 = vsel %vm907, %v3520, 0.0
      %3592 = vadd.xlane.f32.xlu0 %v3591
      %v3593 = vpop.xlane.xlu0 %3592
      %v3594 = vsel %vm907, %v3522, 0.0
      %3595 = vadd.xlane.f32.xlu0 %v3594
      %v3596 = vpop.xlane.xlu0 %3595
      %v3597 = vsel %vm907, %v3524, 0.0
      %3598 = vadd.xlane.f32.xlu0 %v3597
      %v3599 = vpop.xlane.xlu0 %3598
      %v3600 = vsel %vm907, %v3526, 0.0
      %3601 = vadd.xlane.f32.xlu0 %v3600
      %v3602 = vpop.xlane.xlu0 %3601
      %v3603 = vsel %vm907, %v3528, 0.0
      %3604 = vadd.xlane.f32.xlu0 %v3603
      %v3605 = vpop.xlane.xlu0 %3604
      %v3606 = vsel %vm907, %v3530, 0.0
      %3607 = vadd.xlane.f32.xlu0 %v3606
      %v3608 = vpop.xlane.xlu0 %3607
      %v3609 = vsel %vm907, %v3532, 0.0
      %3610 = vadd.xlane.f32.xlu0 %v3609
      %v3611 = vpop.xlane.xlu0 %3610
      %v3612 = vsel %vm907, %v3534, 0.0
      %3613 = vadd.xlane.f32.xlu0 %v3612
      %v3614 = vpop.xlane.xlu0 %3613
      %v3615 = vsel %vm907, %v3536, 0.0
      %3616 = vadd.xlane.f32.xlu0 %v3615
      %v3617 = vpop.xlane.xlu0 %3616
      %v3618 = vsel %vm907, %v3538, 0.0
      %3619 = vadd.xlane.f32.xlu0 %v3618
      %v3620 = vpop.xlane.xlu0 %3619
      %v3621 = vsel %vm907, %v3540, 0.0
      %3622 = vadd.xlane.f32.xlu0 %v3621
      %v3623 = vpop.xlane.xlu0 %3622
      %v3624 = vsel %vm907, %v3542, 0.0
      %3625 = vadd.xlane.f32.xlu0 %v3624
      %v3626 = vpop.xlane.xlu0 %3625
      %v3627 = vsel %vm907, %v3544, 0.0
      %3628 = vadd.xlane.f32.xlu0 %v3627
      %v3629 = vpop.xlane.xlu0 %3628
      %v3630 = vsel %vm907, %v3546, 0.0
      %3631 = vadd.xlane.f32.xlu0 %v3630
      %v3632 = vpop.xlane.xlu0 %3631
      %v3633 = vsel %vm907, %v3548, 0.0
      %3634 = vadd.xlane.f32.xlu0 %v3633
      %v3635 = vpop.xlane.xlu0 %3634
      %v3636 = vsel %vm907, %v3550, 0.0
      %3637 = vadd.xlane.f32.xlu0 %v3636
      %v3638 = vpop.xlane.xlu0 %3637
      %v3639 = vsel %vm907, %v3552, 0.0
      %3640 = vadd.xlane.f32.xlu0 %v3639
      %v3641 = vpop.xlane.xlu0 %3640
      %v3642 = vsel %vm907, %v3554, 0.0
      %3643 = vadd.xlane.f32.xlu0 %v3642
      %v3644 = vpop.xlane.xlu0 %3643
      %v3645 = vsel %vm907, %v3556, 0.0
      %3646 = vadd.xlane.f32.xlu0 %v3645
      %v3647 = vpop.xlane.xlu0 %3646
      %v3648 = vsel %vm907, %v3558, 0.0
      %3649 = vadd.xlane.f32.xlu0 %v3648
      %v3650 = vpop.xlane.xlu0 %3649
      %v3651 = vsel %vm907, %v3560, 0.0
      %3652 = vadd.xlane.f32.xlu0 %v3651
      %v3653 = vpop.xlane.xlu0 %3652
      %v3654 = vsel %vm907, %v3562, 0.0
      %3655 = vadd.xlane.f32.xlu0 %v3654
      %v3656 = vpop.xlane.xlu0 %3655
      %v3657 = vsel %vm907, %v3564, 0.0
      %3658 = vadd.xlane.f32.xlu0 %v3657
      %v3659 = vpop.xlane.xlu0 %3658
      %v3660 = vsel %vm907, %v3566, 0.0
      %3661 = vadd.xlane.f32.xlu0 %v3660
      %v3662 = vpop.xlane.xlu0 %3661
      %v3663 = vrcp.pop %v3569
      %v3664 = vrcp.pop %v3572
      %v3665 = vrcp.pop %v3575
      %v3666 = vrcp.pop %v3578
      %v3667 = vrcp.pop %v3581
      %v3668 = vrcp.pop %v3584
      %v3669 = vrcp.pop %v3587
      %v3670 = vrcp.pop %v3590
      %v3671 = vrcp.pop %v3593
      %v3672 = vrcp.pop %v3596
      %v3673 = vrcp.pop %v3599
      %v3674 = vrcp.pop %v3602
      %v3675 = vrcp.pop %v3605
      %v3676 = vrcp.pop %v3608
      %v3677 = vrcp.pop %v3611
      %v3678 = vrcp.pop %v3614
      %v3679 = vrcp.pop %v3617
      %v3680 = vrcp.pop %v3620
      %v3681 = vrcp.pop %v3623
      %v3682 = vrcp.pop %v3626
      %v3683 = vrcp.pop %v3629
      %v3684 = vrcp.pop %v3632
      %v3685 = vrcp.pop %v3635
      %v3686 = vrcp.pop %v3638
      %v3687 = vrcp.pop %v3641
      %v3688 = vrcp.pop %v3644
      %v3689 = vrcp.pop %v3647
      %v3690 = vrcp.pop %v3650
      %v3691 = vrcp.pop %v3653
      %v3692 = vrcp.pop %v3656
      %v3693 = vrcp.pop %v3659
      %v3694 = vrcp.pop %v3662
      %v3695 = vmul.f32 %v3504, %v3663
      %v3696 = vmul.f32 %v3506, %v3664
      %v3697 = vmul.f32 %v3508, %v3665
      %v3698 = vmul.f32 %v3510, %v3666
      %v3699 = vmul.f32 %v3512, %v3667
      %v3700 = vmul.f32 %v3514, %v3668
      %v3701 = vmul.f32 %v3516, %v3669
      %v3702 = vmul.f32 %v3518, %v3670
      %v3703 = vmul.f32 %v3520, %v3671
      %v3704 = vmul.f32 %v3522, %v3672
      %v3705 = vmul.f32 %v3524, %v3673
      %v3706 = vmul.f32 %v3526, %v3674
      %v3707 = vmul.f32 %v3528, %v3675
      %v3708 = vmul.f32 %v3530, %v3676
      %v3709 = vmul.f32 %v3532, %v3677
      %v3710 = vmul.f32 %v3534, %v3678
      %v3711 = vmul.f32 %v3536, %v3679
      %v3712 = vmul.f32 %v3538, %v3680
      %v3713 = vmul.f32 %v3540, %v3681
      %v3714 = vmul.f32 %v3542, %v3682
      %v3715 = vmul.f32 %v3544, %v3683
      %v3716 = vmul.f32 %v3546, %v3684
      %v3717 = vmul.f32 %v3548, %v3685
      %v3718 = vmul.f32 %v3550, %v3686
      %v3719 = vmul.f32 %v3552, %v3687
      %v3720 = vmul.f32 %v3554, %v3688
      %v3721 = vmul.f32 %v3556, %v3689
      %v3722 = vmul.f32 %v3558, %v3690
      %v3723 = vmul.f32 %v3560, %v3691
      %v3724 = vmul.f32 %v3562, %v3692
      %v3725 = vmul.f32 %v3564, %v3693
      %v3726 = vmul.f32 %v3566, %v3694
      %3727 = vrot.lane.b32.xlu0 %v415, 48
      %v3728 = vpop.permute.xlu0 %3727
      %3729 = vrot.lane.b32.xlu0 %v418, 48
      %v3730 = vpop.permute.xlu0 %3729
      %3731 = vrot.lane.b32.xlu0 %v421, 48
      %v3732 = vpop.permute.xlu0 %3731
      %3733 = vrot.lane.b32.xlu0 %v424, 48
      %v3734 = vpop.permute.xlu0 %3733
      %3735 = vrot.lane.b32.xlu0 %v427, 48
      %v3736 = vpop.permute.xlu0 %3735
      %3737 = vrot.lane.b32.xlu0 %v430, 48
      %v3738 = vpop.permute.xlu0 %3737
      %3739 = vrot.lane.b32.xlu0 %v433, 48
      %v3740 = vpop.permute.xlu0 %3739
      %3741 = vrot.lane.b32.xlu0 %v436, 48
      %v3742 = vpop.permute.xlu0 %3741
      %v3752 = vsel %vm907, %v3695, 0
      %v3755 = vsel %vm907, %v3696, 0
      %v3758 = vsel %vm907, %v3697, 0
      %v3761 = vsel %vm907, %v3698, 0
      %v3764 = vsel %vm907, %v3699, 0
      %v3767 = vsel %vm907, %v3700, 0
      %v3770 = vsel %vm907, %v3701, 0
      %v3773 = vsel %vm907, %v3702, 0
      %3775 = vmatpush.msra.mxu0 0.0
      %3776 = vmatpush.msra.mxu0 0.0
      %3777 = vmatpush.msra.mxu0 0.0
      %3778 = vmatpush.msra.mxu0 0.0
      %3779 = vmatpush.msra.mxu0 0.0
      %3780 = vmatpush.msra.mxu0 0.0
      %3781 = vmatpush.msra.mxu0 0.0
      %3782 = vmatpush.msra.mxu0 0.0
      %3783 = vmatpush.msra.mxu0 %v3742
      %3784 = vmatpush.msra.mxu0 %v3740
      %3785 = vmatpush.msra.mxu0 %v3738
      %3786 = vmatpush.msra.mxu0 %v3736
      %3787 = vmatpush.msra.mxu0 %v3734
      %3788 = vmatpush.msra.mxu0 %v3732
      %3789 = vmatpush.msra.mxu0 %v3730
      %3790 = vmatpush.msra.mxu0 %v3728
      %3791 = vmatmul.f32.gmra.mxu0 %v3752
      %v3792 = vpop.f32.mrf.mxu0
      %v3793 = vadd.f32 0.0, %v3792
      %3794 = vmatmul.f32.gmra.mxu0 %v3755
      %v3795 = vpop.f32.mrf.mxu0
      %v3796 = vadd.f32 0.0, %v3795
      %3797 = vmatmul.f32.gmra.mxu0 %v3758
      %v3798 = vpop.f32.mrf.mxu0
      %v3799 = vadd.f32 0.0, %v3798
      %3800 = vmatmul.f32.gmra.mxu0 %v3761
      %v3801 = vpop.f32.mrf.mxu0
      %v3802 = vadd.f32 0.0, %v3801
      %3803 = vmatmul.f32.gmra.mxu0 %v3764
      %v3804 = vpop.f32.mrf.mxu0
      %v3805 = vadd.f32 0.0, %v3804
      %3806 = vmatmul.f32.gmra.mxu0 %v3767
      %v3807 = vpop.f32.mrf.mxu0
      %v3808 = vadd.f32 0.0, %v3807
      %3809 = vmatmul.f32.gmra.mxu0 %v3770
      %v3810 = vpop.f32.mrf.mxu0
      %v3811 = vadd.f32 0.0, %v3810
      %3812 = vmatmul.f32.gmra.mxu0 %v3773
      %v3813 = vpop.f32.mrf.mxu0
      %v3814 = vadd.f32 0.0, %v3813
      %3815 = vdwg.mxu0
      %3816 = vrot.lane.b32.xlu0 %v439, 48
      %v3817 = vpop.permute.xlu0 %3816
      %3818 = vrot.lane.b32.xlu0 %v442, 48
      %v3819 = vpop.permute.xlu0 %3818
      %3820 = vrot.lane.b32.xlu0 %v445, 48
      %v3821 = vpop.permute.xlu0 %3820
      %3822 = vrot.lane.b32.xlu0 %v448, 48
      %v3823 = vpop.permute.xlu0 %3822
      %3824 = vrot.lane.b32.xlu0 %v451, 48
      %v3825 = vpop.permute.xlu0 %3824
      %3826 = vrot.lane.b32.xlu0 %v454, 48
      %v3827 = vpop.permute.xlu0 %3826
      %3828 = vrot.lane.b32.xlu0 %v457, 48
      %v3829 = vpop.permute.xlu0 %3828
      %3830 = vrot.lane.b32.xlu0 %v460, 48
      %v3831 = vpop.permute.xlu0 %3830
      %v3841 = vsel %vm907, %v3703, 0
      %v3844 = vsel %vm907, %v3704, 0
      %v3847 = vsel %vm907, %v3705, 0
      %v3850 = vsel %vm907, %v3706, 0
      %v3853 = vsel %vm907, %v3707, 0
      %v3856 = vsel %vm907, %v3708, 0
      %v3859 = vsel %vm907, %v3709, 0
      %v3862 = vsel %vm907, %v3710, 0
      %3864 = vmatpush.msra.mxu0 0.0
      %3865 = vmatpush.msra.mxu0 0.0
      %3866 = vmatpush.msra.mxu0 0.0
      %3867 = vmatpush.msra.mxu0 0.0
      %3868 = vmatpush.msra.mxu0 0.0
      %3869 = vmatpush.msra.mxu0 0.0
      %3870 = vmatpush.msra.mxu0 0.0
      %3871 = vmatpush.msra.mxu0 0.0
      %3872 = vmatpush.msra.mxu0 %v3831
      %3873 = vmatpush.msra.mxu0 %v3829
      %3874 = vmatpush.msra.mxu0 %v3827
      %3875 = vmatpush.msra.mxu0 %v3825
      %3876 = vmatpush.msra.mxu0 %v3823
      %3877 = vmatpush.msra.mxu0 %v3821
      %3878 = vmatpush.msra.mxu0 %v3819
      %3879 = vmatpush.msra.mxu0 %v3817
      %3880 = vmatmul.f32.gmra.mxu0 %v3841
      %v3881 = vpop.f32.mrf.mxu0
      %v3882 = vadd.f32 0.0, %v3881
      %3883 = vmatmul.f32.gmra.mxu0 %v3844
      %v3884 = vpop.f32.mrf.mxu0
      %v3885 = vadd.f32 0.0, %v3884
      %3886 = vmatmul.f32.gmra.mxu0 %v3847
      %v3887 = vpop.f32.mrf.mxu0
      %v3888 = vadd.f32 0.0, %v3887
      %3889 = vmatmul.f32.gmra.mxu0 %v3850
      %v3890 = vpop.f32.mrf.mxu0
      %v3891 = vadd.f32 0.0, %v3890
      %3892 = vmatmul.f32.gmra.mxu0 %v3853
      %v3893 = vpop.f32.mrf.mxu0
      %v3894 = vadd.f32 0.0, %v3893
      %3895 = vmatmul.f32.gmra.mxu0 %v3856
      %v3896 = vpop.f32.mrf.mxu0
      %v3897 = vadd.f32 0.0, %v3896
      %3898 = vmatmul.f32.gmra.mxu0 %v3859
      %v3899 = vpop.f32.mrf.mxu0
      %v3900 = vadd.f32 0.0, %v3899
      %3901 = vmatmul.f32.gmra.mxu0 %v3862
      %v3902 = vpop.f32.mrf.mxu0
      %v3903 = vadd.f32 0.0, %v3902
      %3904 = vdwg.mxu0
      %3905 = vrot.lane.b32.xlu0 %v463, 48
      %v3906 = vpop.permute.xlu0 %3905
      %3907 = vrot.lane.b32.xlu0 %v466, 48
      %v3908 = vpop.permute.xlu0 %3907
      %3909 = vrot.lane.b32.xlu0 %v469, 48
      %v3910 = vpop.permute.xlu0 %3909
      %3911 = vrot.lane.b32.xlu0 %v472, 48
      %v3912 = vpop.permute.xlu0 %3911
      %3913 = vrot.lane.b32.xlu0 %v475, 48
      %v3914 = vpop.permute.xlu0 %3913
      %3915 = vrot.lane.b32.xlu0 %v478, 48
      %v3916 = vpop.permute.xlu0 %3915
      %3917 = vrot.lane.b32.xlu0 %v481, 48
      %v3918 = vpop.permute.xlu0 %3917
      %3919 = vrot.lane.b32.xlu0 %v484, 48
      %v3920 = vpop.permute.xlu0 %3919
      %v3930 = vsel %vm907, %v3711, 0
      %v3933 = vsel %vm907, %v3712, 0
      %v3936 = vsel %vm907, %v3713, 0
      %v3939 = vsel %vm907, %v3714, 0
      %v3942 = vsel %vm907, %v3715, 0
      %v3945 = vsel %vm907, %v3716, 0
      %v3948 = vsel %vm907, %v3717, 0
      %v3951 = vsel %vm907, %v3718, 0
      %3953 = vmatpush.msra.mxu0 0.0
      %3954 = vmatpush.msra.mxu0 0.0
      %3955 = vmatpush.msra.mxu0 0.0
      %3956 = vmatpush.msra.mxu0 0.0
      %3957 = vmatpush.msra.mxu0 0.0
      %3958 = vmatpush.msra.mxu0 0.0
      %3959 = vmatpush.msra.mxu0 0.0
      %3960 = vmatpush.msra.mxu0 0.0
      %3961 = vmatpush.msra.mxu0 %v3920
      %3962 = vmatpush.msra.mxu0 %v3918
      %3963 = vmatpush.msra.mxu0 %v3916
      %3964 = vmatpush.msra.mxu0 %v3914
      %3965 = vmatpush.msra.mxu0 %v3912
      %3966 = vmatpush.msra.mxu0 %v3910
      %3967 = vmatpush.msra.mxu0 %v3908
      %3968 = vmatpush.msra.mxu0 %v3906
      %3969 = vmatmul.f32.gmra.mxu0 %v3930
      %v3970 = vpop.f32.mrf.mxu0
      %v3971 = vadd.f32 0.0, %v3970
      %3972 = vmatmul.f32.gmra.mxu0 %v3933
      %v3973 = vpop.f32.mrf.mxu0
      %v3974 = vadd.f32 0.0, %v3973
      %3975 = vmatmul.f32.gmra.mxu0 %v3936
      %v3976 = vpop.f32.mrf.mxu0
      %v3977 = vadd.f32 0.0, %v3976
      %3978 = vmatmul.f32.gmra.mxu0 %v3939
      %v3979 = vpop.f32.mrf.mxu0
      %v3980 = vadd.f32 0.0, %v3979
      %3981 = vmatmul.f32.gmra.mxu0 %v3942
      %v3982 = vpop.f32.mrf.mxu0
      %v3983 = vadd.f32 0.0, %v3982
      %3984 = vmatmul.f32.gmra.mxu0 %v3945
      %v3985 = vpop.f32.mrf.mxu0
      %v3986 = vadd.f32 0.0, %v3985
      %3987 = vmatmul.f32.gmra.mxu0 %v3948
      %v3988 = vpop.f32.mrf.mxu0
      %v3989 = vadd.f32 0.0, %v3988
      %3990 = vmatmul.f32.gmra.mxu0 %v3951
      %v3991 = vpop.f32.mrf.mxu0
      %v3992 = vadd.f32 0.0, %v3991
      %3993 = vdwg.mxu0
      %3994 = vrot.lane.b32.xlu0 %v487, 48
      %v3995 = vpop.permute.xlu0 %3994
      %3996 = vrot.lane.b32.xlu0 %v490, 48
      %v3997 = vpop.permute.xlu0 %3996
      %3998 = vrot.lane.b32.xlu0 %v493, 48
      %v3999 = vpop.permute.xlu0 %3998
      %4000 = vrot.lane.b32.xlu0 %v496, 48
      %v4001 = vpop.permute.xlu0 %4000
      %4002 = vrot.lane.b32.xlu0 %v499, 48
      %v4003 = vpop.permute.xlu0 %4002
      %4004 = vrot.lane.b32.xlu0 %v502, 48
      %v4005 = vpop.permute.xlu0 %4004
      %4006 = vrot.lane.b32.xlu0 %v505, 48
      %v4007 = vpop.permute.xlu0 %4006
      %4008 = vrot.lane.b32.xlu0 %v508, 48
      %v4009 = vpop.permute.xlu0 %4008
      %v4019 = vsel %vm907, %v3719, 0
      %v4022 = vsel %vm907, %v3720, 0
      %v4025 = vsel %vm907, %v3721, 0
      %v4028 = vsel %vm907, %v3722, 0
      %v4031 = vsel %vm907, %v3723, 0
      %v4034 = vsel %vm907, %v3724, 0
      %v4037 = vsel %vm907, %v3725, 0
      %v4040 = vsel %vm907, %v3726, 0
      %4042 = vmatpush.msra.mxu0 0.0
      %4043 = vmatpush.msra.mxu0 0.0
      %4044 = vmatpush.msra.mxu0 0.0
      %4045 = vmatpush.msra.mxu0 0.0
      %4046 = vmatpush.msra.mxu0 0.0
      %4047 = vmatpush.msra.mxu0 0.0
      %4048 = vmatpush.msra.mxu0 0.0
      %4049 = vmatpush.msra.mxu0 0.0
      %4050 = vmatpush.msra.mxu0 %v4009
      %4051 = vmatpush.msra.mxu0 %v4007
      %4052 = vmatpush.msra.mxu0 %v4005
      %4053 = vmatpush.msra.mxu0 %v4003
      %4054 = vmatpush.msra.mxu0 %v4001
      %4055 = vmatpush.msra.mxu0 %v3999
      %4056 = vmatpush.msra.mxu0 %v3997
      %4057 = vmatpush.msra.mxu0 %v3995
      %4058 = vmatmul.f32.gmra.mxu0 %v4019
      %v4059 = vpop.f32.mrf.mxu0
      %v4060 = vadd.f32 0.0, %v4059
      %4061 = vmatmul.f32.gmra.mxu0 %v4022
      %v4062 = vpop.f32.mrf.mxu0
      %v4063 = vadd.f32 0.0, %v4062
      %4064 = vmatmul.f32.gmra.mxu0 %v4025
      %v4065 = vpop.f32.mrf.mxu0
      %v4066 = vadd.f32 0.0, %v4065
      %4067 = vmatmul.f32.gmra.mxu0 %v4028
      %v4068 = vpop.f32.mrf.mxu0
      %v4069 = vadd.f32 0.0, %v4068
      %4070 = vmatmul.f32.gmra.mxu0 %v4031
      %v4071 = vpop.f32.mrf.mxu0
      %v4072 = vadd.f32 0.0, %v4071
      %4073 = vmatmul.f32.gmra.mxu0 %v4034
      %v4074 = vpop.f32.mrf.mxu0
      %v4075 = vadd.f32 0.0, %v4074
      %4076 = vmatmul.f32.gmra.mxu0 %v4037
      %v4077 = vpop.f32.mrf.mxu0
      %v4078 = vadd.f32 0.0, %v4077
      %4079 = vmatmul.f32.gmra.mxu0 %v4040
      %v4080 = vpop.f32.mrf.mxu0
      %v4081 = vadd.f32 0.0, %v4080
      %4082 = vdwg.mxu0
      %4115 = vrot.lane.b32.xlu0 %v3793, 16
      %v4116 = vpop.permute.xlu0 %4115
      %4117 = vrot.lane.b32.xlu0 %v3796, 16
      %v4118 = vpop.permute.xlu0 %4117
      %4119 = vrot.lane.b32.xlu0 %v3799, 16
      %v4120 = vpop.permute.xlu0 %4119
      %4121 = vrot.lane.b32.xlu0 %v3802, 16
      %v4122 = vpop.permute.xlu0 %4121
      %4123 = vrot.lane.b32.xlu0 %v3805, 16
      %v4124 = vpop.permute.xlu0 %4123
      %4125 = vrot.lane.b32.xlu0 %v3808, 16
      %v4126 = vpop.permute.xlu0 %4125
      %4127 = vrot.lane.b32.xlu0 %v3811, 16
      %v4128 = vpop.permute.xlu0 %4127
      %4129 = vrot.lane.b32.xlu0 %v3814, 16
      %v4130 = vpop.permute.xlu0 %4129
      %4131 = vrot.lane.b32.xlu0 %v3882, 16
      %v4132 = vpop.permute.xlu0 %4131
      %4133 = vrot.lane.b32.xlu0 %v3885, 16
      %v4134 = vpop.permute.xlu0 %4133
      %4135 = vrot.lane.b32.xlu0 %v3888, 16
      %v4136 = vpop.permute.xlu0 %4135
      %4137 = vrot.lane.b32.xlu0 %v3891, 16
      %v4138 = vpop.permute.xlu0 %4137
      %4139 = vrot.lane.b32.xlu0 %v3894, 16
      %v4140 = vpop.permute.xlu0 %4139
      %4141 = vrot.lane.b32.xlu0 %v3897, 16
      %v4142 = vpop.permute.xlu0 %4141
      %4143 = vrot.lane.b32.xlu0 %v3900, 16
      %v4144 = vpop.permute.xlu0 %4143
      %4145 = vrot.lane.b32.xlu0 %v3903, 16
      %v4146 = vpop.permute.xlu0 %4145
      %4147 = vrot.lane.b32.xlu0 %v3971, 16
      %v4148 = vpop.permute.xlu0 %4147
      %4149 = vrot.lane.b32.xlu0 %v3974, 16
      %v4150 = vpop.permute.xlu0 %4149
      %4151 = vrot.lane.b32.xlu0 %v3977, 16
      %v4152 = vpop.permute.xlu0 %4151
      %4153 = vrot.lane.b32.xlu0 %v3980, 16
      %v4154 = vpop.permute.xlu0 %4153
      %4155 = vrot.lane.b32.xlu0 %v3983, 16
      %v4156 = vpop.permute.xlu0 %4155
      %4157 = vrot.lane.b32.xlu0 %v3986, 16
      %v4158 = vpop.permute.xlu0 %4157
      %4159 = vrot.lane.b32.xlu0 %v3989, 16
      %v4160 = vpop.permute.xlu0 %4159
      %4161 = vrot.lane.b32.xlu0 %v3992, 16
      %v4162 = vpop.permute.xlu0 %4161
      %4163 = vrot.lane.b32.xlu0 %v4060, 16
      %v4164 = vpop.permute.xlu0 %4163
      %4165 = vrot.lane.b32.xlu0 %v4063, 16
      %v4166 = vpop.permute.xlu0 %4165
      %4167 = vrot.lane.b32.xlu0 %v4066, 16
      %v4168 = vpop.permute.xlu0 %4167
      %4169 = vrot.lane.b32.xlu0 %v4069, 16
      %v4170 = vpop.permute.xlu0 %4169
      %4171 = vrot.lane.b32.xlu0 %v4072, 16
      %v4172 = vpop.permute.xlu0 %4171
      %4173 = vrot.lane.b32.xlu0 %v4075, 16
      %v4174 = vpop.permute.xlu0 %4173
      %4175 = vrot.lane.b32.xlu0 %v4078, 16
      %v4176 = vpop.permute.xlu0 %4175
      %4177 = vrot.lane.b32.xlu0 %v4081, 16
      %v4178 = vpop.permute.xlu0 %4177
      %vm4211 = vcmask 195712
      %4212 = vst.msk [vmem:[#allocation2] sm:$0xff] %vm4211, %v4116
      %4213 = vst.msk [vmem:[#allocation2 + $0x8] sm:$0xff] %vm4211, %v4118
      %4214 = vst.msk [vmem:[#allocation2 + $0x10] sm:$0xff] %vm4211, %v4120
      %4215 = vst.msk [vmem:[#allocation2 + $0x18] sm:$0xff] %vm4211, %v4122
      %4216 = vst.msk [vmem:[#allocation2 + $0x20] sm:$0xff] %vm4211, %v4124
      %4217 = vst.msk [vmem:[#allocation2 + $0x28] sm:$0xff] %vm4211, %v4126
      %4218 = vst.msk [vmem:[#allocation2 + $0x30] sm:$0xff] %vm4211, %v4128
      %4219 = vst.msk [vmem:[#allocation2 + $0x38] sm:$0xff] %vm4211, %v4130
      %4220 = vst.msk [vmem:[#allocation2 + $0x40] sm:$0xff] %vm4211, %v4132
      %4221 = vst.msk [vmem:[#allocation2 + $0x48] sm:$0xff] %vm4211, %v4134
      %4222 = vst.msk [vmem:[#allocation2 + $0x50] sm:$0xff] %vm4211, %v4136
      %4223 = vst.msk [vmem:[#allocation2 + $0x58] sm:$0xff] %vm4211, %v4138
      %4224 = vst.msk [vmem:[#allocation2 + $0x60] sm:$0xff] %vm4211, %v4140
      %4225 = vst.msk [vmem:[#allocation2 + $0x68] sm:$0xff] %vm4211, %v4142
      %4226 = vst.msk [vmem:[#allocation2 + $0x70] sm:$0xff] %vm4211, %v4144
      %4227 = vst.msk [vmem:[#allocation2 + $0x78] sm:$0xff] %vm4211, %v4146
      %4228 = vst.msk [vmem:[#allocation2 + $0x80] sm:$0xff] %vm4211, %v4148
      %4229 = vst.msk [vmem:[#allocation2 + $0x88] sm:$0xff] %vm4211, %v4150
      %4230 = vst.msk [vmem:[#allocation2 + $0x90] sm:$0xff] %vm4211, %v4152
      %4231 = vst.msk [vmem:[#allocation2 + $0x98] sm:$0xff] %vm4211, %v4154
      %4232 = vst.msk [vmem:[#allocation2 + $0xa0] sm:$0xff] %vm4211, %v4156
      %4233 = vst.msk [vmem:[#allocation2 + $0xa8] sm:$0xff] %vm4211, %v4158
      %4234 = vst.msk [vmem:[#allocation2 + $0xb0] sm:$0xff] %vm4211, %v4160
      %4235 = vst.msk [vmem:[#allocation2 + $0xb8] sm:$0xff] %vm4211, %v4162
      %4236 = vst.msk [vmem:[#allocation2 + $0xc0] sm:$0xff] %vm4211, %v4164
      %4237 = vst.msk [vmem:[#allocation2 + $0xc8] sm:$0xff] %vm4211, %v4166
      %4238 = vst.msk [vmem:[#allocation2 + $0xd0] sm:$0xff] %vm4211, %v4168
      %4239 = vst.msk [vmem:[#allocation2 + $0xd8] sm:$0xff] %vm4211, %v4170
      %4240 = vst.msk [vmem:[#allocation2 + $0xe0] sm:$0xff] %vm4211, %v4172
      %4241 = vst.msk [vmem:[#allocation2 + $0xe8] sm:$0xff] %vm4211, %v4174
      %4242 = vst.msk [vmem:[#allocation2 + $0xf0] sm:$0xff] %vm4211, %v4176
      %4243 = vst.msk [vmem:[#allocation2 + $0xf8] sm:$0xff] %vm4211, %v4178
      %s4244 = scalar_lea.vmem %s3, 192
      %v4245 = vld [vmem:[%s4244] sm:$0xff]
      %v4246 = vld [vmem:[%s4244 + $0x8] sm:$0xff]
      %v4247 = vld [vmem:[%s4244 + $0x10] sm:$0xff]
      %v4248 = vld [vmem:[%s4244 + $0x18] sm:$0xff]
      %v4249 = vld [vmem:[%s4244 + $0x20] sm:$0xff]
      %v4250 = vld [vmem:[%s4244 + $0x28] sm:$0xff]
      %v4251 = vld [vmem:[%s4244 + $0x30] sm:$0xff]
      %v4252 = vld [vmem:[%s4244 + $0x38] sm:$0xff]
      %4253 = vrot.lane.b32.xlu0 %v415, 104
      %v4254 = vpop.permute.xlu0 %4253
      %4255 = vrot.lane.b32.xlu0 %v418, 104
      %v4256 = vpop.permute.xlu0 %4255
      %4257 = vrot.lane.b32.xlu0 %v421, 104
      %v4258 = vpop.permute.xlu0 %4257
      %4259 = vrot.lane.b32.xlu0 %v424, 104
      %v4260 = vpop.permute.xlu0 %4259
      %4261 = vrot.lane.b32.xlu0 %v427, 104
      %v4262 = vpop.permute.xlu0 %4261
      %4263 = vrot.lane.b32.xlu0 %v430, 104
      %v4264 = vpop.permute.xlu0 %4263
      %4265 = vrot.lane.b32.xlu0 %v433, 104
      %v4266 = vpop.permute.xlu0 %4265
      %4267 = vrot.lane.b32.xlu0 %v436, 104
      %v4268 = vpop.permute.xlu0 %4267
      %4269 = vrot.lane.b32.xlu0 %v415, 72
      %v4270 = vpop.permute.xlu0 %4269
      %4271 = vrot.lane.b32.xlu0 %v418, 72
      %v4272 = vpop.permute.xlu0 %4271
      %4273 = vrot.lane.b32.xlu0 %v421, 72
      %v4274 = vpop.permute.xlu0 %4273
      %4275 = vrot.lane.b32.xlu0 %v424, 72
      %v4276 = vpop.permute.xlu0 %4275
      %4277 = vrot.lane.b32.xlu0 %v427, 72
      %v4278 = vpop.permute.xlu0 %4277
      %4279 = vrot.lane.b32.xlu0 %v430, 72
      %v4280 = vpop.permute.xlu0 %4279
      %4281 = vrot.lane.b32.xlu0 %v433, 72
      %v4282 = vpop.permute.xlu0 %4281
      %4283 = vrot.lane.b32.xlu0 %v436, 72
      %v4284 = vpop.permute.xlu0 %4283
      %v4285 = vsel %vm542, %v4254, 0
      %v4287 = vsel %vm542, %v4256, 0
      %v4289 = vsel %vm542, %v4258, 0
      %v4291 = vsel %vm542, %v4260, 0
      %v4293 = vsel %vm542, %v4262, 0
      %v4295 = vsel %vm542, %v4264, 0
      %v4297 = vsel %vm542, %v4266, 0
      %v4299 = vsel %vm542, %v4268, 0
      %v4301 = vsel %vm542, %v4270, 0
      %v4303 = vsel %vm542, %v4272, 0
      %v4305 = vsel %vm542, %v4274, 0
      %v4307 = vsel %vm542, %v4276, 0
      %v4309 = vsel %vm542, %v4278, 0
      %v4311 = vsel %vm542, %v4280, 0
      %v4313 = vsel %vm542, %v4282, 0
      %v4315 = vsel %vm542, %v4284, 0
      %4317 = vmatpush.xpose.msra.mxu0 0.0
      %4318 = vmatpush.xpose.msra.mxu0 0.0
      %4319 = vmatpush.xpose.msra.mxu0 0.0
      %4320 = vmatpush.xpose.msra.mxu0 0.0
      %4321 = vmatpush.xpose.msra.mxu0 0.0
      %4322 = vmatpush.xpose.msra.mxu0 0.0
      %4323 = vmatpush.xpose.msra.mxu0 0.0
      %4324 = vmatpush.xpose.msra.mxu0 0.0
      %4325 = vmatpush.xpose.msra.mxu0 %v4315
      %4326 = vmatpush.xpose.msra.mxu0 %v4313
      %4327 = vmatpush.xpose.msra.mxu0 %v4311
      %4328 = vmatpush.xpose.msra.mxu0 %v4309
      %4329 = vmatpush.xpose.msra.mxu0 %v4307
      %4330 = vmatpush.xpose.msra.mxu0 %v4305
      %4331 = vmatpush.xpose.msra.mxu0 %v4303
      %4332 = vmatpush.xpose.msra.mxu0 %v4301
      %4333 = vmatmul.f32.gmra.mxu0 %v4285
      %v4334 = vpop.f32.mrf.mxu0
      %v4335 = vadd.f32 %v4245, %v4334
      %4336 = vmatmul.f32.gmra.mxu0 %v4287
      %v4337 = vpop.f32.mrf.mxu0
      %v4338 = vadd.f32 %v4246, %v4337
      %4339 = vmatmul.f32.gmra.mxu0 %v4289
      %v4340 = vpop.f32.mrf.mxu0
      %v4341 = vadd.f32 %v4247, %v4340
      %4342 = vmatmul.f32.gmra.mxu0 %v4291
      %v4343 = vpop.f32.mrf.mxu0
      %v4344 = vadd.f32 %v4248, %v4343
      %4345 = vmatmul.f32.gmra.mxu0 %v4293
      %v4346 = vpop.f32.mrf.mxu0
      %v4347 = vadd.f32 %v4249, %v4346
      %4348 = vmatmul.f32.gmra.mxu0 %v4295
      %v4349 = vpop.f32.mrf.mxu0
      %v4350 = vadd.f32 %v4250, %v4349
      %4351 = vmatmul.f32.gmra.mxu0 %v4297
      %v4352 = vpop.f32.mrf.mxu0
      %v4353 = vadd.f32 %v4251, %v4352
      %4354 = vmatmul.f32.gmra.mxu0 %v4299
      %v4355 = vpop.f32.mrf.mxu0
      %v4356 = vadd.f32 %v4252, %v4355
      %4357 = vdwg.mxu0
      %4358 = vrot.lane.b32.xlu0 %v439, 104
      %v4359 = vpop.permute.xlu0 %4358
      %4360 = vrot.lane.b32.xlu0 %v442, 104
      %v4361 = vpop.permute.xlu0 %4360
      %4362 = vrot.lane.b32.xlu0 %v445, 104
      %v4363 = vpop.permute.xlu0 %4362
      %4364 = vrot.lane.b32.xlu0 %v448, 104
      %v4365 = vpop.permute.xlu0 %4364
      %4366 = vrot.lane.b32.xlu0 %v451, 104
      %v4367 = vpop.permute.xlu0 %4366
      %4368 = vrot.lane.b32.xlu0 %v454, 104
      %v4369 = vpop.permute.xlu0 %4368
      %4370 = vrot.lane.b32.xlu0 %v457, 104
      %v4371 = vpop.permute.xlu0 %4370
      %4372 = vrot.lane.b32.xlu0 %v460, 104
      %v4373 = vpop.permute.xlu0 %4372
      %4374 = vrot.lane.b32.xlu0 %v439, 72
      %v4375 = vpop.permute.xlu0 %4374
      %4376 = vrot.lane.b32.xlu0 %v442, 72
      %v4377 = vpop.permute.xlu0 %4376
      %4378 = vrot.lane.b32.xlu0 %v445, 72
      %v4379 = vpop.permute.xlu0 %4378
      %4380 = vrot.lane.b32.xlu0 %v448, 72
      %v4381 = vpop.permute.xlu0 %4380
      %4382 = vrot.lane.b32.xlu0 %v451, 72
      %v4383 = vpop.permute.xlu0 %4382
      %4384 = vrot.lane.b32.xlu0 %v454, 72
      %v4385 = vpop.permute.xlu0 %4384
      %4386 = vrot.lane.b32.xlu0 %v457, 72
      %v4387 = vpop.permute.xlu0 %4386
      %4388 = vrot.lane.b32.xlu0 %v460, 72
      %v4389 = vpop.permute.xlu0 %4388
      %v4390 = vsel %vm542, %v4359, 0
      %v4392 = vsel %vm542, %v4361, 0
      %v4394 = vsel %vm542, %v4363, 0
      %v4396 = vsel %vm542, %v4365, 0
      %v4398 = vsel %vm542, %v4367, 0
      %v4400 = vsel %vm542, %v4369, 0
      %v4402 = vsel %vm542, %v4371, 0
      %v4404 = vsel %vm542, %v4373, 0
      %v4406 = vsel %vm542, %v4375, 0
      %v4408 = vsel %vm542, %v4377, 0
      %v4410 = vsel %vm542, %v4379, 0
      %v4412 = vsel %vm542, %v4381, 0
      %v4414 = vsel %vm542, %v4383, 0
      %v4416 = vsel %vm542, %v4385, 0
      %v4418 = vsel %vm542, %v4387, 0
      %v4420 = vsel %vm542, %v4389, 0
      %4422 = vmatpush.xpose.msra.mxu0 0.0
      %4423 = vmatpush.xpose.msra.mxu0 0.0
      %4424 = vmatpush.xpose.msra.mxu0 0.0
      %4425 = vmatpush.xpose.msra.mxu0 0.0
      %4426 = vmatpush.xpose.msra.mxu0 0.0
      %4427 = vmatpush.xpose.msra.mxu0 0.0
      %4428 = vmatpush.xpose.msra.mxu0 0.0
      %4429 = vmatpush.xpose.msra.mxu0 0.0
      %4430 = vmatpush.xpose.msra.mxu0 %v4420
      %4431 = vmatpush.xpose.msra.mxu0 %v4418
      %4432 = vmatpush.xpose.msra.mxu0 %v4416
      %4433 = vmatpush.xpose.msra.mxu0 %v4414
      %4434 = vmatpush.xpose.msra.mxu0 %v4412
      %4435 = vmatpush.xpose.msra.mxu0 %v4410
      %4436 = vmatpush.xpose.msra.mxu0 %v4408
      %4437 = vmatpush.xpose.msra.mxu0 %v4406
      %4438 = vmatmul.f32.gmra.mxu0 %v4390
      %v4439 = vpop.f32.mrf.mxu0
      %v4440 = vadd.f32 %v4245, %v4439
      %4441 = vmatmul.f32.gmra.mxu0 %v4392
      %v4442 = vpop.f32.mrf.mxu0
      %v4443 = vadd.f32 %v4246, %v4442
      %4444 = vmatmul.f32.gmra.mxu0 %v4394
      %v4445 = vpop.f32.mrf.mxu0
      %v4446 = vadd.f32 %v4247, %v4445
      %4447 = vmatmul.f32.gmra.mxu0 %v4396
      %v4448 = vpop.f32.mrf.mxu0
      %v4449 = vadd.f32 %v4248, %v4448
      %4450 = vmatmul.f32.gmra.mxu0 %v4398
      %v4451 = vpop.f32.mrf.mxu0
      %v4452 = vadd.f32 %v4249, %v4451
      %4453 = vmatmul.f32.gmra.mxu0 %v4400
      %v4454 = vpop.f32.mrf.mxu0
      %v4455 = vadd.f32 %v4250, %v4454
      %4456 = vmatmul.f32.gmra.mxu0 %v4402
      %v4457 = vpop.f32.mrf.mxu0
      %v4458 = vadd.f32 %v4251, %v4457
      %4459 = vmatmul.f32.gmra.mxu0 %v4404
      %v4460 = vpop.f32.mrf.mxu0
      %v4461 = vadd.f32 %v4252, %v4460
      %4462 = vdwg.mxu0
      %4463 = vrot.lane.b32.xlu0 %v463, 104
      %v4464 = vpop.permute.xlu0 %4463
      %4465 = vrot.lane.b32.xlu0 %v466, 104
      %v4466 = vpop.permute.xlu0 %4465
      %4467 = vrot.lane.b32.xlu0 %v469, 104
      %v4468 = vpop.permute.xlu0 %4467
      %4469 = vrot.lane.b32.xlu0 %v472, 104
      %v4470 = vpop.permute.xlu0 %4469
      %4471 = vrot.lane.b32.xlu0 %v475, 104
      %v4472 = vpop.permute.xlu0 %4471
      %4473 = vrot.lane.b32.xlu0 %v478, 104
      %v4474 = vpop.permute.xlu0 %4473
      %4475 = vrot.lane.b32.xlu0 %v481, 104
      %v4476 = vpop.permute.xlu0 %4475
      %4477 = vrot.lane.b32.xlu0 %v484, 104
      %v4478 = vpop.permute.xlu0 %4477
      %4479 = vrot.lane.b32.xlu0 %v463, 72
      %v4480 = vpop.permute.xlu0 %4479
      %4481 = vrot.lane.b32.xlu0 %v466, 72
      %v4482 = vpop.permute.xlu0 %4481
      %4483 = vrot.lane.b32.xlu0 %v469, 72
      %v4484 = vpop.permute.xlu0 %4483
      %4485 = vrot.lane.b32.xlu0 %v472, 72
      %v4486 = vpop.permute.xlu0 %4485
      %4487 = vrot.lane.b32.xlu0 %v475, 72
      %v4488 = vpop.permute.xlu0 %4487
      %4489 = vrot.lane.b32.xlu0 %v478, 72
      %v4490 = vpop.permute.xlu0 %4489
      %4491 = vrot.lane.b32.xlu0 %v481, 72
      %v4492 = vpop.permute.xlu0 %4491
      %4493 = vrot.lane.b32.xlu0 %v484, 72
      %v4494 = vpop.permute.xlu0 %4493
      %v4495 = vsel %vm542, %v4464, 0
      %v4497 = vsel %vm542, %v4466, 0
      %v4499 = vsel %vm542, %v4468, 0
      %v4501 = vsel %vm542, %v4470, 0
      %v4503 = vsel %vm542, %v4472, 0
      %v4505 = vsel %vm542, %v4474, 0
      %v4507 = vsel %vm542, %v4476, 0
      %v4509 = vsel %vm542, %v4478, 0
      %v4511 = vsel %vm542, %v4480, 0
      %v4513 = vsel %vm542, %v4482, 0
      %v4515 = vsel %vm542, %v4484, 0
      %v4517 = vsel %vm542, %v4486, 0
      %v4519 = vsel %vm542, %v4488, 0
      %v4521 = vsel %vm542, %v4490, 0
      %v4523 = vsel %vm542, %v4492, 0
      %v4525 = vsel %vm542, %v4494, 0
      %4527 = vmatpush.xpose.msra.mxu0 0.0
      %4528 = vmatpush.xpose.msra.mxu0 0.0
      %4529 = vmatpush.xpose.msra.mxu0 0.0
      %4530 = vmatpush.xpose.msra.mxu0 0.0
      %4531 = vmatpush.xpose.msra.mxu0 0.0
      %4532 = vmatpush.xpose.msra.mxu0 0.0
      %4533 = vmatpush.xpose.msra.mxu0 0.0
      %4534 = vmatpush.xpose.msra.mxu0 0.0
      %4535 = vmatpush.xpose.msra.mxu0 %v4525
      %4536 = vmatpush.xpose.msra.mxu0 %v4523
      %4537 = vmatpush.xpose.msra.mxu0 %v4521
      %4538 = vmatpush.xpose.msra.mxu0 %v4519
      %4539 = vmatpush.xpose.msra.mxu0 %v4517
      %4540 = vmatpush.xpose.msra.mxu0 %v4515
      %4541 = vmatpush.xpose.msra.mxu0 %v4513
      %4542 = vmatpush.xpose.msra.mxu0 %v4511
      %4543 = vmatmul.f32.gmra.mxu0 %v4495
      %v4544 = vpop.f32.mrf.mxu0
      %v4545 = vadd.f32 %v4245, %v4544
      %4546 = vmatmul.f32.gmra.mxu0 %v4497
      %v4547 = vpop.f32.mrf.mxu0
      %v4548 = vadd.f32 %v4246, %v4547
      %4549 = vmatmul.f32.gmra.mxu0 %v4499
      %v4550 = vpop.f32.mrf.mxu0
      %v4551 = vadd.f32 %v4247, %v4550
      %4552 = vmatmul.f32.gmra.mxu0 %v4501
      %v4553 = vpop.f32.mrf.mxu0
      %v4554 = vadd.f32 %v4248, %v4553
      %4555 = vmatmul.f32.gmra.mxu0 %v4503
      %v4556 = vpop.f32.mrf.mxu0
      %v4557 = vadd.f32 %v4249, %v4556
      %4558 = vmatmul.f32.gmra.mxu0 %v4505
      %v4559 = vpop.f32.mrf.mxu0
      %v4560 = vadd.f32 %v4250, %v4559
      %4561 = vmatmul.f32.gmra.mxu0 %v4507
      %v4562 = vpop.f32.mrf.mxu0
      %v4563 = vadd.f32 %v4251, %v4562
      %4564 = vmatmul.f32.gmra.mxu0 %v4509
      %v4565 = vpop.f32.mrf.mxu0
      %v4566 = vadd.f32 %v4252, %v4565
      %4567 = vdwg.mxu0
      %4568 = vrot.lane.b32.xlu0 %v487, 104
      %v4569 = vpop.permute.xlu0 %4568
      %4570 = vrot.lane.b32.xlu0 %v490, 104
      %v4571 = vpop.permute.xlu0 %4570
      %4572 = vrot.lane.b32.xlu0 %v493, 104
      %v4573 = vpop.permute.xlu0 %4572
      %4574 = vrot.lane.b32.xlu0 %v496, 104
      %v4575 = vpop.permute.xlu0 %4574
      %4576 = vrot.lane.b32.xlu0 %v499, 104
      %v4577 = vpop.permute.xlu0 %4576
      %4578 = vrot.lane.b32.xlu0 %v502, 104
      %v4579 = vpop.permute.xlu0 %4578
      %4580 = vrot.lane.b32.xlu0 %v505, 104
      %v4581 = vpop.permute.xlu0 %4580
      %4582 = vrot.lane.b32.xlu0 %v508, 104
      %v4583 = vpop.permute.xlu0 %4582
      %4584 = vrot.lane.b32.xlu0 %v487, 72
      %v4585 = vpop.permute.xlu0 %4584
      %4586 = vrot.lane.b32.xlu0 %v490, 72
      %v4587 = vpop.permute.xlu0 %4586
      %4588 = vrot.lane.b32.xlu0 %v493, 72
      %v4589 = vpop.permute.xlu0 %4588
      %4590 = vrot.lane.b32.xlu0 %v496, 72
      %v4591 = vpop.permute.xlu0 %4590
      %4592 = vrot.lane.b32.xlu0 %v499, 72
      %v4593 = vpop.permute.xlu0 %4592
      %4594 = vrot.lane.b32.xlu0 %v502, 72
      %v4595 = vpop.permute.xlu0 %4594
      %4596 = vrot.lane.b32.xlu0 %v505, 72
      %v4597 = vpop.permute.xlu0 %4596
      %4598 = vrot.lane.b32.xlu0 %v508, 72
      %v4599 = vpop.permute.xlu0 %4598
      %v4600 = vsel %vm542, %v4569, 0
      %v4602 = vsel %vm542, %v4571, 0
      %v4604 = vsel %vm542, %v4573, 0
      %v4606 = vsel %vm542, %v4575, 0
      %v4608 = vsel %vm542, %v4577, 0
      %v4610 = vsel %vm542, %v4579, 0
      %v4612 = vsel %vm542, %v4581, 0
      %v4614 = vsel %vm542, %v4583, 0
      %v4616 = vsel %vm542, %v4585, 0
      %v4618 = vsel %vm542, %v4587, 0
      %v4620 = vsel %vm542, %v4589, 0
      %v4622 = vsel %vm542, %v4591, 0
      %v4624 = vsel %vm542, %v4593, 0
      %v4626 = vsel %vm542, %v4595, 0
      %v4628 = vsel %vm542, %v4597, 0
      %v4630 = vsel %vm542, %v4599, 0
      %4632 = vmatpush.xpose.msra.mxu0 0.0
      %4633 = vmatpush.xpose.msra.mxu0 0.0
      %4634 = vmatpush.xpose.msra.mxu0 0.0
      %4635 = vmatpush.xpose.msra.mxu0 0.0
      %4636 = vmatpush.xpose.msra.mxu0 0.0
      %4637 = vmatpush.xpose.msra.mxu0 0.0
      %4638 = vmatpush.xpose.msra.mxu0 0.0
      %4639 = vmatpush.xpose.msra.mxu0 0.0
      %4640 = vmatpush.xpose.msra.mxu0 %v4630
      %4641 = vmatpush.xpose.msra.mxu0 %v4628
      %4642 = vmatpush.xpose.msra.mxu0 %v4626
      %4643 = vmatpush.xpose.msra.mxu0 %v4624
      %4644 = vmatpush.xpose.msra.mxu0 %v4622
      %4645 = vmatpush.xpose.msra.mxu0 %v4620
      %4646 = vmatpush.xpose.msra.mxu0 %v4618
      %4647 = vmatpush.xpose.msra.mxu0 %v4616
      %4648 = vmatmul.f32.gmra.mxu0 %v4600
      %v4649 = vpop.f32.mrf.mxu0
      %v4650 = vadd.f32 %v4245, %v4649
      %4651 = vmatmul.f32.gmra.mxu0 %v4602
      %v4652 = vpop.f32.mrf.mxu0
      %v4653 = vadd.f32 %v4246, %v4652
      %4654 = vmatmul.f32.gmra.mxu0 %v4604
      %v4655 = vpop.f32.mrf.mxu0
      %v4656 = vadd.f32 %v4247, %v4655
      %4657 = vmatmul.f32.gmra.mxu0 %v4606
      %v4658 = vpop.f32.mrf.mxu0
      %v4659 = vadd.f32 %v4248, %v4658
      %4660 = vmatmul.f32.gmra.mxu0 %v4608
      %v4661 = vpop.f32.mrf.mxu0
      %v4662 = vadd.f32 %v4249, %v4661
      %4663 = vmatmul.f32.gmra.mxu0 %v4610
      %v4664 = vpop.f32.mrf.mxu0
      %v4665 = vadd.f32 %v4250, %v4664
      %4666 = vmatmul.f32.gmra.mxu0 %v4612
      %v4667 = vpop.f32.mrf.mxu0
      %v4668 = vadd.f32 %v4251, %v4667
      %4669 = vmatmul.f32.gmra.mxu0 %v4614
      %v4670 = vpop.f32.mrf.mxu0
      %v4671 = vadd.f32 %v4252, %v4670
      %4672 = vdwg.mxu0
      %v4673 = vsel %vm907, %v4335, -inf
      %4674 = vmax.xlane.f32.xlu0 %v4673
      %v4675 = vpop.xlane.xlu0 %4674
      %v4676 = vsel %vm907, %v4338, -inf
      %4677 = vmax.xlane.f32.xlu0 %v4676
      %v4678 = vpop.xlane.xlu0 %4677
      %v4679 = vsel %vm907, %v4341, -inf
      %4680 = vmax.xlane.f32.xlu0 %v4679
      %v4681 = vpop.xlane.xlu0 %4680
      %v4682 = vsel %vm907, %v4344, -inf
      %4683 = vmax.xlane.f32.xlu0 %v4682
      %v4684 = vpop.xlane.xlu0 %4683
      %v4685 = vsel %vm907, %v4347, -inf
      %4686 = vmax.xlane.f32.xlu0 %v4685
      %v4687 = vpop.xlane.xlu0 %4686
      %v4688 = vsel %vm907, %v4350, -inf
      %4689 = vmax.xlane.f32.xlu0 %v4688
      %v4690 = vpop.xlane.xlu0 %4689
      %v4691 = vsel %vm907, %v4353, -inf
      %4692 = vmax.xlane.f32.xlu0 %v4691
      %v4693 = vpop.xlane.xlu0 %4692
      %v4694 = vsel %vm907, %v4356, -inf
      %4695 = vmax.xlane.f32.xlu0 %v4694
      %v4696 = vpop.xlane.xlu0 %4695
      %v4697 = vsel %vm907, %v4440, -inf
      %4698 = vmax.xlane.f32.xlu0 %v4697
      %v4699 = vpop.xlane.xlu0 %4698
      %v4700 = vsel %vm907, %v4443, -inf
      %4701 = vmax.xlane.f32.xlu0 %v4700
      %v4702 = vpop.xlane.xlu0 %4701
      %v4703 = vsel %vm907, %v4446, -inf
      %4704 = vmax.xlane.f32.xlu0 %v4703
      %v4705 = vpop.xlane.xlu0 %4704
      %v4706 = vsel %vm907, %v4449, -inf
      %4707 = vmax.xlane.f32.xlu0 %v4706
      %v4708 = vpop.xlane.xlu0 %4707
      %v4709 = vsel %vm907, %v4452, -inf
      %4710 = vmax.xlane.f32.xlu0 %v4709
      %v4711 = vpop.xlane.xlu0 %4710
      %v4712 = vsel %vm907, %v4455, -inf
      %4713 = vmax.xlane.f32.xlu0 %v4712
      %v4714 = vpop.xlane.xlu0 %4713
      %v4715 = vsel %vm907, %v4458, -inf
      %4716 = vmax.xlane.f32.xlu0 %v4715
      %v4717 = vpop.xlane.xlu0 %4716
      %v4718 = vsel %vm907, %v4461, -inf
      %4719 = vmax.xlane.f32.xlu0 %v4718
      %v4720 = vpop.xlane.xlu0 %4719
      %v4721 = vsel %vm907, %v4545, -inf
      %4722 = vmax.xlane.f32.xlu0 %v4721
      %v4723 = vpop.xlane.xlu0 %4722
      %v4724 = vsel %vm907, %v4548, -inf
      %4725 = vmax.xlane.f32.xlu0 %v4724
      %v4726 = vpop.xlane.xlu0 %4725
      %v4727 = vsel %vm907, %v4551, -inf
      %4728 = vmax.xlane.f32.xlu0 %v4727
      %v4729 = vpop.xlane.xlu0 %4728
      %v4730 = vsel %vm907, %v4554, -inf
      %4731 = vmax.xlane.f32.xlu0 %v4730
      %v4732 = vpop.xlane.xlu0 %4731
      %v4733 = vsel %vm907, %v4557, -inf
      %4734 = vmax.xlane.f32.xlu0 %v4733
      %v4735 = vpop.xlane.xlu0 %4734
      %v4736 = vsel %vm907, %v4560, -inf
      %4737 = vmax.xlane.f32.xlu0 %v4736
      %v4738 = vpop.xlane.xlu0 %4737
      %v4739 = vsel %vm907, %v4563, -inf
      %4740 = vmax.xlane.f32.xlu0 %v4739
      %v4741 = vpop.xlane.xlu0 %4740
      %v4742 = vsel %vm907, %v4566, -inf
      %4743 = vmax.xlane.f32.xlu0 %v4742
      %v4744 = vpop.xlane.xlu0 %4743
      %v4745 = vsel %vm907, %v4650, -inf
      %4746 = vmax.xlane.f32.xlu0 %v4745
      %v4747 = vpop.xlane.xlu0 %4746
      %v4748 = vsel %vm907, %v4653, -inf
      %4749 = vmax.xlane.f32.xlu0 %v4748
      %v4750 = vpop.xlane.xlu0 %4749
      %v4751 = vsel %vm907, %v4656, -inf
      %4752 = vmax.xlane.f32.xlu0 %v4751
      %v4753 = vpop.xlane.xlu0 %4752
      %v4754 = vsel %vm907, %v4659, -inf
      %4755 = vmax.xlane.f32.xlu0 %v4754
      %v4756 = vpop.xlane.xlu0 %4755
      %v4757 = vsel %vm907, %v4662, -inf
      %4758 = vmax.xlane.f32.xlu0 %v4757
      %v4759 = vpop.xlane.xlu0 %4758
      %v4760 = vsel %vm907, %v4665, -inf
      %4761 = vmax.xlane.f32.xlu0 %v4760
      %v4762 = vpop.xlane.xlu0 %4761
      %v4763 = vsel %vm907, %v4668, -inf
      %4764 = vmax.xlane.f32.xlu0 %v4763
      %v4765 = vpop.xlane.xlu0 %4764
      %v4766 = vsel %vm907, %v4671, -inf
      %4767 = vmax.xlane.f32.xlu0 %v4766
      %v4768 = vpop.xlane.xlu0 %4767
      %v4769 = vsub.f32 %v4335, %v4675
      %v4770 = vsub.f32 %v4338, %v4678
      %v4771 = vsub.f32 %v4341, %v4681
      %v4772 = vsub.f32 %v4344, %v4684
      %v4773 = vsub.f32 %v4347, %v4687
      %v4774 = vsub.f32 %v4350, %v4690
      %v4775 = vsub.f32 %v4353, %v4693
      %v4776 = vsub.f32 %v4356, %v4696
      %v4777 = vsub.f32 %v4440, %v4699
      %v4778 = vsub.f32 %v4443, %v4702
      %v4779 = vsub.f32 %v4446, %v4705
      %v4780 = vsub.f32 %v4449, %v4708
      %v4781 = vsub.f32 %v4452, %v4711
      %v4782 = vsub.f32 %v4455, %v4714
      %v4783 = vsub.f32 %v4458, %v4717
      %v4784 = vsub.f32 %v4461, %v4720
      %v4785 = vsub.f32 %v4545, %v4723
      %v4786 = vsub.f32 %v4548, %v4726
      %v4787 = vsub.f32 %v4551, %v4729
      %v4788 = vsub.f32 %v4554, %v4732
      %v4789 = vsub.f32 %v4557, %v4735
      %v4790 = vsub.f32 %v4560, %v4738
      %v4791 = vsub.f32 %v4563, %v4741
      %v4792 = vsub.f32 %v4566, %v4744
      %v4793 = vsub.f32 %v4650, %v4747
      %v4794 = vsub.f32 %v4653, %v4750
      %v4795 = vsub.f32 %v4656, %v4753
      %v4796 = vsub.f32 %v4659, %v4756
      %v4797 = vsub.f32 %v4662, %v4759
      %v4798 = vsub.f32 %v4665, %v4762
      %v4799 = vsub.f32 %v4668, %v4765
      %v4800 = vsub.f32 %v4671, %v4768
      %v4801 = vmul.f32 %v4769, 1.442695
      %v4802 = vpow.pop %v4801
      %v4803 = vmul.f32 %v4770, 1.442695
      %v4804 = vpow.pop %v4803
      %v4805 = vmul.f32 %v4771, 1.442695
      %v4806 = vpow.pop %v4805
      %v4807 = vmul.f32 %v4772, 1.442695
      %v4808 = vpow.pop %v4807
      %v4809 = vmul.f32 %v4773, 1.442695
      %v4810 = vpow.pop %v4809
      %v4811 = vmul.f32 %v4774, 1.442695
      %v4812 = vpow.pop %v4811
      %v4813 = vmul.f32 %v4775, 1.442695
      %v4814 = vpow.pop %v4813
      %v4815 = vmul.f32 %v4776, 1.442695
      %v4816 = vpow.pop %v4815
      %v4817 = vmul.f32 %v4777, 1.442695
      %v4818 = vpow.pop %v4817
      %v4819 = vmul.f32 %v4778, 1.442695
      %v4820 = vpow.pop %v4819
      %v4821 = vmul.f32 %v4779, 1.442695
      %v4822 = vpow.pop %v4821
      %v4823 = vmul.f32 %v4780, 1.442695
      %v4824 = vpow.pop %v4823
      %v4825 = vmul.f32 %v4781, 1.442695
      %v4826 = vpow.pop %v4825
      %v4827 = vmul.f32 %v4782, 1.442695
      %v4828 = vpow.pop %v4827
      %v4829 = vmul.f32 %v4783, 1.442695
      %v4830 = vpow.pop %v4829
      %v4831 = vmul.f32 %v4784, 1.442695
      %v4832 = vpow.pop %v4831
      %v4833 = vmul.f32 %v4785, 1.442695
      %v4834 = vpow.pop %v4833
      %v4835 = vmul.f32 %v4786, 1.442695
      %v4836 = vpow.pop %v4835
      %v4837 = vmul.f32 %v4787, 1.442695
      %v4838 = vpow.pop %v4837
      %v4839 = vmul.f32 %v4788, 1.442695
      %v4840 = vpow.pop %v4839
      %v4841 = vmul.f32 %v4789, 1.442695
      %v4842 = vpow.pop %v4841
      %v4843 = vmul.f32 %v4790, 1.442695
      %v4844 = vpow.pop %v4843
      %v4845 = vmul.f32 %v4791, 1.442695
      %v4846 = vpow.pop %v4845
      %v4847 = vmul.f32 %v4792, 1.442695
      %v4848 = vpow.pop %v4847
      %v4849 = vmul.f32 %v4793, 1.442695
      %v4850 = vpow.pop %v4849
      %v4851 = vmul.f32 %v4794, 1.442695
      %v4852 = vpow.pop %v4851
      %v4853 = vmul.f32 %v4795, 1.442695
      %v4854 = vpow.pop %v4853
      %v4855 = vmul.f32 %v4796, 1.442695
      %v4856 = vpow.pop %v4855
      %v4857 = vmul.f32 %v4797, 1.442695
      %v4858 = vpow.pop %v4857
      %v4859 = vmul.f32 %v4798, 1.442695
      %v4860 = vpow.pop %v4859
      %v4861 = vmul.f32 %v4799, 1.442695
      %v4862 = vpow.pop %v4861
      %v4863 = vmul.f32 %v4800, 1.442695
      %v4864 = vpow.pop %v4863
      %v4865 = vsel %vm907, %v4802, 0.0
      %4866 = vadd.xlane.f32.xlu0 %v4865
      %v4867 = vpop.xlane.xlu0 %4866
      %v4868 = vsel %vm907, %v4804, 0.0
      %4869 = vadd.xlane.f32.xlu0 %v4868
      %v4870 = vpop.xlane.xlu0 %4869
      %v4871 = vsel %vm907, %v4806, 0.0
      %4872 = vadd.xlane.f32.xlu0 %v4871
      %v4873 = vpop.xlane.xlu0 %4872
      %v4874 = vsel %vm907, %v4808, 0.0
      %4875 = vadd.xlane.f32.xlu0 %v4874
      %v4876 = vpop.xlane.xlu0 %4875
      %v4877 = vsel %vm907, %v4810, 0.0
      %4878 = vadd.xlane.f32.xlu0 %v4877
      %v4879 = vpop.xlane.xlu0 %4878
      %v4880 = vsel %vm907, %v4812, 0.0
      %4881 = vadd.xlane.f32.xlu0 %v4880
      %v4882 = vpop.xlane.xlu0 %4881
      %v4883 = vsel %vm907, %v4814, 0.0
      %4884 = vadd.xlane.f32.xlu0 %v4883
      %v4885 = vpop.xlane.xlu0 %4884
      %v4886 = vsel %vm907, %v4816, 0.0
      %4887 = vadd.xlane.f32.xlu0 %v4886
      %v4888 = vpop.xlane.xlu0 %4887
      %v4889 = vsel %vm907, %v4818, 0.0
      %4890 = vadd.xlane.f32.xlu0 %v4889
      %v4891 = vpop.xlane.xlu0 %4890
      %v4892 = vsel %vm907, %v4820, 0.0
      %4893 = vadd.xlane.f32.xlu0 %v4892
      %v4894 = vpop.xlane.xlu0 %4893
      %v4895 = vsel %vm907, %v4822, 0.0
      %4896 = vadd.xlane.f32.xlu0 %v4895
      %v4897 = vpop.xlane.xlu0 %4896
      %v4898 = vsel %vm907, %v4824, 0.0
      %4899 = vadd.xlane.f32.xlu0 %v4898
      %v4900 = vpop.xlane.xlu0 %4899
      %v4901 = vsel %vm907, %v4826, 0.0
      %4902 = vadd.xlane.f32.xlu0 %v4901
      %v4903 = vpop.xlane.xlu0 %4902
      %v4904 = vsel %vm907, %v4828, 0.0
      %4905 = vadd.xlane.f32.xlu0 %v4904
      %v4906 = vpop.xlane.xlu0 %4905
      %v4907 = vsel %vm907, %v4830, 0.0
      %4908 = vadd.xlane.f32.xlu0 %v4907
      %v4909 = vpop.xlane.xlu0 %4908
      %v4910 = vsel %vm907, %v4832, 0.0
      %4911 = vadd.xlane.f32.xlu0 %v4910
      %v4912 = vpop.xlane.xlu0 %4911
      %v4913 = vsel %vm907, %v4834, 0.0
      %4914 = vadd.xlane.f32.xlu0 %v4913
      %v4915 = vpop.xlane.xlu0 %4914
      %v4916 = vsel %vm907, %v4836, 0.0
      %4917 = vadd.xlane.f32.xlu0 %v4916
      %v4918 = vpop.xlane.xlu0 %4917
      %v4919 = vsel %vm907, %v4838, 0.0
      %4920 = vadd.xlane.f32.xlu0 %v4919
      %v4921 = vpop.xlane.xlu0 %4920
      %v4922 = vsel %vm907, %v4840, 0.0
      %4923 = vadd.xlane.f32.xlu0 %v4922
      %v4924 = vpop.xlane.xlu0 %4923
      %v4925 = vsel %vm907, %v4842, 0.0
      %4926 = vadd.xlane.f32.xlu0 %v4925
      %v4927 = vpop.xlane.xlu0 %4926
      %v4928 = vsel %vm907, %v4844, 0.0
      %4929 = vadd.xlane.f32.xlu0 %v4928
      %v4930 = vpop.xlane.xlu0 %4929
      %v4931 = vsel %vm907, %v4846, 0.0
      %4932 = vadd.xlane.f32.xlu0 %v4931
      %v4933 = vpop.xlane.xlu0 %4932
      %v4934 = vsel %vm907, %v4848, 0.0
      %4935 = vadd.xlane.f32.xlu0 %v4934
      %v4936 = vpop.xlane.xlu0 %4935
      %v4937 = vsel %vm907, %v4850, 0.0
      %4938 = vadd.xlane.f32.xlu0 %v4937
      %v4939 = vpop.xlane.xlu0 %4938
      %v4940 = vsel %vm907, %v4852, 0.0
      %4941 = vadd.xlane.f32.xlu0 %v4940
      %v4942 = vpop.xlane.xlu0 %4941
      %v4943 = vsel %vm907, %v4854, 0.0
      %4944 = vadd.xlane.f32.xlu0 %v4943
      %v4945 = vpop.xlane.xlu0 %4944
      %v4946 = vsel %vm907, %v4856, 0.0
      %4947 = vadd.xlane.f32.xlu0 %v4946
      %v4948 = vpop.xlane.xlu0 %4947
      %v4949 = vsel %vm907, %v4858, 0.0
      %4950 = vadd.xlane.f32.xlu0 %v4949
      %v4951 = vpop.xlane.xlu0 %4950
      %v4952 = vsel %vm907, %v4860, 0.0
      %4953 = vadd.xlane.f32.xlu0 %v4952
      %v4954 = vpop.xlane.xlu0 %4953
      %v4955 = vsel %vm907, %v4862, 0.0
      %4956 = vadd.xlane.f32.xlu0 %v4955
      %v4957 = vpop.xlane.xlu0 %4956
      %v4958 = vsel %vm907, %v4864, 0.0
      %4959 = vadd.xlane.f32.xlu0 %v4958
      %v4960 = vpop.xlane.xlu0 %4959
      %v4961 = vrcp.pop %v4867
      %v4962 = vrcp.pop %v4870
      %v4963 = vrcp.pop %v4873
      %v4964 = vrcp.pop %v4876
      %v4965 = vrcp.pop %v4879
      %v4966 = vrcp.pop %v4882
      %v4967 = vrcp.pop %v4885
      %v4968 = vrcp.pop %v4888
      %v4969 = vrcp.pop %v4891
      %v4970 = vrcp.pop %v4894
      %v4971 = vrcp.pop %v4897
      %v4972 = vrcp.pop %v4900
      %v4973 = vrcp.pop %v4903
      %v4974 = vrcp.pop %v4906
      %v4975 = vrcp.pop %v4909
      %v4976 = vrcp.pop %v4912
      %v4977 = vrcp.pop %v4915
      %v4978 = vrcp.pop %v4918
      %v4979 = vrcp.pop %v4921
      %v4980 = vrcp.pop %v4924
      %v4981 = vrcp.pop %v4927
      %v4982 = vrcp.pop %v4930
      %v4983 = vrcp.pop %v4933
      %v4984 = vrcp.pop %v4936
      %v4985 = vrcp.pop %v4939
      %v4986 = vrcp.pop %v4942
      %v4987 = vrcp.pop %v4945
      %v4988 = vrcp.pop %v4948
      %v4989 = vrcp.pop %v4951
      %v4990 = vrcp.pop %v4954
      %v4991 = vrcp.pop %v4957
      %v4992 = vrcp.pop %v4960
      %v4993 = vmul.f32 %v4802, %v4961
      %v4994 = vmul.f32 %v4804, %v4962
      %v4995 = vmul.f32 %v4806, %v4963
      %v4996 = vmul.f32 %v4808, %v4964
      %v4997 = vmul.f32 %v4810, %v4965
      %v4998 = vmul.f32 %v4812, %v4966
      %v4999 = vmul.f32 %v4814, %v4967
      %v5000 = vmul.f32 %v4816, %v4968
      %v5001 = vmul.f32 %v4818, %v4969
      %v5002 = vmul.f32 %v4820, %v4970
      %v5003 = vmul.f32 %v4822, %v4971
      %v5004 = vmul.f32 %v4824, %v4972
      %v5005 = vmul.f32 %v4826, %v4973
      %v5006 = vmul.f32 %v4828, %v4974
      %v5007 = vmul.f32 %v4830, %v4975
      %v5008 = vmul.f32 %v4832, %v4976
      %v5009 = vmul.f32 %v4834, %v4977
      %v5010 = vmul.f32 %v4836, %v4978
      %v5011 = vmul.f32 %v4838, %v4979
      %v5012 = vmul.f32 %v4840, %v4980
      %v5013 = vmul.f32 %v4842, %v4981
      %v5014 = vmul.f32 %v4844, %v4982
      %v5015 = vmul.f32 %v4846, %v4983
      %v5016 = vmul.f32 %v4848, %v4984
      %v5017 = vmul.f32 %v4850, %v4985
      %v5018 = vmul.f32 %v4852, %v4986
      %v5019 = vmul.f32 %v4854, %v4987
      %v5020 = vmul.f32 %v4856, %v4988
      %v5021 = vmul.f32 %v4858, %v4989
      %v5022 = vmul.f32 %v4860, %v4990
      %v5023 = vmul.f32 %v4862, %v4991
      %v5024 = vmul.f32 %v4864, %v4992
      %5025 = vrot.lane.b32.xlu0 %v415, 40
      %v5026 = vpop.permute.xlu0 %5025
      %5027 = vrot.lane.b32.xlu0 %v418, 40
      %v5028 = vpop.permute.xlu0 %5027
      %5029 = vrot.lane.b32.xlu0 %v421, 40
      %v5030 = vpop.permute.xlu0 %5029
      %5031 = vrot.lane.b32.xlu0 %v424, 40
      %v5032 = vpop.permute.xlu0 %5031
      %5033 = vrot.lane.b32.xlu0 %v427, 40
      %v5034 = vpop.permute.xlu0 %5033
      %5035 = vrot.lane.b32.xlu0 %v430, 40
      %v5036 = vpop.permute.xlu0 %5035
      %5037 = vrot.lane.b32.xlu0 %v433, 40
      %v5038 = vpop.permute.xlu0 %5037
      %5039 = vrot.lane.b32.xlu0 %v436, 40
      %v5040 = vpop.permute.xlu0 %5039
      %v5050 = vsel %vm907, %v4993, 0
      %v5053 = vsel %vm907, %v4994, 0
      %v5056 = vsel %vm907, %v4995, 0
      %v5059 = vsel %vm907, %v4996, 0
      %v5062 = vsel %vm907, %v4997, 0
      %v5065 = vsel %vm907, %v4998, 0
      %v5068 = vsel %vm907, %v4999, 0
      %v5071 = vsel %vm907, %v5000, 0
      %5073 = vmatpush.msra.mxu0 0.0
      %5074 = vmatpush.msra.mxu0 0.0
      %5075 = vmatpush.msra.mxu0 0.0
      %5076 = vmatpush.msra.mxu0 0.0
      %5077 = vmatpush.msra.mxu0 0.0
      %5078 = vmatpush.msra.mxu0 0.0
      %5079 = vmatpush.msra.mxu0 0.0
      %5080 = vmatpush.msra.mxu0 0.0
      %5081 = vmatpush.msra.mxu0 %v5040
      %5082 = vmatpush.msra.mxu0 %v5038
      %5083 = vmatpush.msra.mxu0 %v5036
      %5084 = vmatpush.msra.mxu0 %v5034
      %5085 = vmatpush.msra.mxu0 %v5032
      %5086 = vmatpush.msra.mxu0 %v5030
      %5087 = vmatpush.msra.mxu0 %v5028
      %5088 = vmatpush.msra.mxu0 %v5026
      %5089 = vmatmul.f32.gmra.mxu0 %v5050
      %v5090 = vpop.f32.mrf.mxu0
      %v5091 = vadd.f32 0.0, %v5090
      %5092 = vmatmul.f32.gmra.mxu0 %v5053
      %v5093 = vpop.f32.mrf.mxu0
      %v5094 = vadd.f32 0.0, %v5093
      %5095 = vmatmul.f32.gmra.mxu0 %v5056
      %v5096 = vpop.f32.mrf.mxu0
      %v5097 = vadd.f32 0.0, %v5096
      %5098 = vmatmul.f32.gmra.mxu0 %v5059
      %v5099 = vpop.f32.mrf.mxu0
      %v5100 = vadd.f32 0.0, %v5099
      %5101 = vmatmul.f32.gmra.mxu0 %v5062
      %v5102 = vpop.f32.mrf.mxu0
      %v5103 = vadd.f32 0.0, %v5102
      %5104 = vmatmul.f32.gmra.mxu0 %v5065
      %v5105 = vpop.f32.mrf.mxu0
      %v5106 = vadd.f32 0.0, %v5105
      %5107 = vmatmul.f32.gmra.mxu0 %v5068
      %v5108 = vpop.f32.mrf.mxu0
      %v5109 = vadd.f32 0.0, %v5108
      %5110 = vmatmul.f32.gmra.mxu0 %v5071
      %v5111 = vpop.f32.mrf.mxu0
      %v5112 = vadd.f32 0.0, %v5111
      %5113 = vdwg.mxu0
      %5114 = vrot.lane.b32.xlu0 %v439, 40
      %v5115 = vpop.permute.xlu0 %5114
      %5116 = vrot.lane.b32.xlu0 %v442, 40
      %v5117 = vpop.permute.xlu0 %5116
      %5118 = vrot.lane.b32.xlu0 %v445, 40
      %v5119 = vpop.permute.xlu0 %5118
      %5120 = vrot.lane.b32.xlu0 %v448, 40
      %v5121 = vpop.permute.xlu0 %5120
      %5122 = vrot.lane.b32.xlu0 %v451, 40
      %v5123 = vpop.permute.xlu0 %5122
      %5124 = vrot.lane.b32.xlu0 %v454, 40
      %v5125 = vpop.permute.xlu0 %5124
      %5126 = vrot.lane.b32.xlu0 %v457, 40
      %v5127 = vpop.permute.xlu0 %5126
      %5128 = vrot.lane.b32.xlu0 %v460, 40
      %v5129 = vpop.permute.xlu0 %5128
      %v5139 = vsel %vm907, %v5001, 0
      %v5142 = vsel %vm907, %v5002, 0
      %v5145 = vsel %vm907, %v5003, 0
      %v5148 = vsel %vm907, %v5004, 0
      %v5151 = vsel %vm907, %v5005, 0
      %v5154 = vsel %vm907, %v5006, 0
      %v5157 = vsel %vm907, %v5007, 0
      %v5160 = vsel %vm907, %v5008, 0
      %5162 = vmatpush.msra.mxu0 0.0
      %5163 = vmatpush.msra.mxu0 0.0
      %5164 = vmatpush.msra.mxu0 0.0
      %5165 = vmatpush.msra.mxu0 0.0
      %5166 = vmatpush.msra.mxu0 0.0
      %5167 = vmatpush.msra.mxu0 0.0
      %5168 = vmatpush.msra.mxu0 0.0
      %5169 = vmatpush.msra.mxu0 0.0
      %5170 = vmatpush.msra.mxu0 %v5129
      %5171 = vmatpush.msra.mxu0 %v5127
      %5172 = vmatpush.msra.mxu0 %v5125
      %5173 = vmatpush.msra.mxu0 %v5123
      %5174 = vmatpush.msra.mxu0 %v5121
      %5175 = vmatpush.msra.mxu0 %v5119
      %5176 = vmatpush.msra.mxu0 %v5117
      %5177 = vmatpush.msra.mxu0 %v5115
      %5178 = vmatmul.f32.gmra.mxu0 %v5139
      %v5179 = vpop.f32.mrf.mxu0
      %v5180 = vadd.f32 0.0, %v5179
      %5181 = vmatmul.f32.gmra.mxu0 %v5142
      %v5182 = vpop.f32.mrf.mxu0
      %v5183 = vadd.f32 0.0, %v5182
      %5184 = vmatmul.f32.gmra.mxu0 %v5145
      %v5185 = vpop.f32.mrf.mxu0
      %v5186 = vadd.f32 0.0, %v5185
      %5187 = vmatmul.f32.gmra.mxu0 %v5148
      %v5188 = vpop.f32.mrf.mxu0
      %v5189 = vadd.f32 0.0, %v5188
      %5190 = vmatmul.f32.gmra.mxu0 %v5151
      %v5191 = vpop.f32.mrf.mxu0
      %v5192 = vadd.f32 0.0, %v5191
      %5193 = vmatmul.f32.gmra.mxu0 %v5154
      %v5194 = vpop.f32.mrf.mxu0
      %v5195 = vadd.f32 0.0, %v5194
      %5196 = vmatmul.f32.gmra.mxu0 %v5157
      %v5197 = vpop.f32.mrf.mxu0
      %v5198 = vadd.f32 0.0, %v5197
      %5199 = vmatmul.f32.gmra.mxu0 %v5160
      %v5200 = vpop.f32.mrf.mxu0
      %v5201 = vadd.f32 0.0, %v5200
      %5202 = vdwg.mxu0
      %5203 = vrot.lane.b32.xlu0 %v463, 40
      %v5204 = vpop.permute.xlu0 %5203
      %5205 = vrot.lane.b32.xlu0 %v466, 40
      %v5206 = vpop.permute.xlu0 %5205
      %5207 = vrot.lane.b32.xlu0 %v469, 40
      %v5208 = vpop.permute.xlu0 %5207
      %5209 = vrot.lane.b32.xlu0 %v472, 40
      %v5210 = vpop.permute.xlu0 %5209
      %5211 = vrot.lane.b32.xlu0 %v475, 40
      %v5212 = vpop.permute.xlu0 %5211
      %5213 = vrot.lane.b32.xlu0 %v478, 40
      %v5214 = vpop.permute.xlu0 %5213
      %5215 = vrot.lane.b32.xlu0 %v481, 40
      %v5216 = vpop.permute.xlu0 %5215
      %5217 = vrot.lane.b32.xlu0 %v484, 40
      %v5218 = vpop.permute.xlu0 %5217
      %v5228 = vsel %vm907, %v5009, 0
      %v5231 = vsel %vm907, %v5010, 0
      %v5234 = vsel %vm907, %v5011, 0
      %v5237 = vsel %vm907, %v5012, 0
      %v5240 = vsel %vm907, %v5013, 0
      %v5243 = vsel %vm907, %v5014, 0
      %v5246 = vsel %vm907, %v5015, 0
      %v5249 = vsel %vm907, %v5016, 0
      %5251 = vmatpush.msra.mxu0 0.0
      %5252 = vmatpush.msra.mxu0 0.0
      %5253 = vmatpush.msra.mxu0 0.0
      %5254 = vmatpush.msra.mxu0 0.0
      %5255 = vmatpush.msra.mxu0 0.0
      %5256 = vmatpush.msra.mxu0 0.0
      %5257 = vmatpush.msra.mxu0 0.0
      %5258 = vmatpush.msra.mxu0 0.0
      %5259 = vmatpush.msra.mxu0 %v5218
      %5260 = vmatpush.msra.mxu0 %v5216
      %5261 = vmatpush.msra.mxu0 %v5214
      %5262 = vmatpush.msra.mxu0 %v5212
      %5263 = vmatpush.msra.mxu0 %v5210
      %5264 = vmatpush.msra.mxu0 %v5208
      %5265 = vmatpush.msra.mxu0 %v5206
      %5266 = vmatpush.msra.mxu0 %v5204
      %5267 = vmatmul.f32.gmra.mxu0 %v5228
      %v5268 = vpop.f32.mrf.mxu0
      %v5269 = vadd.f32 0.0, %v5268
      %5270 = vmatmul.f32.gmra.mxu0 %v5231
      %v5271 = vpop.f32.mrf.mxu0
      %v5272 = vadd.f32 0.0, %v5271
      %5273 = vmatmul.f32.gmra.mxu0 %v5234
      %v5274 = vpop.f32.mrf.mxu0
      %v5275 = vadd.f32 0.0, %v5274
      %5276 = vmatmul.f32.gmra.mxu0 %v5237
      %v5277 = vpop.f32.mrf.mxu0
      %v5278 = vadd.f32 0.0, %v5277
      %5279 = vmatmul.f32.gmra.mxu0 %v5240
      %v5280 = vpop.f32.mrf.mxu0
      %v5281 = vadd.f32 0.0, %v5280
      %5282 = vmatmul.f32.gmra.mxu0 %v5243
      %v5283 = vpop.f32.mrf.mxu0
      %v5284 = vadd.f32 0.0, %v5283
      %5285 = vmatmul.f32.gmra.mxu0 %v5246
      %v5286 = vpop.f32.mrf.mxu0
      %v5287 = vadd.f32 0.0, %v5286
      %5288 = vmatmul.f32.gmra.mxu0 %v5249
      %v5289 = vpop.f32.mrf.mxu0
      %v5290 = vadd.f32 0.0, %v5289
      %5291 = vdwg.mxu0
      %5292 = vrot.lane.b32.xlu0 %v487, 40
      %v5293 = vpop.permute.xlu0 %5292
      %5294 = vrot.lane.b32.xlu0 %v490, 40
      %v5295 = vpop.permute.xlu0 %5294
      %5296 = vrot.lane.b32.xlu0 %v493, 40
      %v5297 = vpop.permute.xlu0 %5296
      %5298 = vrot.lane.b32.xlu0 %v496, 40
      %v5299 = vpop.permute.xlu0 %5298
      %5300 = vrot.lane.b32.xlu0 %v499, 40
      %v5301 = vpop.permute.xlu0 %5300
      %5302 = vrot.lane.b32.xlu0 %v502, 40
      %v5303 = vpop.permute.xlu0 %5302
      %5304 = vrot.lane.b32.xlu0 %v505, 40
      %v5305 = vpop.permute.xlu0 %5304
      %5306 = vrot.lane.b32.xlu0 %v508, 40
      %v5307 = vpop.permute.xlu0 %5306
      %v5317 = vsel %vm907, %v5017, 0
      %v5320 = vsel %vm907, %v5018, 0
      %v5323 = vsel %vm907, %v5019, 0
      %v5326 = vsel %vm907, %v5020, 0
      %v5329 = vsel %vm907, %v5021, 0
      %v5332 = vsel %vm907, %v5022, 0
      %v5335 = vsel %vm907, %v5023, 0
      %v5338 = vsel %vm907, %v5024, 0
      %5340 = vmatpush.msra.mxu0 0.0
      %5341 = vmatpush.msra.mxu0 0.0
      %5342 = vmatpush.msra.mxu0 0.0
      %5343 = vmatpush.msra.mxu0 0.0
      %5344 = vmatpush.msra.mxu0 0.0
      %5345 = vmatpush.msra.mxu0 0.0
      %5346 = vmatpush.msra.mxu0 0.0
      %5347 = vmatpush.msra.mxu0 0.0
      %5348 = vmatpush.msra.mxu0 %v5307
      %5349 = vmatpush.msra.mxu0 %v5305
      %5350 = vmatpush.msra.mxu0 %v5303
      %5351 = vmatpush.msra.mxu0 %v5301
      %5352 = vmatpush.msra.mxu0 %v5299
      %5353 = vmatpush.msra.mxu0 %v5297
      %5354 = vmatpush.msra.mxu0 %v5295
      %5355 = vmatpush.msra.mxu0 %v5293
      %5356 = vmatmul.f32.gmra.mxu0 %v5317
      %v5357 = vpop.f32.mrf.mxu0
      %v5358 = vadd.f32 0.0, %v5357
      %5359 = vmatmul.f32.gmra.mxu0 %v5320
      %v5360 = vpop.f32.mrf.mxu0
      %v5361 = vadd.f32 0.0, %v5360
      %5362 = vmatmul.f32.gmra.mxu0 %v5323
      %v5363 = vpop.f32.mrf.mxu0
      %v5364 = vadd.f32 0.0, %v5363
      %5365 = vmatmul.f32.gmra.mxu0 %v5326
      %v5366 = vpop.f32.mrf.mxu0
      %v5367 = vadd.f32 0.0, %v5366
      %5368 = vmatmul.f32.gmra.mxu0 %v5329
      %v5369 = vpop.f32.mrf.mxu0
      %v5370 = vadd.f32 0.0, %v5369
      %5371 = vmatmul.f32.gmra.mxu0 %v5332
      %v5372 = vpop.f32.mrf.mxu0
      %v5373 = vadd.f32 0.0, %v5372
      %5374 = vmatmul.f32.gmra.mxu0 %v5335
      %v5375 = vpop.f32.mrf.mxu0
      %v5376 = vadd.f32 0.0, %v5375
      %5377 = vmatmul.f32.gmra.mxu0 %v5338
      %v5378 = vpop.f32.mrf.mxu0
      %v5379 = vadd.f32 0.0, %v5378
      %5380 = vdwg.mxu0
      %5413 = vrot.lane.b32.xlu0 %v5091, 24
      %v5414 = vpop.permute.xlu0 %5413
      %5415 = vrot.lane.b32.xlu0 %v5094, 24
      %v5416 = vpop.permute.xlu0 %5415
      %5417 = vrot.lane.b32.xlu0 %v5097, 24
      %v5418 = vpop.permute.xlu0 %5417
      %5419 = vrot.lane.b32.xlu0 %v5100, 24
      %v5420 = vpop.permute.xlu0 %5419
      %5421 = vrot.lane.b32.xlu0 %v5103, 24
      %v5422 = vpop.permute.xlu0 %5421
      %5423 = vrot.lane.b32.xlu0 %v5106, 24
      %v5424 = vpop.permute.xlu0 %5423
      %5425 = vrot.lane.b32.xlu0 %v5109, 24
      %v5426 = vpop.permute.xlu0 %5425
      %5427 = vrot.lane.b32.xlu0 %v5112, 24
      %v5428 = vpop.permute.xlu0 %5427
      %5429 = vrot.lane.b32.xlu0 %v5180, 24
      %v5430 = vpop.permute.xlu0 %5429
      %5431 = vrot.lane.b32.xlu0 %v5183, 24
      %v5432 = vpop.permute.xlu0 %5431
      %5433 = vrot.lane.b32.xlu0 %v5186, 24
      %v5434 = vpop.permute.xlu0 %5433
      %5435 = vrot.lane.b32.xlu0 %v5189, 24
      %v5436 = vpop.permute.xlu0 %5435
      %5437 = vrot.lane.b32.xlu0 %v5192, 24
      %v5438 = vpop.permute.xlu0 %5437
      %5439 = vrot.lane.b32.xlu0 %v5195, 24
      %v5440 = vpop.permute.xlu0 %5439
      %5441 = vrot.lane.b32.xlu0 %v5198, 24
      %v5442 = vpop.permute.xlu0 %5441
      %5443 = vrot.lane.b32.xlu0 %v5201, 24
      %v5444 = vpop.permute.xlu0 %5443
      %5445 = vrot.lane.b32.xlu0 %v5269, 24
      %v5446 = vpop.permute.xlu0 %5445
      %5447 = vrot.lane.b32.xlu0 %v5272, 24
      %v5448 = vpop.permute.xlu0 %5447
      %5449 = vrot.lane.b32.xlu0 %v5275, 24
      %v5450 = vpop.permute.xlu0 %5449
      %5451 = vrot.lane.b32.xlu0 %v5278, 24
      %v5452 = vpop.permute.xlu0 %5451
      %5453 = vrot.lane.b32.xlu0 %v5281, 24
      %v5454 = vpop.permute.xlu0 %5453
      %5455 = vrot.lane.b32.xlu0 %v5284, 24
      %v5456 = vpop.permute.xlu0 %5455
      %5457 = vrot.lane.b32.xlu0 %v5287, 24
      %v5458 = vpop.permute.xlu0 %5457
      %5459 = vrot.lane.b32.xlu0 %v5290, 24
      %v5460 = vpop.permute.xlu0 %5459
      %5461 = vrot.lane.b32.xlu0 %v5358, 24
      %v5462 = vpop.permute.xlu0 %5461
      %5463 = vrot.lane.b32.xlu0 %v5361, 24
      %v5464 = vpop.permute.xlu0 %5463
      %5465 = vrot.lane.b32.xlu0 %v5364, 24
      %v5466 = vpop.permute.xlu0 %5465
      %5467 = vrot.lane.b32.xlu0 %v5367, 24
      %v5468 = vpop.permute.xlu0 %5467
      %5469 = vrot.lane.b32.xlu0 %v5370, 24
      %v5470 = vpop.permute.xlu0 %5469
      %5471 = vrot.lane.b32.xlu0 %v5373, 24
      %v5472 = vpop.permute.xlu0 %5471
      %5473 = vrot.lane.b32.xlu0 %v5376, 24
      %v5474 = vpop.permute.xlu0 %5473
      %5475 = vrot.lane.b32.xlu0 %v5379, 24
      %v5476 = vpop.permute.xlu0 %5475
      %vm5509 = vcmask 261312
      %5510 = vst.msk [vmem:[#allocation2] sm:$0xff] %vm5509, %v5414
      %5511 = vst.msk [vmem:[#allocation2 + $0x8] sm:$0xff] %vm5509, %v5416
      %5512 = vst.msk [vmem:[#allocation2 + $0x10] sm:$0xff] %vm5509, %v5418
      %5513 = vst.msk [vmem:[#allocation2 + $0x18] sm:$0xff] %vm5509, %v5420
      %5514 = vst.msk [vmem:[#allocation2 + $0x20] sm:$0xff] %vm5509, %v5422
      %5515 = vst.msk [vmem:[#allocation2 + $0x28] sm:$0xff] %vm5509, %v5424
      %5516 = vst.msk [vmem:[#allocation2 + $0x30] sm:$0xff] %vm5509, %v5426
      %5517 = vst.msk [vmem:[#allocation2 + $0x38] sm:$0xff] %vm5509, %v5428
      %5518 = vst.msk [vmem:[#allocation2 + $0x40] sm:$0xff] %vm5509, %v5430
      %5519 = vst.msk [vmem:[#allocation2 + $0x48] sm:$0xff] %vm5509, %v5432
      %5520 = vst.msk [vmem:[#allocation2 + $0x50] sm:$0xff] %vm5509, %v5434
      %5521 = vst.msk [vmem:[#allocation2 + $0x58] sm:$0xff] %vm5509, %v5436
      %5522 = vst.msk [vmem:[#allocation2 + $0x60] sm:$0xff] %vm5509, %v5438
      %5523 = vst.msk [vmem:[#allocation2 + $0x68] sm:$0xff] %vm5509, %v5440
      %5524 = vst.msk [vmem:[#allocation2 + $0x70] sm:$0xff] %vm5509, %v5442
      %5525 = vst.msk [vmem:[#allocation2 + $0x78] sm:$0xff] %vm5509, %v5444
      %5526 = vst.msk [vmem:[#allocation2 + $0x80] sm:$0xff] %vm5509, %v5446
      %5527 = vst.msk [vmem:[#allocation2 + $0x88] sm:$0xff] %vm5509, %v5448
      %5528 = vst.msk [vmem:[#allocation2 + $0x90] sm:$0xff] %vm5509, %v5450
      %5529 = vst.msk [vmem:[#allocation2 + $0x98] sm:$0xff] %vm5509, %v5452
      %5530 = vst.msk [vmem:[#allocation2 + $0xa0] sm:$0xff] %vm5509, %v5454
      %5531 = vst.msk [vmem:[#allocation2 + $0xa8] sm:$0xff] %vm5509, %v5456
      %5532 = vst.msk [vmem:[#allocation2 + $0xb0] sm:$0xff] %vm5509, %v5458
      %5533 = vst.msk [vmem:[#allocation2 + $0xb8] sm:$0xff] %vm5509, %v5460
      %5534 = vst.msk [vmem:[#allocation2 + $0xc0] sm:$0xff] %vm5509, %v5462
      %5535 = vst.msk [vmem:[#allocation2 + $0xc8] sm:$0xff] %vm5509, %v5464
      %5536 = vst.msk [vmem:[#allocation2 + $0xd0] sm:$0xff] %vm5509, %v5466
      %5537 = vst.msk [vmem:[#allocation2 + $0xd8] sm:$0xff] %vm5509, %v5468
      %5538 = vst.msk [vmem:[#allocation2 + $0xe0] sm:$0xff] %vm5509, %v5470
      %5539 = vst.msk [vmem:[#allocation2 + $0xe8] sm:$0xff] %vm5509, %v5472
      %5540 = vst.msk [vmem:[#allocation2 + $0xf0] sm:$0xff] %vm5509, %v5474
      %5541 = vst.msk [vmem:[#allocation2 + $0xf8] sm:$0xff] %vm5509, %v5476
      %v5542 = vld [vmem:[#allocation2] sm:$0xff]
      %v5543 = vld [vmem:[#allocation2 + $0x8] sm:$0xff]
      %v5544 = vld [vmem:[#allocation2 + $0x10] sm:$0xff]
      %v5545 = vld [vmem:[#allocation2 + $0x18] sm:$0xff]
      %v5546 = vld [vmem:[#allocation2 + $0x20] sm:$0xff]
      %v5547 = vld [vmem:[#allocation2 + $0x28] sm:$0xff]
      %v5548 = vld [vmem:[#allocation2 + $0x30] sm:$0xff]
      %v5549 = vld [vmem:[#allocation2 + $0x38] sm:$0xff]
      %v5550 = vld [vmem:[#allocation2 + $0x40] sm:$0xff]
      %v5551 = vld [vmem:[#allocation2 + $0x48] sm:$0xff]
      %v5552 = vld [vmem:[#allocation2 + $0x50] sm:$0xff]
      %v5553 = vld [vmem:[#allocation2 + $0x58] sm:$0xff]
      %v5554 = vld [vmem:[#allocation2 + $0x60] sm:$0xff]
      %v5555 = vld [vmem:[#allocation2 + $0x68] sm:$0xff]
      %v5556 = vld [vmem:[#allocation2 + $0x70] sm:$0xff]
      %v5557 = vld [vmem:[#allocation2 + $0x78] sm:$0xff]
      %v5558 = vld [vmem:[#allocation2 + $0x80] sm:$0xff]
      %v5559 = vld [vmem:[#allocation2 + $0x88] sm:$0xff]
      %v5560 = vld [vmem:[#allocation2 + $0x90] sm:$0xff]
      %v5561 = vld [vmem:[#allocation2 + $0x98] sm:$0xff]
      %v5562 = vld [vmem:[#allocation2 + $0xa0] sm:$0xff]
      %v5563 = vld [vmem:[#allocation2 + $0xa8] sm:$0xff]
      %v5564 = vld [vmem:[#allocation2 + $0xb0] sm:$0xff]
      %v5565 = vld [vmem:[#allocation2 + $0xb8] sm:$0xff]
      %v5566 = vld [vmem:[#allocation2 + $0xc0] sm:$0xff]
      %v5567 = vld [vmem:[#allocation2 + $0xc8] sm:$0xff]
      %v5568 = vld [vmem:[#allocation2 + $0xd0] sm:$0xff]
      %v5569 = vld [vmem:[#allocation2 + $0xd8] sm:$0xff]
      %v5570 = vld [vmem:[#allocation2 + $0xe0] sm:$0xff]
      %v5571 = vld [vmem:[#allocation2 + $0xe8] sm:$0xff]
      %v5572 = vld [vmem:[#allocation2 + $0xf0] sm:$0xff]
      %v5573 = vld [vmem:[#allocation2 + $0xf8] sm:$0xff]
      %v5574 = vld [vmem:[%s4] sm:$0xff]
      %v5575 = vld [vmem:[%s4 + $0x8] sm:$0xff]
      %v5576 = vld [vmem:[%s4 + $0x10] sm:$0xff]
      %v5577 = vld [vmem:[%s4 + $0x18] sm:$0xff]
      %v5578 = vld [vmem:[%s5] sm:$0x1]
      %v5580 = vperm.slane %v5578, 0
      %v5583 = vsel %vm300, %v5542, 0
      %v5586 = vsel %vm300, %v5543, 0
      %v5589 = vsel %vm300, %v5544, 0
      %v5592 = vsel %vm300, %v5545, 0
      %v5595 = vsel %vm300, %v5546, 0
      %v5598 = vsel %vm300, %v5547, 0
      %v5601 = vsel %vm300, %v5548, 0
      %v5604 = vsel %vm300, %v5549, 0
      %v5607 = vsel %vm300, %v5550, 0
      %v5610 = vsel %vm300, %v5551, 0
      %v5613 = vsel %vm300, %v5552, 0
      %v5616 = vsel %vm300, %v5553, 0
      %v5619 = vsel %vm300, %v5554, 0
      %v5622 = vsel %vm300, %v5555, 0
      %v5625 = vsel %vm300, %v5556, 0
      %v5628 = vsel %vm300, %v5557, 0
      %v5631 = vsel %vm300, %v5558, 0
      %v5634 = vsel %vm300, %v5559, 0
      %v5637 = vsel %vm300, %v5560, 0
      %v5640 = vsel %vm300, %v5561, 0
      %v5643 = vsel %vm300, %v5562, 0
      %v5646 = vsel %vm300, %v5563, 0
      %v5649 = vsel %vm300, %v5564, 0
      %v5652 = vsel %vm300, %v5565, 0
      %v5655 = vsel %vm300, %v5566, 0
      %v5658 = vsel %vm300, %v5567, 0
      %v5661 = vsel %vm300, %v5568, 0
      %v5664 = vsel %vm300, %v5569, 0
      %v5667 = vsel %vm300, %v5570, 0
      %v5670 = vsel %vm300, %v5571, 0
      %v5673 = vsel %vm300, %v5572, 0
      %v5676 = vsel %vm300, %v5573, 0
      %5678 = vmatpush.msra.mxu0 0.0
      %5679 = vmatpush.msra.mxu0 0.0
      %5680 = vmatpush.msra.mxu0 0.0
      %5681 = vmatpush.msra.mxu0 0.0
      %5682 = vmatpush.msra.mxu0 0.0
      %5683 = vmatpush.msra.mxu0 0.0
      %5684 = vmatpush.msra.mxu0 0.0
      %5685 = vmatpush.msra.mxu0 0.0
      %5686 = vmatpush.msra.mxu0 0.0
      %5687 = vmatpush.msra.mxu0 0.0
      %5688 = vmatpush.msra.mxu0 0.0
      %5689 = vmatpush.msra.mxu0 0.0
      %5690 = vmatpush.msra.mxu0 %v5577
      %5691 = vmatpush.msra.mxu0 %v5576
      %5692 = vmatpush.msra.mxu0 %v5575
      %5693 = vmatpush.msra.mxu0 %v5574
      %5694 = vmatmul.f32.gmra.mxu0 %v5583
      %v5695 = vpop.f32.mrf.mxu0
      %v5696 = vadd.f32 %v5580, %v5695
      %5697 = vmatmul.f32.gmra.mxu0 %v5586
      %v5698 = vpop.f32.mrf.mxu0
      %v5699 = vadd.f32 %v5580, %v5698
      %5700 = vmatmul.f32.gmra.mxu0 %v5589
      %v5701 = vpop.f32.mrf.mxu0
      %v5702 = vadd.f32 %v5580, %v5701
      %5703 = vmatmul.f32.gmra.mxu0 %v5592
      %v5704 = vpop.f32.mrf.mxu0
      %v5705 = vadd.f32 %v5580, %v5704
      %5706 = vmatmul.f32.gmra.mxu0 %v5595
      %v5707 = vpop.f32.mrf.mxu0
      %v5708 = vadd.f32 %v5580, %v5707
      %5709 = vmatmul.f32.gmra.mxu0 %v5598
      %v5710 = vpop.f32.mrf.mxu0
      %v5711 = vadd.f32 %v5580, %v5710
      %5712 = vmatmul.f32.gmra.mxu0 %v5601
      %v5713 = vpop.f32.mrf.mxu0
      %v5714 = vadd.f32 %v5580, %v5713
      %5715 = vmatmul.f32.gmra.mxu0 %v5604
      %v5716 = vpop.f32.mrf.mxu0
      %v5717 = vadd.f32 %v5580, %v5716
      %5718 = vmatmul.f32.gmra.mxu0 %v5607
      %v5719 = vpop.f32.mrf.mxu0
      %v5720 = vadd.f32 %v5580, %v5719
      %5721 = vmatmul.f32.gmra.mxu0 %v5610
      %v5722 = vpop.f32.mrf.mxu0
      %v5723 = vadd.f32 %v5580, %v5722
      %5724 = vmatmul.f32.gmra.mxu0 %v5613
      %v5725 = vpop.f32.mrf.mxu0
      %v5726 = vadd.f32 %v5580, %v5725
      %5727 = vmatmul.f32.gmra.mxu0 %v5616
      %v5728 = vpop.f32.mrf.mxu0
      %v5729 = vadd.f32 %v5580, %v5728
      %5730 = vmatmul.f32.gmra.mxu0 %v5619
      %v5731 = vpop.f32.mrf.mxu0
      %v5732 = vadd.f32 %v5580, %v5731
      %5733 = vmatmul.f32.gmra.mxu0 %v5622
      %v5734 = vpop.f32.mrf.mxu0
      %v5735 = vadd.f32 %v5580, %v5734
      %5736 = vmatmul.f32.gmra.mxu0 %v5625
      %v5737 = vpop.f32.mrf.mxu0
      %v5738 = vadd.f32 %v5580, %v5737
      %5739 = vmatmul.f32.gmra.mxu0 %v5628
      %v5740 = vpop.f32.mrf.mxu0
      %v5741 = vadd.f32 %v5580, %v5740
      %5742 = vmatmul.f32.gmra.mxu0 %v5631
      %v5743 = vpop.f32.mrf.mxu0
      %v5744 = vadd.f32 %v5580, %v5743
      %5745 = vmatmul.f32.gmra.mxu0 %v5634
      %v5746 = vpop.f32.mrf.mxu0
      %v5747 = vadd.f32 %v5580, %v5746
      %5748 = vmatmul.f32.gmra.mxu0 %v5637
      %v5749 = vpop.f32.mrf.mxu0
      %v5750 = vadd.f32 %v5580, %v5749
      %5751 = vmatmul.f32.gmra.mxu0 %v5640
      %v5752 = vpop.f32.mrf.mxu0
      %v5753 = vadd.f32 %v5580, %v5752
      %5754 = vmatmul.f32.gmra.mxu0 %v5643
      %v5755 = vpop.f32.mrf.mxu0
      %v5756 = vadd.f32 %v5580, %v5755
      %5757 = vmatmul.f32.gmra.mxu0 %v5646
      %v5758 = vpop.f32.mrf.mxu0
      %v5759 = vadd.f32 %v5580, %v5758
      %5760 = vmatmul.f32.gmra.mxu0 %v5649
      %v5761 = vpop.f32.mrf.mxu0
      %v5762 = vadd.f32 %v5580, %v5761
      %5763 = vmatmul.f32.gmra.mxu0 %v5652
      %v5764 = vpop.f32.mrf.mxu0
      %v5765 = vadd.f32 %v5580, %v5764
      %5766 = vmatmul.f32.gmra.mxu0 %v5655
      %v5767 = vpop.f32.mrf.mxu0
      %v5768 = vadd.f32 %v5580, %v5767
      %5769 = vmatmul.f32.gmra.mxu0 %v5658
      %v5770 = vpop.f32.mrf.mxu0
      %v5771 = vadd.f32 %v5580, %v5770
      %5772 = vmatmul.f32.gmra.mxu0 %v5661
      %v5773 = vpop.f32.mrf.mxu0
      %v5774 = vadd.f32 %v5580, %v5773
      %5775 = vmatmul.f32.gmra.mxu0 %v5664
      %v5776 = vpop.f32.mrf.mxu0
      %v5777 = vadd.f32 %v5580, %v5776
      %5778 = vmatmul.f32.gmra.mxu0 %v5667
      %v5779 = vpop.f32.mrf.mxu0
      %v5780 = vadd.f32 %v5580, %v5779
      %5781 = vmatmul.f32.gmra.mxu0 %v5670
      %v5782 = vpop.f32.mrf.mxu0
      %v5783 = vadd.f32 %v5580, %v5782
      %5784 = vmatmul.f32.gmra.mxu0 %v5673
      %v5785 = vpop.f32.mrf.mxu0
      %v5786 = vadd.f32 %v5580, %v5785
      %5787 = vmatmul.f32.gmra.mxu0 %v5676
      %v5788 = vpop.f32.mrf.mxu0
      %v5789 = vadd.f32 %v5580, %v5788
      %5790 = vdwg.mxu0
      %5791 = vst.msk [vmem:[%s258] sm:$0xff] %vm300, %v5696
      %5792 = vst.msk [vmem:[%s258 + $0x8] sm:$0xff] %vm300, %v5699
      %5793 = vst.msk [vmem:[%s258 + $0x10] sm:$0xff] %vm300, %v5702
      %5794 = vst.msk [vmem:[%s258 + $0x18] sm:$0xff] %vm300, %v5705
      %5795 = vst.msk [vmem:[%s258 + $0x20] sm:$0xff] %vm300, %v5708
      %5796 = vst.msk [vmem:[%s258 + $0x28] sm:$0xff] %vm300, %v5711
      %5797 = vst.msk [vmem:[%s258 + $0x30] sm:$0xff] %vm300, %v5714
      %5798 = vst.msk [vmem:[%s258 + $0x38] sm:$0xff] %vm300, %v5717
      %5799 = vst.msk [vmem:[%s258 + $0x40] sm:$0xff] %vm300, %v5720
      %5800 = vst.msk [vmem:[%s258 + $0x48] sm:$0xff] %vm300, %v5723
      %5801 = vst.msk [vmem:[%s258 + $0x50] sm:$0xff] %vm300, %v5726
      %5802 = vst.msk [vmem:[%s258 + $0x58] sm:$0xff] %vm300, %v5729
      %5803 = vst.msk [vmem:[%s258 + $0x60] sm:$0xff] %vm300, %v5732
      %5804 = vst.msk [vmem:[%s258 + $0x68] sm:$0xff] %vm300, %v5735
      %5805 = vst.msk [vmem:[%s258 + $0x70] sm:$0xff] %vm300, %v5738
      %5806 = vst.msk [vmem:[%s258 + $0x78] sm:$0xff] %vm300, %v5741
      %5807 = vst.msk [vmem:[%s258 + $0x80] sm:$0xff] %vm300, %v5744
      %5808 = vst.msk [vmem:[%s258 + $0x88] sm:$0xff] %vm300, %v5747
      %5809 = vst.msk [vmem:[%s258 + $0x90] sm:$0xff] %vm300, %v5750
      %5810 = vst.msk [vmem:[%s258 + $0x98] sm:$0xff] %vm300, %v5753
      %5811 = vst.msk [vmem:[%s258 + $0xa0] sm:$0xff] %vm300, %v5756
      %5812 = vst.msk [vmem:[%s258 + $0xa8] sm:$0xff] %vm300, %v5759
      %5813 = vst.msk [vmem:[%s258 + $0xb0] sm:$0xff] %vm300, %v5762
      %5814 = vst.msk [vmem:[%s258 + $0xb8] sm:$0xff] %vm300, %v5765
      %5815 = vst.msk [vmem:[%s258 + $0xc0] sm:$0xff] %vm300, %v5768
      %5816 = vst.msk [vmem:[%s258 + $0xc8] sm:$0xff] %vm300, %v5771
      %5817 = vst.msk [vmem:[%s258 + $0xd0] sm:$0xff] %vm300, %v5774
      %5818 = vst.msk [vmem:[%s258 + $0xd8] sm:$0xff] %vm300, %v5777
      %5819 = vst.msk [vmem:[%s258 + $0xe0] sm:$0xff] %vm300, %v5780
      %5820 = vst.msk [vmem:[%s258 + $0xe8] sm:$0xff] %vm300, %v5783
      %5821 = vst.msk [vmem:[%s258 + $0xf0] sm:$0xff] %vm300, %v5786
      %5822 = vst.msk [vmem:[%s258 + $0xf8] sm:$0xff] %vm300, %v5789
      %s5823 = smul.u32 4, %s17
      %p5824 = scmp.lt.s32.totalorder %s5823, 7
      %s5825 = scalar_select %p5824, %s5823, 7
      %s5826 = smul.addr %s5825, 8
      %s5827 = smul.addr %s5826, 8
      %s5828 = scalar_lea.vmem %s6, %s5827
      // Predicated region
      $region45: #{window_attention.1} parent=43 // pred_check
        %p5829 = pneg %p166
      $region46: #{window_attention.1} parent=43 // pred_check_branch
        %5831 = sbr.rel (%p5829) target = $region48
      $region47: #{window_attention.1} parent=43 // pred_region
        %s5832 = smul.u32 4, %s17
      $region48: #{window_attention.1} parent=43 // pred_fallthru
        _
    $region44: #{window_attention.1} parent=5 // pred_fallthru
      _
    %p5833 = scmp.le.s32.totalorder 2, %s12
    // Predicated region
    $region49: #{window_attention.1} parent=5 // pred_check
      %p5834 = pneg %p5833
    $region50: #{window_attention.1} parent=5 // pred_check_branch
      %5836 = sbr.rel (%p5834) target = $region52
    $region51: #{window_attention.1} parent=5 // pred_region
      %s5837 = ssub.s32 %s12, 2
      // Predicated region
      $region53: #{window_attention.1} parent=51 // pred_check
        %p5838 = pneg %p172
      $region54: #{window_attention.1} parent=51 // pred_check_branch
        %5840 = sbr.rel (%p5838) target = $region56
      $region55: #{window_attention.1} parent=51 // pred_region
        %s5841 = smul.u32 4, %s18
        %p5842 = scmp.lt.s32.totalorder %s5841, 7
        %s5843 = scalar_select %p5842, %s5841, 7
        %s5844 = smul.addr %s5843, 8
        %s5845 = smul.addr %s5844, 8
        %s5846 = scalar_lea.vmem %s6, %s5845
      $region56: #{window_attention.1} parent=51 // pred_fallthru
        _
    $region52: #{window_attention.1} parent=5 // pred_fallthru
      _
  $region6: #{window_attention.1} parent=0 // loop_footer
    %s16 = sadd.s32 1, %s12
  $region7: #{window_attention.1} parent=0 // loop_footer_branch
    %11 = sbr.rel target = $region3
  $region8: #{window_attention.1} parent=0 // loop_exit
    _

</llo_original>
